<compile_context>
chip_gen: v7x
topology: tpu7x:2x2x1
jax: 0.10.0
libtpu: 0.0.40
codegen_flags: <defaults>
</compile_context>

<pallas_src>
import math

import jax
import jax.numpy as jnp
import numpy as np
from jax.experimental import pallas as pl

# ----------------------------- model hyper-parameters (small) ---------------------------
D_MODEL = 32
EXPANSION = 2
D_EXPANDED = D_MODEL * EXPANSION            # 64
D_RANK = math.ceil(D_MODEL / 16)            # 2
D_HIDDEN = 16                               # SSM state size N
KERNEL_SIZE = 5
DT_MIN, DT_MAX = 1e-3, 1e-1

B = 2
L = 8                                       # must be a power of two (Hillis-Steele scan)
assert L & (L - 1) == 0, "sequence length must be a power of two for the log2 scan"

NR = B * L                                  # fused batch*time rows (16)
DN = D_EXPANDED * D_HIDDEN                  # lane-dense SSM width (1024)
NSTEPS = int(math.log2(L))                  # scan steps (3)
OUT_PAD = 128                               # lane-padded output width


# ------------------------------------ Pallas kernel -------------------------------------
def mamba_block_kernel(
    x_ref,        # (NR, D_MODEL)
    wx_ref,       # (D_MODEL, DE)       in_proj, x half (pre-transposed)
    bx_ref,       # (1, DE)
    wz_ref,       # (D_MODEL, DE)       in_proj, z half
    bz_ref,       # (1, DE)
    convS_ref,    # (K, NR, NR)         per-tap batch-blocked 0/1 shift matrices
    convW_ref,    # (K, DE)             depthwise taps: conv1d.weight[d,0,k] -> [k,d]
    convB_ref,    # (1, DE)
    wdt_ref,      # (DE, DN)            (x_proj[:, :DR] @ dt_proj.W) expanded onto DE*N lanes
    bdt_ref,      # (1, DN)
    wB_ref,       # (DE, DN)            x_proj B columns, tiled onto DE*N lanes
    bB_ref,       # (1, DN)
    wC_ref,       # (DE, DN)            x_proj C columns, tiled onto DE*N lanes
    bC_ref,       # (1, DN)
    E_ref,        # (DE, DN)            channel -> DE*N expansion matrix (0/1)
    R_ref,        # (DN, DE)            DE*N -> channel reduction matrix (= E.T)
    A_ref,        # (1, DN)             -exp(A_log), flattened (precomputed)
    scanS_ref,    # (NSTEPS, NR, NR)    scan shift matrices (shift 1, 2, 4 within batch)
    scanPad_ref,  # (NSTEPS, NR, 1)     1.0 on rows with no in-batch predecessor
    wout_ref,     # (DE, OUT_PAD)       out_proj, zero-padded to 128 lanes
    bout_ref,     # (1, OUT_PAD)
    o_ref,        # (NR, OUT_PAD)
):
    f32 = jnp.float32
    x = x_ref[...]                                                          # (NR, Dm)

    # ---- in_proj, split weights for x / z (no lane-offset slicing of a 128-wide slab) ----
    xin = jnp.dot(x, wx_ref[...], preferred_element_type=f32) + bx_ref[...]  # (NR, DE)
    z = jnp.dot(x, wz_ref[...], preferred_element_type=f32) + bz_ref[...]    # (NR, DE)

    # ---- depthwise "same" conv1d: per-tap batch-blocked shift matrices on the MXU ----
    acc = jnp.zeros_like(xin)
    for k in range(KERNEL_SIZE):                                             # static unroll
        shifted = jnp.dot(convS_ref[k], xin, preferred_element_type=f32)     # (NR, DE)
        acc = acc + shifted * convW_ref[k:k + 1, :]
    xc = acc + convB_ref[...]
    xc = xc * jax.nn.sigmoid(xc)                                             # SiLU

    # ---- SSM projections, emitted directly in lane-dense (NR, DE*N) form ----
    dtE = jax.nn.softplus(
        jnp.dot(xc, wdt_ref[...], preferred_element_type=f32) + bdt_ref[...])  # (NR, DN)
    BE = jnp.dot(xc, wB_ref[...], preferred_element_type=f32) + bB_ref[...]    # (NR, DN)
    CE = jnp.dot(xc, wC_ref[...], preferred_element_type=f32) + bC_ref[...]    # (NR, DN)
    xcE = jnp.dot(xc, E_ref[...], preferred_element_type=f32)                  # (NR, DN)

    dA = jnp.exp(dtE * A_ref[...])                                           # (NR, DN)
    dBX = dtE * BE * xcE                                                     # (NR, DN)

    # ---- Hillis-Steele scan over time; shifts via 0/1 shift matrices on the MXU ----
    for i in range(NSTEPS):                                                  # static unroll
        S = scanS_ref[i]
        sdBX = jnp.dot(S, dBX, preferred_element_type=f32)                   # 0 on pad rows
        sdA = jnp.dot(S, dA, preferred_element_type=f32) + scanPad_ref[i]    # 1 on pad rows
        dBX = dA * sdBX + dBX
        dA = dA * sdA

    # ---- y[r, d] = sum_n dBX[r, d*N + n] * C[r, n] : lane-group reduction via R ----
    y = jnp.dot(dBX * CE, R_ref[...], preferred_element_type=f32)            # (NR, DE)

    # ---- SiLU(z) gate + out_proj (lane-padded -> unmasked full-lane store) ----
    y = y * (z * jax.nn.sigmoid(z))
    o_ref[...] = jnp.dot(y, wout_ref[...], preferred_element_type=f32) + bout_ref[...]


# --------------------------------------- wrapper -----------------------------------------
def mamba_block(x, kp):
    """x: (B, L, D_MODEL) float32 -> (B, L, D_MODEL) float32."""
    x2 = x.reshape(NR, D_MODEL)
    args = (
        x2,
        kp["w_in_x"], kp["b_in_x"], kp["w_in_z"], kp["b_in_z"],
        kp["conv_S"], kp["conv_w"], kp["conv_b"],
        kp["w_dtE"], kp["b_dtE"], kp["w_BE"], kp["b_BE"], kp["w_CE"], kp["b_CE"],
        kp["E"], kp["R"], kp["A_flat"], kp["scan_S"], kp["scan_pad"],
        kp["w_out"], kp["b_out"],
    )
    # Grid-less single invocation: the whole (tiny) problem lives in VMEM at once,
    # avoiding per-grid-step overhead and duplicate weight staging.
    out = pl.pallas_call(
        mamba_block_kernel,
        out_shape=jax.ShapeDtypeStruct((NR, OUT_PAD), jnp.float32),
    )(*args)
    return out[:, :D_MODEL].reshape(B, L, D_MODEL)


# ------------------------------ deterministic parameter init -----------------------------
def init_params(key):
    """Raw parameters in the PyTorch module's layout."""
    DE, DR, N, K, Dm = D_EXPANDED, D_RANK, D_HIDDEN, KERNEL_SIZE, D_MODEL
    ks = jax.random.split(key, 10)

    def u(k, shape, scale):
        return jax.random.uniform(k, shape, jnp.float32, -scale, scale)

    p = dict(
        in_w=u(ks[0], (2 * DE, Dm), 1.0 / math.sqrt(Dm)),
        in_b=u(ks[1], (2 * DE,), 1.0 / math.sqrt(Dm)),
        out_w=u(ks[2], (Dm, DE), 1.0 / math.sqrt(DE)),
        out_b=u(ks[3], (Dm,), 1.0 / math.sqrt(DE)),
        conv_w=u(ks[4], (DE, 1, K), 1.0 / math.sqrt(K)),
        conv_b=u(ks[5], (DE,), 1.0 / math.sqrt(K)),
        xp_w=u(ks[6], (DR + 2 * N, DE), 1.0 / math.sqrt(DE)),
        xp_b=u(ks[7], (DR + 2 * N,), 1.0 / math.sqrt(DE)),
        dt_w=u(ks[8], (DE, DR), 1.0 / math.sqrt(DR)),
    )
    # dt_proj bias init (as in the module): inverse-softplus of a log-uniform dt
    dt = jnp.exp(jax.random.uniform(ks[9], (DE,), jnp.float32)
                 * (math.log(DT_MAX) - math.log(DT_MIN)) + math.log(DT_MIN))
    dt = jnp.clip(dt, DT_MIN, None)
    p["dt_b"] = dt + jnp.log(-jnp.expm1(-dt))
    p["A_log"] = jnp.log(jnp.tile(jnp.arange(1, N + 1, dtype=jnp.float32)[None, :], (DE, 1)))
    return p


def _shift_matrix(nrows, seg, offset):
    """S @ x gives x[r + offset] on row r (zero if out of range / across a batch boundary)."""
    S = np.zeros((nrows, nrows), np.float64)
    for r in range(nrows):
        src = r + offset
        if 0 <= src < nrows and (r // seg) == (src // seg):
            S[r, src] = 1.0
    return S


def prepare_kernel_params(raw):
    """Fuse / expand the raw parameters into the layouts the kernel consumes."""
    DE, DR, N, K, Dm = D_EXPANDED, D_RANK, D_HIDDEN, KERNEL_SIZE, D_MODEL
    pad = (K - 1) // 2
    r64 = {k: np.asarray(v, np.float64) for k, v in raw.items()}

    # 0/1 layout matrices: expansion (channel d -> N consecutive lanes) and tiling (n -> DE copies)
    E = np.kron(np.eye(DE), np.ones((1, N)))          # (DE, DE*N)
    T = np.tile(np.eye(N), (1, DE))                   # (N,  DE*N)

    in_w, in_b = r64["in_w"], r64["in_b"]
    xp_w, xp_b = r64["xp_w"], r64["xp_b"]
    dt_wT = r64["dt_w"].T                             # (DR, DE)

    # rank-2 dt projection fused into x_proj (done in f64 -> exact algebraic fusion)
    W_dt = xp_w[:DR].T @ dt_wT                        # (DE, DE)
    b_dt = xp_b[:DR] @ dt_wT + r64["dt_b"]            # (DE,)
    A_flat = (-np.exp(r64["A_log"])).reshape(1, DE * N)

    kp = dict(
        w_in_x=in_w[:DE].T, b_in_x=in_b[:DE][None],
        w_in_z=in_w[DE:].T, b_in_z=in_b[DE:][None],
        conv_S=np.stack([_shift_matrix(NR, L, k - pad) for k in range(K)]),
        conv_w=r64["conv_w"][:, 0, :].T,              # (K, DE)
        conv_b=r64["conv_b"][None],
        w_dtE=W_dt @ E, b_dtE=(b_dt @ E)[None],
        w_BE=xp_w[DR:DR + N].T @ T, b_BE=(xp_b[DR:DR + N] @ T)[None],
        w_CE=xp_w[DR + N:].T @ T, b_CE=(xp_b[DR + N:] @ T)[None],
        E=E, R=E.T, A_flat=A_flat,
        scan_S=np.stack([_shift_matrix(NR, L, -(2 ** i)) for i in range(NSTEPS)]),
        w_out=np.pad(r64["out_w"].T, ((0, 0), (0, OUT_PAD - Dm))),
        b_out=np.pad(r64["out_b"], (0, OUT_PAD - Dm))[None],
    )
    kp["scan_pad"] = 1.0 - kp["scan_S"].sum(axis=2, keepdims=True)   # (NSTEPS, NR, 1)
    return {k: jnp.asarray(v, jnp.float32) for k, v in kp.items()}


# ----------------------------- pure-JAX reference (module semantics) ---------------------
def ref_forward(x, p):
    DE, DR, N, K = D_EXPANDED, D_RANK, D_HIDDEN, KERNEL_SIZE
    pad = (K - 1) // 2

    def one(xb):                                      # (L, D_MODEL)
        xz = xb @ p["in_w"].T + p["in_b"]
        xin, z = xz[:, :DE], xz[:, DE:]
        xpad = jnp.pad(xin, ((pad, pad), (0, 0)))
        acc = jnp.zeros((L, DE), jnp.float32)
        for k in range(K):
            acc = acc + xpad[k:k + L] * p["conv_w"][:, 0, k][None, :]
        xc = jax.nn.silu(acc + p["conv_b"][None, :])
        proj = xc @ p["xp_w"].T + p["xp_b"]
        dt_low, Bm, Cm = proj[:, :DR], proj[:, DR:DR + N], proj[:, DR + N:]
        dt = jax.nn.softplus(dt_low @ p["dt_w"].T + p["dt_b"])
        A = -jnp.exp(p["A_log"])
        dA = jnp.exp(dt[:, :, None] * A[None])
        dBX = dt[:, :, None] * Bm[:, None, :] * xc[:, :, None]
        for i in range(NSTEPS):
            s = 2 ** i
            dBX_new = jnp.concatenate([dBX[:s], dA[s:] * dBX[:-s] + dBX[s:]], axis=0)
            dA_new = jnp.concatenate([dA[:s], dA[s:] * dA[:-s]], axis=0)
            dBX, dA = dBX_new, dA_new
        y = jnp.sum(dBX * Cm[:, None, :], axis=-1)
        y = y * jax.nn.silu(z)
        return y @ p["out_w"].T + p["out_b"]

    return jax.vmap(one)(x)


# ------------------------------------------ main -----------------------------------------
if __name__ == "__main__":
    key = jax.random.PRNGKey(0)
    kx, kparam = jax.random.split(key)
    x = jax.random.normal(kx, (B, L, D_MODEL), jnp.float32)

    raw = init_params(kparam)
    kparams = prepare_kernel_params(raw)

    out = jax.block_until_ready(mamba_block(x, kparams))
    ref = jax.block_until_ready(ref_forward(x, raw))

    # Tolerance leaves headroom for MXU pass precision on the extra in-kernel
    # expansion / shift / reduction matmuls that the pure-JAX reference does exactly.
    np.testing.assert_allclose(np.asarray(out), np.asarray(ref), rtol=1e-2, atol=5e-3)

    print("KERNEL_OK")
</pallas_src>

<mosaic_0001>
module attributes {stable_mosaic.version = 11 : i64} {
  func.func @mamba_block_kernel(%arg0: memref<16x32xf32, #tpu.memory_space<vmem>>, %arg1: memref<32x64xf32, #tpu.memory_space<vmem>>, %arg2: memref<1x64xf32, #tpu.memory_space<vmem>>, %arg3: memref<32x64xf32, #tpu.memory_space<vmem>>, %arg4: memref<1x64xf32, #tpu.memory_space<vmem>>, %arg5: memref<5x16x16xf32, #tpu.memory_space<vmem>>, %arg6: memref<5x64xf32, #tpu.memory_space<vmem>>, %arg7: memref<1x64xf32, #tpu.memory_space<vmem>>, %arg8: memref<64x1024xf32, #tpu.memory_space<vmem>>, %arg9: memref<1x1024xf32, #tpu.memory_space<vmem>>, %arg10: memref<64x1024xf32, #tpu.memory_space<vmem>>, %arg11: memref<1x1024xf32, #tpu.memory_space<vmem>>, %arg12: memref<64x1024xf32, #tpu.memory_space<vmem>>, %arg13: memref<1x1024xf32, #tpu.memory_space<vmem>>, %arg14: memref<64x1024xf32, #tpu.memory_space<vmem>>, %arg15: memref<1024x64xf32, #tpu.memory_space<vmem>>, %arg16: memref<1x1024xf32, #tpu.memory_space<vmem>>, %arg17: memref<3x16x16xf32, #tpu.memory_space<vmem>>, %arg18: memref<3x16x1xf32, #tpu.memory_space<vmem>>, %arg19: memref<64x128xf32, #tpu.memory_space<vmem>>, %arg20: memref<1x128xf32, #tpu.memory_space<vmem>>, %arg21: memref<16x128xf32, #tpu.memory_space<vmem>>) attributes {dimension_semantics = [], scalar_prefetch = 0 : i64, scratch_operands = 0 : i64, tpu.core_type = #tpu.core_type<tc>} {
    %c0 = arith.constant 0 : index
    %c0_0 = arith.constant 0 : index
    %0 = vector.load %arg0[%c0, %c0_0] : memref<16x32xf32, #tpu.memory_space<vmem>>, vector<16x32xf32>
    %c0_1 = arith.constant 0 : index
    %c0_2 = arith.constant 0 : index
    %1 = vector.load %arg1[%c0_1, %c0_2] : memref<32x64xf32, #tpu.memory_space<vmem>>, vector<32x64xf32>
    %cst = arith.constant dense<0.000000e+00> : vector<16x64xf32>
    %2 = tpu.matmul %0, %1, %cst {dimension_numbers = #tpu.dot_dimension_numbers<[1], [0], [0], [1], [0, 0, 1, 1], [], []>} : vector<16x32xf32>, vector<32x64xf32>, vector<16x64xf32> -> vector<16x64xf32>
    %c0_3 = arith.constant 0 : index
    %c0_4 = arith.constant 0 : index
    %3 = vector.load %arg2[%c0_3, %c0_4] : memref<1x64xf32, #tpu.memory_space<vmem>>, vector<1x64xf32>
    %4 = vector.broadcast %3 : vector<1x64xf32> to vector<16x64xf32>
    %5 = arith.addf %2, %4 : vector<16x64xf32>
    %c0_5 = arith.constant 0 : index
    %c0_6 = arith.constant 0 : index
    %6 = vector.load %arg3[%c0_5, %c0_6] : memref<32x64xf32, #tpu.memory_space<vmem>>, vector<32x64xf32>
    %cst_7 = arith.constant dense<0.000000e+00> : vector<16x64xf32>
    %7 = tpu.matmul %0, %6, %cst_7 {dimension_numbers = #tpu.dot_dimension_numbers<[1], [0], [0], [1], [0, 0, 1, 1], [], []>} : vector<16x32xf32>, vector<32x64xf32>, vector<16x64xf32> -> vector<16x64xf32>
    %c0_8 = arith.constant 0 : index
    %c0_9 = arith.constant 0 : index
    %8 = vector.load %arg4[%c0_8, %c0_9] : memref<1x64xf32, #tpu.memory_space<vmem>>, vector<1x64xf32>
    %9 = vector.broadcast %8 : vector<1x64xf32> to vector<16x64xf32>
    %10 = arith.addf %7, %9 : vector<16x64xf32>
    %cst_10 = arith.constant 0.000000e+00 : f32
    %11 = vector.broadcast %cst_10 : f32 to vector<16x64xf32>
    %c0_11 = arith.constant 0 : index
    %c0_12 = arith.constant 0 : index
    %c0_13 = arith.constant 0 : index
    %12 = vector.load %arg5[%c0_11, %c0_12, %c0_13] : memref<5x16x16xf32, #tpu.memory_space<vmem>>, vector<1x16x16xf32>
    %13 = vector.shape_cast %12 : vector<1x16x16xf32> to vector<16x16xf32>
    %cst_14 = arith.constant dense<0.000000e+00> : vector<16x64xf32>
    %14 = tpu.matmul %13, %5, %cst_14 {dimension_numbers = #tpu.dot_dimension_numbers<[1], [0], [0], [1], [0, 0, 1, 1], [], []>} : vector<16x16xf32>, vector<16x64xf32>, vector<16x64xf32> -> vector<16x64xf32>
    %c0_15 = arith.constant 0 : index
    %c0_16 = arith.constant 0 : index
    %15 = vector.load %arg6[%c0_15, %c0_16] : memref<5x64xf32, #tpu.memory_space<vmem>>, vector<1x64xf32>
    %16 = vector.broadcast %15 : vector<1x64xf32> to vector<16x64xf32>
    %17 = arith.mulf %14, %16 : vector<16x64xf32>
    %18 = arith.addf %11, %17 : vector<16x64xf32>
    %c1 = arith.constant 1 : index
    %c0_17 = arith.constant 0 : index
    %c0_18 = arith.constant 0 : index
    %19 = vector.load %arg5[%c1, %c0_17, %c0_18] : memref<5x16x16xf32, #tpu.memory_space<vmem>>, vector<1x16x16xf32>
    %20 = vector.shape_cast %19 : vector<1x16x16xf32> to vector<16x16xf32>
    %cst_19 = arith.constant dense<0.000000e+00> : vector<16x64xf32>
    %21 = tpu.matmul %20, %5, %cst_19 {dimension_numbers = #tpu.dot_dimension_numbers<[1], [0], [0], [1], [0, 0, 1, 1], [], []>} : vector<16x16xf32>, vector<16x64xf32>, vector<16x64xf32> -> vector<16x64xf32>
    %c1_20 = arith.constant 1 : index
    %c0_21 = arith.constant 0 : index
    %22 = vector.load %arg6[%c1_20, %c0_21] : memref<5x64xf32, #tpu.memory_space<vmem>>, vector<1x64xf32>
    %23 = vector.broadcast %22 : vector<1x64xf32> to vector<16x64xf32>
    %24 = arith.mulf %21, %23 : vector<16x64xf32>
    %25 = arith.addf %18, %24 : vector<16x64xf32>
    %c2 = arith.constant 2 : index
    %c0_22 = arith.constant 0 : index
    %c0_23 = arith.constant 0 : index
    %26 = vector.load %arg5[%c2, %c0_22, %c0_23] : memref<5x16x16xf32, #tpu.memory_space<vmem>>, vector<1x16x16xf32>
    %27 = vector.shape_cast %26 : vector<1x16x16xf32> to vector<16x16xf32>
    %cst_24 = arith.constant dense<0.000000e+00> : vector<16x64xf32>
    %28 = tpu.matmul %27, %5, %cst_24 {dimension_numbers = #tpu.dot_dimension_numbers<[1], [0], [0], [1], [0, 0, 1, 1], [], []>} : vector<16x16xf32>, vector<16x64xf32>, vector<16x64xf32> -> vector<16x64xf32>
    %c2_25 = arith.constant 2 : index
    %c0_26 = arith.constant 0 : index
    %29 = vector.load %arg6[%c2_25, %c0_26] : memref<5x64xf32, #tpu.memory_space<vmem>>, vector<1x64xf32>
    %30 = vector.broadcast %29 : vector<1x64xf32> to vector<16x64xf32>
    %31 = arith.mulf %28, %30 : vector<16x64xf32>
    %32 = arith.addf %25, %31 : vector<16x64xf32>
    %c3 = arith.constant 3 : index
    %c0_27 = arith.constant 0 : index
    %c0_28 = arith.constant 0 : index
    %33 = vector.load %arg5[%c3, %c0_27, %c0_28] : memref<5x16x16xf32, #tpu.memory_space<vmem>>, vector<1x16x16xf32>
    %34 = vector.shape_cast %33 : vector<1x16x16xf32> to vector<16x16xf32>
    %cst_29 = arith.constant dense<0.000000e+00> : vector<16x64xf32>
    %35 = tpu.matmul %34, %5, %cst_29 {dimension_numbers = #tpu.dot_dimension_numbers<[1], [0], [0], [1], [0, 0, 1, 1], [], []>} : vector<16x16xf32>, vector<16x64xf32>, vector<16x64xf32> -> vector<16x64xf32>
    %c3_30 = arith.constant 3 : index
    %c0_31 = arith.constant 0 : index
    %36 = vector.load %arg6[%c3_30, %c0_31] : memref<5x64xf32, #tpu.memory_space<vmem>>, vector<1x64xf32>
    %37 = vector.broadcast %36 : vector<1x64xf32> to vector<16x64xf32>
    %38 = arith.mulf %35, %37 : vector<16x64xf32>
    %39 = arith.addf %32, %38 : vector<16x64xf32>
    %c4 = arith.constant 4 : index
    %c0_32 = arith.constant 0 : index
    %c0_33 = arith.constant 0 : index
    %40 = vector.load %arg5[%c4, %c0_32, %c0_33] : memref<5x16x16xf32, #tpu.memory_space<vmem>>, vector<1x16x16xf32>
    %41 = vector.shape_cast %40 : vector<1x16x16xf32> to vector<16x16xf32>
    %cst_34 = arith.constant dense<0.000000e+00> : vector<16x64xf32>
    %42 = tpu.matmul %41, %5, %cst_34 {dimension_numbers = #tpu.dot_dimension_numbers<[1], [0], [0], [1], [0, 0, 1, 1], [], []>} : vector<16x16xf32>, vector<16x64xf32>, vector<16x64xf32> -> vector<16x64xf32>
    %c4_35 = arith.constant 4 : index
    %c0_36 = arith.constant 0 : index
    %43 = vector.load %arg6[%c4_35, %c0_36] : memref<5x64xf32, #tpu.memory_space<vmem>>, vector<1x64xf32>
    %44 = vector.broadcast %43 : vector<1x64xf32> to vector<16x64xf32>
    %45 = arith.mulf %42, %44 : vector<16x64xf32>
    %46 = arith.addf %39, %45 : vector<16x64xf32>
    %c0_37 = arith.constant 0 : index
    %c0_38 = arith.constant 0 : index
    %47 = vector.load %arg7[%c0_37, %c0_38] : memref<1x64xf32, #tpu.memory_space<vmem>>, vector<1x64xf32>
    %48 = vector.broadcast %47 : vector<1x64xf32> to vector<16x64xf32>
    %49 = arith.addf %46, %48 : vector<16x64xf32>
    %50 = arith.negf %49 : vector<16x64xf32>
    %51 = math.exp %50 : vector<16x64xf32>
    %cst_39 = arith.constant 1.000000e+00 : f32
    %52 = vector.broadcast %cst_39 : f32 to vector<16x64xf32>
    %53 = arith.addf %52, %51 : vector<16x64xf32>
    %54 = arith.divf %52, %53 : vector<16x64xf32>
    %55 = arith.mulf %49, %54 : vector<16x64xf32>
    %c0_40 = arith.constant 0 : index
    %c0_41 = arith.constant 0 : index
    %56 = vector.load %arg8[%c0_40, %c0_41] : memref<64x1024xf32, #tpu.memory_space<vmem>>, vector<64x1024xf32>
    %cst_42 = arith.constant dense<0.000000e+00> : vector<16x1024xf32>
    %57 = tpu.matmul %55, %56, %cst_42 {dimension_numbers = #tpu.dot_dimension_numbers<[1], [0], [0], [1], [0, 0, 1, 1], [], []>} : vector<16x64xf32>, vector<64x1024xf32>, vector<16x1024xf32> -> vector<16x1024xf32>
    %c0_43 = arith.constant 0 : index
    %c0_44 = arith.constant 0 : index
    %58 = vector.load %arg9[%c0_43, %c0_44] : memref<1x1024xf32, #tpu.memory_space<vmem>>, vector<1x1024xf32>
    %59 = vector.broadcast %58 : vector<1x1024xf32> to vector<16x1024xf32>
    %60 = arith.addf %57, %59 : vector<16x1024xf32>
    %cst_45 = arith.constant 0.000000e+00 : f32
    %61 = vector.broadcast %cst_45 : f32 to vector<16x1024xf32>
    %62 = arith.maximumf %60, %61 : vector<16x1024xf32>
    %63 = vector.broadcast %cst_45 : f32 to vector<16x1024xf32>
    %64 = arith.subf %60, %63 : vector<16x1024xf32>
    %65 = arith.cmpf one, %64, %64 : vector<16x1024xf32>
    %66 = vector.broadcast %cst_45 : f32 to vector<16x1024xf32>
    %67 = arith.addf %60, %66 : vector<16x1024xf32>
    %68 = math.absf %64 : vector<16x1024xf32>
    %cst_46 = arith.constant 0.000000e+00 : f32
    %69 = vector.broadcast %cst_46 : f32 to vector<16x1024xf32>
    %70 = arith.subf %69, %68 : vector<16x1024xf32>
    %71 = math.exp %70 : vector<16x1024xf32>
    %72 = math.log1p %71 : vector<16x1024xf32>
    %73 = arith.addf %62, %72 : vector<16x1024xf32>
    %74 = arith.select %65, %67, %73 : vector<16x1024xi1>, vector<16x1024xf32>
    %c0_47 = arith.constant 0 : index
    %c0_48 = arith.constant 0 : index
    %75 = vector.load %arg10[%c0_47, %c0_48] : memref<64x1024xf32, #tpu.memory_space<vmem>>, vector<64x1024xf32>
    %cst_49 = arith.constant dense<0.000000e+00> : vector<16x1024xf32>
    %76 = tpu.matmul %55, %75, %cst_49 {dimension_numbers = #tpu.dot_dimension_numbers<[1], [0], [0], [1], [0, 0, 1, 1], [], []>} : vector<16x64xf32>, vector<64x1024xf32>, vector<16x1024xf32> -> vector<16x1024xf32>
    %c0_50 = arith.constant 0 : index
    %c0_51 = arith.constant 0 : index
    %77 = vector.load %arg11[%c0_50, %c0_51] : memref<1x1024xf32, #tpu.memory_space<vmem>>, vector<1x1024xf32>
    %78 = vector.broadcast %77 : vector<1x1024xf32> to vector<16x1024xf32>
    %79 = arith.addf %76, %78 : vector<16x1024xf32>
    %c0_52 = arith.constant 0 : index
    %c0_53 = arith.constant 0 : index
    %80 = vector.load %arg12[%c0_52, %c0_53] : memref<64x1024xf32, #tpu.memory_space<vmem>>, vector<64x1024xf32>
    %cst_54 = arith.constant dense<0.000000e+00> : vector<16x1024xf32>
    %81 = tpu.matmul %55, %80, %cst_54 {dimension_numbers = #tpu.dot_dimension_numbers<[1], [0], [0], [1], [0, 0, 1, 1], [], []>} : vector<16x64xf32>, vector<64x1024xf32>, vector<16x1024xf32> -> vector<16x1024xf32>
    %c0_55 = arith.constant 0 : index
    %c0_56 = arith.constant 0 : index
    %82 = vector.load %arg13[%c0_55, %c0_56] : memref<1x1024xf32, #tpu.memory_space<vmem>>, vector<1x1024xf32>
    %83 = vector.broadcast %82 : vector<1x1024xf32> to vector<16x1024xf32>
    %84 = arith.addf %81, %83 : vector<16x1024xf32>
    %c0_57 = arith.constant 0 : index
    %c0_58 = arith.constant 0 : index
    %85 = vector.load %arg14[%c0_57, %c0_58] : memref<64x1024xf32, #tpu.memory_space<vmem>>, vector<64x1024xf32>
    %cst_59 = arith.constant dense<0.000000e+00> : vector<16x1024xf32>
    %86 = tpu.matmul %55, %85, %cst_59 {dimension_numbers = #tpu.dot_dimension_numbers<[1], [0], [0], [1], [0, 0, 1, 1], [], []>} : vector<16x64xf32>, vector<64x1024xf32>, vector<16x1024xf32> -> vector<16x1024xf32>
    %c0_60 = arith.constant 0 : index
    %c0_61 = arith.constant 0 : index
    %87 = vector.load %arg16[%c0_60, %c0_61] : memref<1x1024xf32, #tpu.memory_space<vmem>>, vector<1x1024xf32>
    %88 = vector.broadcast %87 : vector<1x1024xf32> to vector<16x1024xf32>
    %89 = arith.mulf %74, %88 : vector<16x1024xf32>
    %90 = math.exp %89 : vector<16x1024xf32>
    %91 = arith.mulf %74, %79 : vector<16x1024xf32>
    %92 = arith.mulf %91, %86 : vector<16x1024xf32>
    %c0_62 = arith.constant 0 : index
    %c0_63 = arith.constant 0 : index
    %c0_64 = arith.constant 0 : index
    %93 = vector.load %arg17[%c0_62, %c0_63, %c0_64] : memref<3x16x16xf32, #tpu.memory_space<vmem>>, vector<1x16x16xf32>
    %94 = vector.shape_cast %93 : vector<1x16x16xf32> to vector<16x16xf32>
    %cst_65 = arith.constant dense<0.000000e+00> : vector<16x1024xf32>
    %95 = tpu.matmul %94, %92, %cst_65 {dimension_numbers = #tpu.dot_dimension_numbers<[1], [0], [0], [1], [0, 0, 1, 1], [], []>} : vector<16x16xf32>, vector<16x1024xf32>, vector<16x1024xf32> -> vector<16x1024xf32>
    %cst_66 = arith.constant dense<0.000000e+00> : vector<16x1024xf32>
    %96 = tpu.matmul %94, %90, %cst_66 {dimension_numbers = #tpu.dot_dimension_numbers<[1], [0], [0], [1], [0, 0, 1, 1], [], []>} : vector<16x16xf32>, vector<16x1024xf32>, vector<16x1024xf32> -> vector<16x1024xf32>
    %c0_67 = arith.constant 0 : index
    %c0_68 = arith.constant 0 : index
    %c0_69 = arith.constant 0 : index
    %97 = vector.load %arg18[%c0_67, %c0_68, %c0_69] : memref<3x16x1xf32, #tpu.memory_space<vmem>>, vector<1x16x1xf32>
    %98 = vector.shape_cast %97 : vector<1x16x1xf32> to vector<16x1xf32>
    %99 = vector.broadcast %98 : vector<16x1xf32> to vector<16x1024xf32>
    %100 = arith.addf %96, %99 : vector<16x1024xf32>
    %101 = arith.mulf %90, %95 : vector<16x1024xf32>
    %102 = arith.addf %101, %92 : vector<16x1024xf32>
    %103 = arith.mulf %90, %100 : vector<16x1024xf32>
    %c1_70 = arith.constant 1 : index
    %c0_71 = arith.constant 0 : index
    %c0_72 = arith.constant 0 : index
    %104 = vector.load %arg17[%c1_70, %c0_71, %c0_72] : memref<3x16x16xf32, #tpu.memory_space<vmem>>, vector<1x16x16xf32>
    %105 = vector.shape_cast %104 : vector<1x16x16xf32> to vector<16x16xf32>
    %cst_73 = arith.constant dense<0.000000e+00> : vector<16x1024xf32>
    %106 = tpu.matmul %105, %102, %cst_73 {dimension_numbers = #tpu.dot_dimension_numbers<[1], [0], [0], [1], [0, 0, 1, 1], [], []>} : vector<16x16xf32>, vector<16x1024xf32>, vector<16x1024xf32> -> vector<16x1024xf32>
    %cst_74 = arith.constant dense<0.000000e+00> : vector<16x1024xf32>
    %107 = tpu.matmul %105, %103, %cst_74 {dimension_numbers = #tpu.dot_dimension_numbers<[1], [0], [0], [1], [0, 0, 1, 1], [], []>} : vector<16x16xf32>, vector<16x1024xf32>, vector<16x1024xf32> -> vector<16x1024xf32>
    %c1_75 = arith.constant 1 : index
    %c0_76 = arith.constant 0 : index
    %c0_77 = arith.constant 0 : index
    %108 = vector.load %arg18[%c1_75, %c0_76, %c0_77] : memref<3x16x1xf32, #tpu.memory_space<vmem>>, vector<1x16x1xf32>
    %109 = vector.shape_cast %108 : vector<1x16x1xf32> to vector<16x1xf32>
    %110 = vector.broadcast %109 : vector<16x1xf32> to vector<16x1024xf32>
    %111 = arith.addf %107, %110 : vector<16x1024xf32>
    %112 = arith.mulf %103, %106 : vector<16x1024xf32>
    %113 = arith.addf %112, %102 : vector<16x1024xf32>
    %114 = arith.mulf %103, %111 : vector<16x1024xf32>
    %c2_78 = arith.constant 2 : index
    %c0_79 = arith.constant 0 : index
    %c0_80 = arith.constant 0 : index
    %115 = vector.load %arg17[%c2_78, %c0_79, %c0_80] : memref<3x16x16xf32, #tpu.memory_space<vmem>>, vector<1x16x16xf32>
    %116 = vector.shape_cast %115 : vector<1x16x16xf32> to vector<16x16xf32>
    %cst_81 = arith.constant dense<0.000000e+00> : vector<16x1024xf32>
    %117 = tpu.matmul %116, %113, %cst_81 {dimension_numbers = #tpu.dot_dimension_numbers<[1], [0], [0], [1], [0, 0, 1, 1], [], []>} : vector<16x16xf32>, vector<16x1024xf32>, vector<16x1024xf32> -> vector<16x1024xf32>
    %118 = arith.mulf %114, %117 : vector<16x1024xf32>
    %119 = arith.addf %118, %113 : vector<16x1024xf32>
    %120 = arith.mulf %119, %84 : vector<16x1024xf32>
    %c0_82 = arith.constant 0 : index
    %c0_83 = arith.constant 0 : index
    %121 = vector.load %arg15[%c0_82, %c0_83] : memref<1024x64xf32, #tpu.memory_space<vmem>>, vector<1024x64xf32>
    %cst_84 = arith.constant dense<0.000000e+00> : vector<16x64xf32>
    %122 = tpu.matmul %120, %121, %cst_84 {dimension_numbers = #tpu.dot_dimension_numbers<[1], [0], [0], [1], [0, 0, 1, 1], [], []>} : vector<16x1024xf32>, vector<1024x64xf32>, vector<16x64xf32> -> vector<16x64xf32>
    %123 = arith.negf %10 : vector<16x64xf32>
    %124 = math.exp %123 : vector<16x64xf32>
    %cst_85 = arith.constant 1.000000e+00 : f32
    %125 = vector.broadcast %cst_85 : f32 to vector<16x64xf32>
    %126 = arith.addf %125, %124 : vector<16x64xf32>
    %127 = arith.divf %125, %126 : vector<16x64xf32>
    %128 = arith.mulf %10, %127 : vector<16x64xf32>
    %129 = arith.mulf %122, %128 : vector<16x64xf32>
    %c0_86 = arith.constant 0 : index
    %c0_87 = arith.constant 0 : index
    %130 = vector.load %arg19[%c0_86, %c0_87] : memref<64x128xf32, #tpu.memory_space<vmem>>, vector<64x128xf32>
    %cst_88 = arith.constant dense<0.000000e+00> : vector<16x128xf32>
    %131 = tpu.matmul %129, %130, %cst_88 {dimension_numbers = #tpu.dot_dimension_numbers<[1], [0], [0], [1], [0, 0, 1, 1], [], []>} : vector<16x64xf32>, vector<64x128xf32>, vector<16x128xf32> -> vector<16x128xf32>
    %c0_89 = arith.constant 0 : index
    %c0_90 = arith.constant 0 : index
    %132 = vector.load %arg20[%c0_89, %c0_90] : memref<1x128xf32, #tpu.memory_space<vmem>>, vector<1x128xf32>
    %133 = vector.broadcast %132 : vector<1x128xf32> to vector<16x128xf32>
    %134 = arith.addf %131, %133 : vector<16x128xf32>
    %c0_91 = arith.constant 0 : index
    %c0_92 = arith.constant 0 : index
    %135 = vector.load %arg21[%c0_91, %c0_92] : memref<16x128xf32, #tpu.memory_space<vmem>>, vector<16x128xf32>
    tpu.vector_store %arg21[%c0_91, %c0_92], %134 {strides = array<i32>} : memref<16x128xf32, #tpu.memory_space<vmem>>, vector<16x128xf32>,
    return
  }
}

</mosaic_0001>

<llo_original>
// kernel: tpu_custom_call.1
$region0: #{tpu_custom_call.1}
  #allocation0 [shape = 'u32[]', space=smem, size = 0x4, offset = 0x4, fixed_abs, tag = 'smem constant byte address 0x4 - core index']
  #allocation1 [shape = 'u32[144,128]{1,0:T(1,128)}', space=vmem, size = 0x12000, scoped, tag = 'internal scratch']
  %s0 = inlined_call_operand.hbm [shape: f32[16,32], index: 0, kind: input, shape index: {}]
  %s1 = inlined_call_operand.hbm [shape: f32[32,64], index: 1, kind: input, shape index: {}]
  %s2 = inlined_call_operand.hbm [shape: f32[1,64], index: 2, kind: input, shape index: {}]
  %s3 = inlined_call_operand.hbm [shape: f32[32,64], index: 3, kind: input, shape index: {}]
  %s4 = inlined_call_operand.hbm [shape: f32[1,64], index: 4, kind: input, shape index: {}]
  %s5 = inlined_call_operand.hbm [shape: f32[5,16,16], index: 5, kind: input, shape index: {}]
  %s6 = inlined_call_operand.hbm [shape: f32[5,64], index: 6, kind: input, shape index: {}]
  %s7 = inlined_call_operand.hbm [shape: f32[1,64], index: 7, kind: input, shape index: {}]
  %s8 = inlined_call_operand.vmem [shape: f32[64,1024], index: 8, kind: input, shape index: {}]
  %s9 = inlined_call_operand.hbm [shape: f32[1,1024], index: 9, kind: input, shape index: {}]
  %s10 = inlined_call_operand.vmem [shape: f32[64,1024], index: 10, kind: input, shape index: {}]
  %s11 = inlined_call_operand.vmem [shape: f32[1,1024], index: 11, kind: input, shape index: {}]
  %s12 = inlined_call_operand.vmem [shape: f32[64,1024], index: 12, kind: input, shape index: {}]
  %s13 = inlined_call_operand.vmem [shape: f32[1,1024], index: 13, kind: input, shape index: {}]
  %s14 = inlined_call_operand.hbm [shape: f32[64,1024], index: 14, kind: input, shape index: {}]
  %s15 = inlined_call_operand.vmem [shape: f32[1024,64], index: 15, kind: input, shape index: {}]
  %s16 = inlined_call_operand.vmem [shape: f32[1,1024], index: 16, kind: input, shape index: {}]
  %s17 = inlined_call_operand.hbm [shape: f32[3,16,16], index: 17, kind: input, shape index: {}]
  %s18 = inlined_call_operand.vmem [shape: f32[3,16,1], index: 18, kind: input, shape index: {}]
  %s19 = inlined_call_operand.vmem [shape: f32[64,128], index: 19, kind: input, shape index: {}]
  %s20 = inlined_call_operand.vmem [shape: f32[1,128], index: 20, kind: input, shape index: {}]
  %s21 = inlined_call_operand.hbm [shape: f32[16,128], index: 21, kind: output, shape index: {}]
  %s22 = sld [smem:[#allocation0]]
  $region138: #{tpu_custom_call.1} parent=0
    _
  %s24 = ssub.s32 1, %s22
  %s25 = scalar_select 0, %s24, %s22
  $region1: #{tpu_custom_call.1} parent=0
    #allocation2 [shape = 'u8[8192]{0}', space=vmem, size = 0x2000, scoped, tag = 'input window, operand 0, single buffered']
    #allocation3 [shape = 's32[1]{0}', space=sflag, size = 0x4, scoped, tag = 'scoped memory for tpu_custom_call.1']
    #allocation4 [shape = 's32[1]{0}', space=sflag, size = 0x4, scoped, tag = 'scoped memory for tpu_custom_call.1']
    #allocation5 [shape = 'u8[16384]{0}', space=vmem, size = 0x4000, scoped, tag = 'input window, operand 1, single buffered']
    #allocation6 [shape = 's32[1]{0}', space=sflag, size = 0x4, scoped, tag = 'scoped memory for tpu_custom_call.1']
    #allocation7 [shape = 'u8[512]{0}', space=vmem, size = 0x400, scoped, tag = 'input window, operand 2, single buffered']
    #allocation8 [shape = 'u8[16384]{0}', space=vmem, size = 0x4000, scoped, tag = 'input window, operand 3, single buffered']
    #allocation9 [shape = 's32[1]{0}', space=sflag, size = 0x4, scoped, tag = 'scoped memory for tpu_custom_call.1']
    #allocation10 [shape = 'u8[512]{0}', space=vmem, size = 0x400, scoped, tag = 'input window, operand 4, single buffered']
    #allocation11 [shape = 'u8[40960]{0}', space=vmem, size = 0xa000, scoped, tag = 'input window, operand 5, single buffered']
    #allocation12 [shape = 's32[1]{0}', space=sflag, size = 0x4, scoped, tag = 'scoped memory for tpu_custom_call.1']
    #allocation13 [shape = 'u8[4096]{0}', space=vmem, size = 0x1000, scoped, tag = 'input window, operand 6, single buffered']
    #allocation14 [shape = 'u8[512]{0}', space=vmem, size = 0x400, scoped, tag = 'input window, operand 7, single buffered']
    #allocation15 [shape = 's32[1]{0}', space=sflag, size = 0x4, scoped, tag = 'scoped memory for tpu_custom_call.1']
    #allocation16 [shape = 'u8[4096]{0}', space=vmem, size = 0x1000, scoped, tag = 'input window, operand 9, single buffered']
    #allocation17 [shape = 'u8[262144]{0}', space=vmem, size = 0x40000, scoped, tag = 'input window, operand 14, single buffered']
    #allocation18 [shape = 's32[1]{0}', space=sflag, size = 0x4, scoped, tag = 'scoped memory for tpu_custom_call.1']
    #allocation19 [shape = 'u8[24576]{0}', space=vmem, size = 0x6000, scoped, tag = 'input window, operand 17, single buffered']
    #allocation20 [shape = 'u8[8192]{0}', space=vmem, size = 0x2000, scoped, tag = 'output window, operand 0, single buffered']
    %26 = vsyncpa [#allocation3], 0
    %27 = vsyncpa [#allocation6], 0
    %28 = vsyncpa [#allocation9], 0
    %29 = vsyncpa [#allocation12], 0
    %30 = vsyncpa [#allocation15], 0
    %31 = vsyncpa [#allocation18], 0
    %32 = vsyncpa [#allocation4], 0
    // Predicated region
    $region2: #{tpu_custom_call.1} parent=1 // pred_check
      _
    $region3: #{tpu_custom_call.1} parent=1 // pred_check_branch
      %34 = sbr.rel (0) target = $region5
    $region4: #{tpu_custom_call.1} parent=1 // pred_region
      %s36 = ssub.s32 256, 256
      %37 = vsyncadd [#allocation3], %s36
      %s38 = sshll.u32 [#allocation2], 4
      %s39 = int_to_ptr.vmem [resolvable:$true] %s38
      %44 = dma.hbm_to_vmem [thread:$0]  %s0, 256, %s39, [#allocation3], 128, 128, 8
    $region5: #{tpu_custom_call.1} parent=1 // pred_fallthru
      _
    // Predicated region
    $region6: #{tpu_custom_call.1} parent=1 // pred_check
      _
    $region7: #{tpu_custom_call.1} parent=1 // pred_check_branch
      %46 = sbr.rel (0) target = $region9
    $region8: #{tpu_custom_call.1} parent=1 // pred_region
      %s48 = ssub.s32 512, 512
      %49 = vsyncadd [#allocation6], %s48
      %s50 = sshll.u32 [#allocation5], 4
      %s51 = int_to_ptr.vmem [resolvable:$true] %s50
      %56 = dma.hbm_to_vmem [thread:$0]  %s1, 512, %s51, [#allocation6], 128, 128, 8
    $region9: #{tpu_custom_call.1} parent=1 // pred_fallthru
      _
    // Predicated region
    $region10: #{tpu_custom_call.1} parent=1 // pred_check
      _
    $region11: #{tpu_custom_call.1} parent=1 // pred_check_branch
      %58 = sbr.rel (0) target = $region13
    $region12: #{tpu_custom_call.1} parent=1 // pred_region
      %s60 = ssub.s32 16, 16
      %61 = vsyncadd [#allocation6], %s60
      %s63 = sshll.u32 [#allocation7], 4
      %s64 = int_to_ptr.vmem [resolvable:$true] %s63
      %66 = dma.hbm_to_vmem [thread:$0]  %s2, 16, %s64, [#allocation6]
    $region13: #{tpu_custom_call.1} parent=1 // pred_fallthru
      _
    // Predicated region
    $region14: #{tpu_custom_call.1} parent=1 // pred_check
      _
    $region15: #{tpu_custom_call.1} parent=1 // pred_check_branch
      %68 = sbr.rel (0) target = $region17
    $region16: #{tpu_custom_call.1} parent=1 // pred_region
      %s70 = ssub.s32 512, 512
      %71 = vsyncadd [#allocation9], %s70
      %s72 = sshll.u32 [#allocation8], 4
      %s73 = int_to_ptr.vmem [resolvable:$true] %s72
      %78 = dma.hbm_to_vmem [thread:$0]  %s3, 512, %s73, [#allocation9], 128, 128, 8
    $region17: #{tpu_custom_call.1} parent=1 // pred_fallthru
      _
    // Predicated region
    $region18: #{tpu_custom_call.1} parent=1 // pred_check
      _
    $region19: #{tpu_custom_call.1} parent=1 // pred_check_branch
      %80 = sbr.rel (0) target = $region21
    $region20: #{tpu_custom_call.1} parent=1 // pred_region
      %s82 = ssub.s32 16, 16
      %83 = vsyncadd [#allocation9], %s82
      %s85 = sshll.u32 [#allocation10], 4
      %s86 = int_to_ptr.vmem [resolvable:$true] %s85
      %88 = dma.hbm_to_vmem [thread:$0]  %s4, 16, %s86, [#allocation9]
    $region21: #{tpu_custom_call.1} parent=1 // pred_fallthru
      _
    // Predicated region
    $region22: #{tpu_custom_call.1} parent=1 // pred_check
      _
    $region23: #{tpu_custom_call.1} parent=1 // pred_check_branch
      %90 = sbr.rel (0) target = $region25
    $region24: #{tpu_custom_call.1} parent=1 // pred_region
      %s92 = ssub.s32 1280, 1280
      %93 = vsyncadd [#allocation12], %s92
      %s94 = sshll.u32 [#allocation11], 4
      %s95 = int_to_ptr.vmem [resolvable:$true] %s94
      %100 = dma.hbm_to_vmem [thread:$0]  %s5, 1280, %s95, [#allocation12], 128, 128, 8
    $region25: #{tpu_custom_call.1} parent=1 // pred_fallthru
      _
    // Predicated region
    $region26: #{tpu_custom_call.1} parent=1 // pred_check
      _
    $region27: #{tpu_custom_call.1} parent=1 // pred_check_branch
      %102 = sbr.rel (0) target = $region29
    $region28: #{tpu_custom_call.1} parent=1 // pred_region
      %s104 = ssub.s32 128, 128
      %105 = vsyncadd [#allocation12], %s104
      %s107 = sshll.u32 [#allocation13], 4
      %s108 = int_to_ptr.vmem [resolvable:$true] %s107
      %110 = dma.hbm_to_vmem [thread:$0]  %s6, 128, %s108, [#allocation12]
    $region29: #{tpu_custom_call.1} parent=1 // pred_fallthru
      _
    // Predicated region
    $region30: #{tpu_custom_call.1} parent=1 // pred_check
      _
    $region31: #{tpu_custom_call.1} parent=1 // pred_check_branch
      %112 = sbr.rel (0) target = $region33
    $region32: #{tpu_custom_call.1} parent=1 // pred_region
      %s114 = ssub.s32 16, 16
      %115 = vsyncadd [#allocation15], %s114
      %s117 = sshll.u32 [#allocation14], 4
      %s118 = int_to_ptr.vmem [resolvable:$true] %s117
      %120 = dma.hbm_to_vmem [thread:$0]  %s7, 16, %s118, [#allocation15]
    $region33: #{tpu_custom_call.1} parent=1 // pred_fallthru
      _
    // Predicated region
    $region34: #{tpu_custom_call.1} parent=1 // pred_check
      _
    $region35: #{tpu_custom_call.1} parent=1 // pred_check_branch
      %122 = sbr.rel (0) target = $region37
    $region36: #{tpu_custom_call.1} parent=1 // pred_region
      _
    $region37: #{tpu_custom_call.1} parent=1 // pred_fallthru
      _
    // Predicated region
    $region38: #{tpu_custom_call.1} parent=1 // pred_check
      _
    $region39: #{tpu_custom_call.1} parent=1 // pred_check_branch
      %124 = sbr.rel (0) target = $region41
    $region40: #{tpu_custom_call.1} parent=1 // pred_region
      %s126 = ssub.s32 128, 128
      %127 = vsyncadd [#allocation15], %s126
      %s129 = sshll.u32 [#allocation16], 4
      %s130 = int_to_ptr.vmem [resolvable:$true] %s129
      %132 = dma.hbm_to_vmem [thread:$0]  %s9, 128, %s130, [#allocation15]
    $region41: #{tpu_custom_call.1} parent=1 // pred_fallthru
      _
    // Predicated region
    $region42: #{tpu_custom_call.1} parent=1 // pred_check
      _
    $region43: #{tpu_custom_call.1} parent=1 // pred_check_branch
      %134 = sbr.rel (0) target = $region45
    $region44: #{tpu_custom_call.1} parent=1 // pred_region
      _
    $region45: #{tpu_custom_call.1} parent=1 // pred_fallthru
      _
    // Predicated region
    $region46: #{tpu_custom_call.1} parent=1 // pred_check
      _
    $region47: #{tpu_custom_call.1} parent=1 // pred_check_branch
      %136 = sbr.rel (0) target = $region49
    $region48: #{tpu_custom_call.1} parent=1 // pred_region
      _
    $region49: #{tpu_custom_call.1} parent=1 // pred_fallthru
      _
    // Predicated region
    $region50: #{tpu_custom_call.1} parent=1 // pred_check
      _
    $region51: #{tpu_custom_call.1} parent=1 // pred_check_branch
      %138 = sbr.rel (0) target = $region53
    $region52: #{tpu_custom_call.1} parent=1 // pred_region
      _
    $region53: #{tpu_custom_call.1} parent=1 // pred_fallthru
      _
    // Predicated region
    $region54: #{tpu_custom_call.1} parent=1 // pred_check
      _
    $region55: #{tpu_custom_call.1} parent=1 // pred_check_branch
      %140 = sbr.rel (0) target = $region57
    $region56: #{tpu_custom_call.1} parent=1 // pred_region
      _
    $region57: #{tpu_custom_call.1} parent=1 // pred_fallthru
      _
    // Predicated region
    $region58: #{tpu_custom_call.1} parent=1 // pred_check
      _
    $region59: #{tpu_custom_call.1} parent=1 // pred_check_branch
      %142 = sbr.rel (0) target = $region61
    $region60: #{tpu_custom_call.1} parent=1 // pred_region
      %s144 = ssub.s32 8192, 8192
      %145 = vsyncadd [#allocation18], %s144
      %s146 = sshll.u32 [#allocation17], 4
      %s147 = int_to_ptr.vmem [resolvable:$true] %s146
      %152 = dma.hbm_to_vmem [thread:$0]  %s14, 8192, %s147, [#allocation18], 1024, 1024, 64
    $region61: #{tpu_custom_call.1} parent=1 // pred_fallthru
      _
    // Predicated region
    $region62: #{tpu_custom_call.1} parent=1 // pred_check
      _
    $region63: #{tpu_custom_call.1} parent=1 // pred_check_branch
      %154 = sbr.rel (0) target = $region65
    $region64: #{tpu_custom_call.1} parent=1 // pred_region
      _
    $region65: #{tpu_custom_call.1} parent=1 // pred_fallthru
      _
    // Predicated region
    $region66: #{tpu_custom_call.1} parent=1 // pred_check
      _
    $region67: #{tpu_custom_call.1} parent=1 // pred_check_branch
      %156 = sbr.rel (0) target = $region69
    $region68: #{tpu_custom_call.1} parent=1 // pred_region
      _
    $region69: #{tpu_custom_call.1} parent=1 // pred_fallthru
      _
    // Predicated region
    $region70: #{tpu_custom_call.1} parent=1 // pred_check
      _
    $region71: #{tpu_custom_call.1} parent=1 // pred_check_branch
      %158 = sbr.rel (0) target = $region73
    $region72: #{tpu_custom_call.1} parent=1 // pred_region
      %s160 = ssub.s32 768, 768
      %161 = vsyncadd [#allocation18], %s160
      %s162 = sshll.u32 [#allocation19], 4
      %s163 = int_to_ptr.vmem [resolvable:$true] %s162
      %168 = dma.hbm_to_vmem [thread:$0]  %s17, 768, %s163, [#allocation18], 128, 128, 8
    $region73: #{tpu_custom_call.1} parent=1 // pred_fallthru
      _
    // Predicated region
    $region74: #{tpu_custom_call.1} parent=1 // pred_check
      _
    $region75: #{tpu_custom_call.1} parent=1 // pred_check_branch
      %170 = sbr.rel (0) target = $region77
    $region76: #{tpu_custom_call.1} parent=1 // pred_region
      _
    $region77: #{tpu_custom_call.1} parent=1 // pred_fallthru
      _
    // Predicated region
    $region78: #{tpu_custom_call.1} parent=1 // pred_check
      _
    $region79: #{tpu_custom_call.1} parent=1 // pred_check_branch
      %172 = sbr.rel (0) target = $region81
    $region80: #{tpu_custom_call.1} parent=1 // pred_region
      _
    $region81: #{tpu_custom_call.1} parent=1 // pred_fallthru
      _
    // Predicated region
    $region82: #{tpu_custom_call.1} parent=1 // pred_check
      _
    $region83: #{tpu_custom_call.1} parent=1 // pred_check_branch
      %174 = sbr.rel (0) target = $region85
    $region84: #{tpu_custom_call.1} parent=1 // pred_region
      _
    $region85: #{tpu_custom_call.1} parent=1 // pred_fallthru
      _
    // Predicated region
    $region86: #{tpu_custom_call.1} parent=1 // pred_check
      _
    $region87: #{tpu_custom_call.1} parent=1 // pred_check_branch
      %176 = sbr.rel (0) target = $region89
    $region88: #{tpu_custom_call.1} parent=1 // pred_region
      %177 = dma.done [#allocation3], 256
    $region89: #{tpu_custom_call.1} parent=1 // pred_fallthru
      _
    // Predicated region
    $region90: #{tpu_custom_call.1} parent=1 // pred_check
      _
    $region91: #{tpu_custom_call.1} parent=1 // pred_check_branch
      %179 = sbr.rel (0) target = $region93
    $region92: #{tpu_custom_call.1} parent=1 // pred_region
      %180 = dma.done [#allocation6], 512
    $region93: #{tpu_custom_call.1} parent=1 // pred_fallthru
      _
    // Predicated region
    $region94: #{tpu_custom_call.1} parent=1 // pred_check
      _
    $region95: #{tpu_custom_call.1} parent=1 // pred_check_branch
      %182 = sbr.rel (0) target = $region97
    $region96: #{tpu_custom_call.1} parent=1 // pred_region
      %183 = dma.done [#allocation6], 16
    $region97: #{tpu_custom_call.1} parent=1 // pred_fallthru
      _
    // Predicated region
    $region98: #{tpu_custom_call.1} parent=1 // pred_check
      _
    $region99: #{tpu_custom_call.1} parent=1 // pred_check_branch
      %185 = sbr.rel (0) target = $region101
    $region100: #{tpu_custom_call.1} parent=1 // pred_region
      %186 = dma.done [#allocation9], 512
    $region101: #{tpu_custom_call.1} parent=1 // pred_fallthru
      _
    // Predicated region
    $region102: #{tpu_custom_call.1} parent=1 // pred_check
      _
    $region103: #{tpu_custom_call.1} parent=1 // pred_check_branch
      %188 = sbr.rel (0) target = $region105
    $region104: #{tpu_custom_call.1} parent=1 // pred_region
      %189 = dma.done [#allocation9], 16
    $region105: #{tpu_custom_call.1} parent=1 // pred_fallthru
      _
    // Predicated region
    $region106: #{tpu_custom_call.1} parent=1 // pred_check
      _
    $region107: #{tpu_custom_call.1} parent=1 // pred_check_branch
      %191 = sbr.rel (0) target = $region109
    $region108: #{tpu_custom_call.1} parent=1 // pred_region
      %192 = dma.done [#allocation12], 1280
    $region109: #{tpu_custom_call.1} parent=1 // pred_fallthru
      _
    // Predicated region
    $region110: #{tpu_custom_call.1} parent=1 // pred_check
      _
    $region111: #{tpu_custom_call.1} parent=1 // pred_check_branch
      %194 = sbr.rel (0) target = $region113
    $region112: #{tpu_custom_call.1} parent=1 // pred_region
      %195 = dma.done [#allocation12], 128
    $region113: #{tpu_custom_call.1} parent=1 // pred_fallthru
      _
    // Predicated region
    $region114: #{tpu_custom_call.1} parent=1 // pred_check
      _
    $region115: #{tpu_custom_call.1} parent=1 // pred_check_branch
      %197 = sbr.rel (0) target = $region117
    $region116: #{tpu_custom_call.1} parent=1 // pred_region
      %198 = dma.done [#allocation15], 16
    $region117: #{tpu_custom_call.1} parent=1 // pred_fallthru
      _
    // Predicated region
    $region118: #{tpu_custom_call.1} parent=1 // pred_check
      _
    $region119: #{tpu_custom_call.1} parent=1 // pred_check_branch
      %200 = sbr.rel (0) target = $region121
    $region120: #{tpu_custom_call.1} parent=1 // pred_region
      %201 = dma.done [#allocation15], 128
    $region121: #{tpu_custom_call.1} parent=1 // pred_fallthru
      _
    // Predicated region
    $region122: #{tpu_custom_call.1} parent=1 // pred_check
      _
    $region123: #{tpu_custom_call.1} parent=1 // pred_check_branch
      %203 = sbr.rel (0) target = $region125
    $region124: #{tpu_custom_call.1} parent=1 // pred_region
      %204 = dma.done [#allocation18], 8192
    $region125: #{tpu_custom_call.1} parent=1 // pred_fallthru
      _
    // Predicated region
    $region126: #{tpu_custom_call.1} parent=1 // pred_check
      _
    $region127: #{tpu_custom_call.1} parent=1 // pred_check_branch
      %206 = sbr.rel (0) target = $region129
    $region128: #{tpu_custom_call.1} parent=1 // pred_region
      %207 = dma.done [#allocation18], 768
    $region129: #{tpu_custom_call.1} parent=1 // pred_fallthru
      _
    %v208 = vld [vmem:[#allocation2] sm:$0xff]
    %v209 = vld [vmem:[#allocation2 + $0x8] sm:$0xff]
    %v210 = vld [vmem:[#allocation5] sm:$0xff]
    %v211 = vld [vmem:[#allocation5 + $0x8] sm:$0xff]
    %v212 = vld [vmem:[#allocation5 + $0x10] sm:$0xff]
    %v213 = vld [vmem:[#allocation5 + $0x18] sm:$0xff]
    %v214 = vld [vmem:[#allocation7] sm:$0x1]
    %v216 = vlaneseq
    %v217 = vshrl.u32 %v216, 7
    %v218 = vsub.s32 0, %v217
    %v219 = vrot.slane %v214, %v218
    %vm221 = vcmask 261120
    %v223 = vsel %vm221, %v208, 0
    %v226 = vsel %vm221, %v209, 0
    %228 = vmatprep.subr.mxu0 0.0
    %229 = vmatpush1.msra.mxu0 %v210
    %230 = vmatprep.subr.mxu0 0.0
    %231 = vmatpush1.msra.mxu0 %v211
    %232 = vmatprep.subr.mxu0 0.0
    %233 = vmatpush1.msra.mxu0 %v212
    %234 = vmatprep.subr.mxu0 0.0
    %235 = vmatpush1.msra.mxu0 %v213
    %236 = vmatprep.subr.mxu0 0.0
    %237 = vmatpush1.msra.mxu0 0.0
    %238 = vmatprep.subr.mxu0 0.0
    %239 = vmatpush1.msra.mxu0 0.0
    %240 = vmatprep.subr.mxu0 0.0
    %241 = vmatpush1.msra.mxu0 0.0
    %242 = vmatprep.subr.mxu0 0.0
    %243 = vmatpush1.msra.mxu0 0.0
    %244 = vmatprep.subr.mxu0 0.0
    %245 = vmatpush1.msra.mxu0 0.0
    %246 = vmatprep.subr.mxu0 0.0
    %247 = vmatpush1.msra.mxu0 0.0
    %248 = vmatprep.subr.mxu0 0.0
    %249 = vmatpush1.msra.mxu0 0.0
    %250 = vmatprep.subr.mxu0 0.0
    %251 = vmatpush1.msra.mxu0 0.0
    %252 = vmatprep.subr.mxu0 0.0
    %253 = vmatpush1.msra.mxu0 0.0
    %254 = vmatprep.subr.mxu0 0.0
    %255 = vmatpush1.msra.mxu0 0.0
    %256 = vmatprep.subr.mxu0 0.0
    %257 = vmatpush1.msra.mxu0 0.0
    %258 = vmatprep.subr.mxu0 0.0
    %259 = vmatpush1.msra.mxu0 0.0
    %260 = vmatprep.subr.mxu0 0.0
    %261 = vmatpush1.msra.mxu0 0.0
    %262 = vmatprep.subr.mxu0 0.0
    %263 = vmatpush1.msra.mxu0 0.0
    %264 = vmatprep.subr.mxu0 0.0
    %265 = vmatpush1.msra.mxu0 0.0
    %266 = vmatprep.subr.mxu0 0.0
    %267 = vmatpush1.msra.mxu0 0.0
    %268 = vmatprep.subr.mxu0 0.0
    %269 = vmatpush1.msra.mxu0 0.0
    %270 = vmatprep.subr.mxu0 0.0
    %271 = vmatpush1.msra.mxu0 0.0
    %272 = vmatprep.subr.mxu0 0.0
    %273 = vmatpush1.msra.mxu0 0.0
    %274 = vmatprep.subr.mxu0 0.0
    %275 = vmatpush1.msra.mxu0 0.0
    %276 = vmatprep.subr.mxu0 0.0
    %277 = vmatpush1.msra.mxu0 0.0
    %278 = vmatprep.subr.mxu0 0.0
    %279 = vmatpush1.msra.mxu0 0.0
    %280 = vmatprep.subr.mxu0 0.0
    %281 = vmatpush1.msra.mxu0 0.0
    %282 = vmatprep.subr.mxu0 0.0
    %283 = vmatpush1.msra.mxu0 0.0
    %284 = vmatprep.subr.mxu0 0.0
    %285 = vmatpush1.msra.mxu0 0.0
    %286 = vmatprep.subr.mxu0 0.0
    %287 = vmatpush1.msra.mxu0 0.0
    %288 = vmatprep.subr.mxu0 0.0
    %289 = vmatpush1.msra.mxu0 0.0
    %290 = vmatprep.subr.mxu0 0.0
    %291 = vmatpush1.msra.mxu0 0.0
    %292 = vmatprep.mubr.f32.mxu0 0.0
    %293 = vmatmul.mubr.f32.gmra.mrb[0].mxu0 %v223
    %v294 = vpop.f32.mrb[0].mxu0
    %v295 = vadd.f32 %v219, %v294
    %v296 = vpop.f32.mrb[0].mxu0
    %297 = vmatprep.mubr.f32.mxu0 0.0
    %298 = vmatmul.mubr.f32.gmra.mrb[0].mxu0 %v226
    %v299 = vpop.f32.mrb[0].mxu0
    %v300 = vadd.f32 %v219, %v299
    %v301 = vpop.f32.mrb[0].mxu0
    %302 = vdwg.mxu0
    %v303 = vld [vmem:[#allocation8] sm:$0xff]
    %v304 = vld [vmem:[#allocation8 + $0x8] sm:$0xff]
    %v305 = vld [vmem:[#allocation8 + $0x10] sm:$0xff]
    %v306 = vld [vmem:[#allocation8 + $0x18] sm:$0xff]
    %v307 = vld [vmem:[#allocation10] sm:$0x1]
    %v309 = vlaneseq
    %v310 = vshrl.u32 %v309, 7
    %v311 = vsub.s32 0, %v310
    %v312 = vrot.slane %v307, %v311
    %314 = vmatprep.subr.mxu0 0.0
    %315 = vmatpush1.msra.mxu0 %v303
    %316 = vmatprep.subr.mxu0 0.0
    %317 = vmatpush1.msra.mxu0 %v304
    %318 = vmatprep.subr.mxu0 0.0
    %319 = vmatpush1.msra.mxu0 %v305
    %320 = vmatprep.subr.mxu0 0.0
    %321 = vmatpush1.msra.mxu0 %v306
    %322 = vmatprep.subr.mxu0 0.0
    %323 = vmatpush1.msra.mxu0 0.0
    %324 = vmatprep.subr.mxu0 0.0
    %325 = vmatpush1.msra.mxu0 0.0
    %326 = vmatprep.subr.mxu0 0.0
    %327 = vmatpush1.msra.mxu0 0.0
    %328 = vmatprep.subr.mxu0 0.0
    %329 = vmatpush1.msra.mxu0 0.0
    %330 = vmatprep.subr.mxu0 0.0
    %331 = vmatpush1.msra.mxu0 0.0
    %332 = vmatprep.subr.mxu0 0.0
    %333 = vmatpush1.msra.mxu0 0.0
    %334 = vmatprep.subr.mxu0 0.0
    %335 = vmatpush1.msra.mxu0 0.0
    %336 = vmatprep.subr.mxu0 0.0
    %337 = vmatpush1.msra.mxu0 0.0
    %338 = vmatprep.subr.mxu0 0.0
    %339 = vmatpush1.msra.mxu0 0.0
    %340 = vmatprep.subr.mxu0 0.0
    %341 = vmatpush1.msra.mxu0 0.0
    %342 = vmatprep.subr.mxu0 0.0
    %343 = vmatpush1.msra.mxu0 0.0
    %344 = vmatprep.subr.mxu0 0.0
    %345 = vmatpush1.msra.mxu0 0.0
    %346 = vmatprep.subr.mxu0 0.0
    %347 = vmatpush1.msra.mxu0 0.0
    %348 = vmatprep.subr.mxu0 0.0
    %349 = vmatpush1.msra.mxu0 0.0
    %350 = vmatprep.subr.mxu0 0.0
    %351 = vmatpush1.msra.mxu0 0.0
    %352 = vmatprep.subr.mxu0 0.0
    %353 = vmatpush1.msra.mxu0 0.0
    %354 = vmatprep.subr.mxu0 0.0
    %355 = vmatpush1.msra.mxu0 0.0
    %356 = vmatprep.subr.mxu0 0.0
    %357 = vmatpush1.msra.mxu0 0.0
    %358 = vmatprep.subr.mxu0 0.0
    %359 = vmatpush1.msra.mxu0 0.0
    %360 = vmatprep.subr.mxu0 0.0
    %361 = vmatpush1.msra.mxu0 0.0
    %362 = vmatprep.subr.mxu0 0.0
    %363 = vmatpush1.msra.mxu0 0.0
    %364 = vmatprep.subr.mxu0 0.0
    %365 = vmatpush1.msra.mxu0 0.0
    %366 = vmatprep.subr.mxu0 0.0
    %367 = vmatpush1.msra.mxu0 0.0
    %368 = vmatprep.subr.mxu0 0.0
    %369 = vmatpush1.msra.mxu0 0.0
    %370 = vmatprep.subr.mxu0 0.0
    %371 = vmatpush1.msra.mxu0 0.0
    %372 = vmatprep.subr.mxu0 0.0
    %373 = vmatpush1.msra.mxu0 0.0
    %374 = vmatprep.subr.mxu0 0.0
    %375 = vmatpush1.msra.mxu0 0.0
    %376 = vmatprep.subr.mxu0 0.0
    %377 = vmatpush1.msra.mxu0 0.0
    %378 = vmatprep.mubr.f32.mxu0 0.0
    %379 = vmatmul.mubr.f32.gmra.mrb[0].mxu0 %v223
    %v380 = vpop.f32.mrb[0].mxu0
    %v381 = vadd.f32 %v312, %v380
    %v382 = vpop.f32.mrb[0].mxu0
    %383 = vmatprep.mubr.f32.mxu0 0.0
    %384 = vmatmul.mubr.f32.gmra.mrb[0].mxu0 %v226
    %v385 = vpop.f32.mrb[0].mxu0
    %v386 = vadd.f32 %v312, %v385
    %v387 = vpop.f32.mrb[0].mxu0
    %388 = vdwg.mxu0
    %v389 = vld [vmem:[#allocation11] sm:$0xff]
    %v390 = vld [vmem:[#allocation11 + $0x8] sm:$0xff]
    %vm391 = vcmask 130048
    %v393 = vsel %vm391, %v389, 0
    %v396 = vsel %vm391, %v390, 0
    %398 = vmatprep.subr.mxu0 0.0
    %399 = vmatpush1.msra.mxu0 %v295
    %400 = vmatprep.subr.mxu0 0.0
    %401 = vmatpush1.msra.mxu0 %v300
    %402 = vmatprep.subr.mxu0 0.0
    %403 = vmatpush1.msra.mxu0 0.0
    %404 = vmatprep.subr.mxu0 0.0
    %405 = vmatpush1.msra.mxu0 0.0
    %406 = vmatprep.subr.mxu0 0.0
    %407 = vmatpush1.msra.mxu0 0.0
    %408 = vmatprep.subr.mxu0 0.0
    %409 = vmatpush1.msra.mxu0 0.0
    %410 = vmatprep.subr.mxu0 0.0
    %411 = vmatpush1.msra.mxu0 0.0
    %412 = vmatprep.subr.mxu0 0.0
    %413 = vmatpush1.msra.mxu0 0.0
    %414 = vmatprep.subr.mxu0 0.0
    %415 = vmatpush1.msra.mxu0 0.0
    %416 = vmatprep.subr.mxu0 0.0
    %417 = vmatpush1.msra.mxu0 0.0
    %418 = vmatprep.subr.mxu0 0.0
    %419 = vmatpush1.msra.mxu0 0.0
    %420 = vmatprep.subr.mxu0 0.0
    %421 = vmatpush1.msra.mxu0 0.0
    %422 = vmatprep.subr.mxu0 0.0
    %423 = vmatpush1.msra.mxu0 0.0
    %424 = vmatprep.subr.mxu0 0.0
    %425 = vmatpush1.msra.mxu0 0.0
    %426 = vmatprep.subr.mxu0 0.0
    %427 = vmatpush1.msra.mxu0 0.0
    %428 = vmatprep.subr.mxu0 0.0
    %429 = vmatpush1.msra.mxu0 0.0
    %430 = vmatprep.subr.mxu0 0.0
    %431 = vmatpush1.msra.mxu0 0.0
    %432 = vmatprep.subr.mxu0 0.0
    %433 = vmatpush1.msra.mxu0 0.0
    %434 = vmatprep.subr.mxu0 0.0
    %435 = vmatpush1.msra.mxu0 0.0
    %436 = vmatprep.subr.mxu0 0.0
    %437 = vmatpush1.msra.mxu0 0.0
    %438 = vmatprep.subr.mxu0 0.0
    %439 = vmatpush1.msra.mxu0 0.0
    %440 = vmatprep.subr.mxu0 0.0
    %441 = vmatpush1.msra.mxu0 0.0
    %442 = vmatprep.subr.mxu0 0.0
    %443 = vmatpush1.msra.mxu0 0.0
    %444 = vmatprep.subr.mxu0 0.0
    %445 = vmatpush1.msra.mxu0 0.0
    %446 = vmatprep.subr.mxu0 0.0
    %447 = vmatpush1.msra.mxu0 0.0
    %448 = vmatprep.subr.mxu0 0.0
    %449 = vmatpush1.msra.mxu0 0.0
    %450 = vmatprep.subr.mxu0 0.0
    %451 = vmatpush1.msra.mxu0 0.0
    %452 = vmatprep.subr.mxu0 0.0
    %453 = vmatpush1.msra.mxu0 0.0
    %454 = vmatprep.subr.mxu0 0.0
    %455 = vmatpush1.msra.mxu0 0.0
    %456 = vmatprep.subr.mxu0 0.0
    %457 = vmatpush1.msra.mxu0 0.0
    %458 = vmatprep.subr.mxu0 0.0
    %459 = vmatpush1.msra.mxu0 0.0
    %460 = vmatprep.subr.mxu0 0.0
    %461 = vmatpush1.msra.mxu0 0.0
    %462 = vmatprep.mubr.f32.mxu0 0.0
    %463 = vmatmul.mubr.f32.gmra.mrb[0].mxu0 %v393
    %v464 = vpop.f32.mrb[0].mxu0
    %v465 = vadd.f32 0.0, %v464
    %v466 = vpop.f32.mrb[0].mxu0
    %467 = vmatprep.mubr.f32.mxu0 0.0
    %468 = vmatmul.mubr.f32.gmra.mrb[0].mxu0 %v396
    %v469 = vpop.f32.mrb[0].mxu0
    %v470 = vadd.f32 0.0, %v469
    %v471 = vpop.f32.mrb[0].mxu0
    %472 = vdwg.mxu0
    %v473 = vld [vmem:[#allocation13] sm:$0x1]
    %v474 = vlaneseq
    %v475 = vshrl.u32 %v474, 7
    %v476 = vsub.s32 0, %v475
    %v477 = vrot.slane %v473, %v476
    %v478 = vmul.f32 %v465, %v477
    %v479 = vmul.f32 %v470, %v477
    %v480 = vadd.f32 %v478, 0.0
    %v481 = vadd.f32 %v479, 0.0
    %s482 = scalar_lea.vmem [#allocation11], 16
    %v483 = vld [vmem:[%s482] sm:$0xff]
    %v484 = vld [vmem:[%s482 + $0x8] sm:$0xff]
    %v486 = vsel %vm391, %v483, 0
    %v489 = vsel %vm391, %v484, 0
    %491 = vmatprep.subr.mxu0 0.0
    %492 = vmatpush1.msra.mxu0 %v295
    %493 = vmatprep.subr.mxu0 0.0
    %494 = vmatpush1.msra.mxu0 %v300
    %495 = vmatprep.subr.mxu0 0.0
    %496 = vmatpush1.msra.mxu0 0.0
    %497 = vmatprep.subr.mxu0 0.0
    %498 = vmatpush1.msra.mxu0 0.0
    %499 = vmatprep.subr.mxu0 0.0
    %500 = vmatpush1.msra.mxu0 0.0
    %501 = vmatprep.subr.mxu0 0.0
    %502 = vmatpush1.msra.mxu0 0.0
    %503 = vmatprep.subr.mxu0 0.0
    %504 = vmatpush1.msra.mxu0 0.0
    %505 = vmatprep.subr.mxu0 0.0
    %506 = vmatpush1.msra.mxu0 0.0
    %507 = vmatprep.subr.mxu0 0.0
    %508 = vmatpush1.msra.mxu0 0.0
    %509 = vmatprep.subr.mxu0 0.0
    %510 = vmatpush1.msra.mxu0 0.0
    %511 = vmatprep.subr.mxu0 0.0
    %512 = vmatpush1.msra.mxu0 0.0
    %513 = vmatprep.subr.mxu0 0.0
    %514 = vmatpush1.msra.mxu0 0.0
    %515 = vmatprep.subr.mxu0 0.0
    %516 = vmatpush1.msra.mxu0 0.0
    %517 = vmatprep.subr.mxu0 0.0
    %518 = vmatpush1.msra.mxu0 0.0
    %519 = vmatprep.subr.mxu0 0.0
    %520 = vmatpush1.msra.mxu0 0.0
    %521 = vmatprep.subr.mxu0 0.0
    %522 = vmatpush1.msra.mxu0 0.0
    %523 = vmatprep.subr.mxu0 0.0
    %524 = vmatpush1.msra.mxu0 0.0
    %525 = vmatprep.subr.mxu0 0.0
    %526 = vmatpush1.msra.mxu0 0.0
    %527 = vmatprep.subr.mxu0 0.0
    %528 = vmatpush1.msra.mxu0 0.0
    %529 = vmatprep.subr.mxu0 0.0
    %530 = vmatpush1.msra.mxu0 0.0
    %531 = vmatprep.subr.mxu0 0.0
    %532 = vmatpush1.msra.mxu0 0.0
    %533 = vmatprep.subr.mxu0 0.0
    %534 = vmatpush1.msra.mxu0 0.0
    %535 = vmatprep.subr.mxu0 0.0
    %536 = vmatpush1.msra.mxu0 0.0
    %537 = vmatprep.subr.mxu0 0.0
    %538 = vmatpush1.msra.mxu0 0.0
    %539 = vmatprep.subr.mxu0 0.0
    %540 = vmatpush1.msra.mxu0 0.0
    %541 = vmatprep.subr.mxu0 0.0
    %542 = vmatpush1.msra.mxu0 0.0
    %543 = vmatprep.subr.mxu0 0.0
    %544 = vmatpush1.msra.mxu0 0.0
    %545 = vmatprep.subr.mxu0 0.0
    %546 = vmatpush1.msra.mxu0 0.0
    %547 = vmatprep.subr.mxu0 0.0
    %548 = vmatpush1.msra.mxu0 0.0
    %549 = vmatprep.subr.mxu0 0.0
    %550 = vmatpush1.msra.mxu0 0.0
    %551 = vmatprep.subr.mxu0 0.0
    %552 = vmatpush1.msra.mxu0 0.0
    %553 = vmatprep.subr.mxu0 0.0
    %554 = vmatpush1.msra.mxu0 0.0
    %555 = vmatprep.mubr.f32.mxu0 0.0
    %556 = vmatmul.mubr.f32.gmra.mrb[0].mxu0 %v486
    %v557 = vpop.f32.mrb[0].mxu0
    %v558 = vadd.f32 0.0, %v557
    %v559 = vpop.f32.mrb[0].mxu0
    %560 = vmatprep.mubr.f32.mxu0 0.0
    %561 = vmatmul.mubr.f32.gmra.mrb[0].mxu0 %v489
    %v562 = vpop.f32.mrb[0].mxu0
    %v563 = vadd.f32 0.0, %v562
    %v564 = vpop.f32.mrb[0].mxu0
    %565 = vdwg.mxu0
    %v566 = vld [vmem:[#allocation13 + $0x1] sm:$0x1]
    %v567 = vlaneseq
    %v568 = vshrl.u32 %v567, 7
    %v569 = vsub.s32 0, %v568
    %v570 = vrot.slane %v566, %v569
    %v571 = vmul.f32 %v558, %v570
    %v572 = vmul.f32 %v563, %v570
    %v573 = vadd.f32 %v480, %v571
    %v574 = vadd.f32 %v481, %v572
    %s575 = scalar_lea.vmem [#allocation11], 32
    %v576 = vld [vmem:[%s575] sm:$0xff]
    %v577 = vld [vmem:[%s575 + $0x8] sm:$0xff]
    %v579 = vsel %vm391, %v576, 0
    %v582 = vsel %vm391, %v577, 0
    %584 = vmatprep.subr.mxu0 0.0
    %585 = vmatpush1.msra.mxu0 %v295
    %586 = vmatprep.subr.mxu0 0.0
    %587 = vmatpush1.msra.mxu0 %v300
    %588 = vmatprep.subr.mxu0 0.0
    %589 = vmatpush1.msra.mxu0 0.0
    %590 = vmatprep.subr.mxu0 0.0
    %591 = vmatpush1.msra.mxu0 0.0
    %592 = vmatprep.subr.mxu0 0.0
    %593 = vmatpush1.msra.mxu0 0.0
    %594 = vmatprep.subr.mxu0 0.0
    %595 = vmatpush1.msra.mxu0 0.0
    %596 = vmatprep.subr.mxu0 0.0
    %597 = vmatpush1.msra.mxu0 0.0
    %598 = vmatprep.subr.mxu0 0.0
    %599 = vmatpush1.msra.mxu0 0.0
    %600 = vmatprep.subr.mxu0 0.0
    %601 = vmatpush1.msra.mxu0 0.0
    %602 = vmatprep.subr.mxu0 0.0
    %603 = vmatpush1.msra.mxu0 0.0
    %604 = vmatprep.subr.mxu0 0.0
    %605 = vmatpush1.msra.mxu0 0.0
    %606 = vmatprep.subr.mxu0 0.0
    %607 = vmatpush1.msra.mxu0 0.0
    %608 = vmatprep.subr.mxu0 0.0
    %609 = vmatpush1.msra.mxu0 0.0
    %610 = vmatprep.subr.mxu0 0.0
    %611 = vmatpush1.msra.mxu0 0.0
    %612 = vmatprep.subr.mxu0 0.0
    %613 = vmatpush1.msra.mxu0 0.0
    %614 = vmatprep.subr.mxu0 0.0
    %615 = vmatpush1.msra.mxu0 0.0
    %616 = vmatprep.subr.mxu0 0.0
    %617 = vmatpush1.msra.mxu0 0.0
    %618 = vmatprep.subr.mxu0 0.0
    %619 = vmatpush1.msra.mxu0 0.0
    %620 = vmatprep.subr.mxu0 0.0
    %621 = vmatpush1.msra.mxu0 0.0
    %622 = vmatprep.subr.mxu0 0.0
    %623 = vmatpush1.msra.mxu0 0.0
    %624 = vmatprep.subr.mxu0 0.0
    %625 = vmatpush1.msra.mxu0 0.0
    %626 = vmatprep.subr.mxu0 0.0
    %627 = vmatpush1.msra.mxu0 0.0
    %628 = vmatprep.subr.mxu0 0.0
    %629 = vmatpush1.msra.mxu0 0.0
    %630 = vmatprep.subr.mxu0 0.0
    %631 = vmatpush1.msra.mxu0 0.0
    %632 = vmatprep.subr.mxu0 0.0
    %633 = vmatpush1.msra.mxu0 0.0
    %634 = vmatprep.subr.mxu0 0.0
    %635 = vmatpush1.msra.mxu0 0.0
    %636 = vmatprep.subr.mxu0 0.0
    %637 = vmatpush1.msra.mxu0 0.0
    %638 = vmatprep.subr.mxu0 0.0
    %639 = vmatpush1.msra.mxu0 0.0
    %640 = vmatprep.subr.mxu0 0.0
    %641 = vmatpush1.msra.mxu0 0.0
    %642 = vmatprep.subr.mxu0 0.0
    %643 = vmatpush1.msra.mxu0 0.0
    %644 = vmatprep.subr.mxu0 0.0
    %645 = vmatpush1.msra.mxu0 0.0
    %646 = vmatprep.subr.mxu0 0.0
    %647 = vmatpush1.msra.mxu0 0.0
    %648 = vmatprep.mubr.f32.mxu0 0.0
    %649 = vmatmul.mubr.f32.gmra.mrb[0].mxu0 %v579
    %v650 = vpop.f32.mrb[0].mxu0
    %v651 = vadd.f32 0.0, %v650
    %v652 = vpop.f32.mrb[0].mxu0
    %653 = vmatprep.mubr.f32.mxu0 0.0
    %654 = vmatmul.mubr.f32.gmra.mrb[0].mxu0 %v582
    %v655 = vpop.f32.mrb[0].mxu0
    %v656 = vadd.f32 0.0, %v655
    %v657 = vpop.f32.mrb[0].mxu0
    %658 = vdwg.mxu0
    %v659 = vld [vmem:[#allocation13 + $0x2] sm:$0x1]
    %v660 = vlaneseq
    %v661 = vshrl.u32 %v660, 7
    %v662 = vsub.s32 0, %v661
    %v663 = vrot.slane %v659, %v662
    %v664 = vmul.f32 %v651, %v663
    %v665 = vmul.f32 %v656, %v663
    %v666 = vadd.f32 %v573, %v664
    %v667 = vadd.f32 %v574, %v665
    %s668 = scalar_lea.vmem [#allocation11], 48
    %v669 = vld [vmem:[%s668] sm:$0xff]
    %v670 = vld [vmem:[%s668 + $0x8] sm:$0xff]
    %v672 = vsel %vm391, %v669, 0
    %v675 = vsel %vm391, %v670, 0
    %677 = vmatprep.subr.mxu0 0.0
    %678 = vmatpush1.msra.mxu0 %v295
    %679 = vmatprep.subr.mxu0 0.0
    %680 = vmatpush1.msra.mxu0 %v300
    %681 = vmatprep.subr.mxu0 0.0
    %682 = vmatpush1.msra.mxu0 0.0
    %683 = vmatprep.subr.mxu0 0.0
    %684 = vmatpush1.msra.mxu0 0.0
    %685 = vmatprep.subr.mxu0 0.0
    %686 = vmatpush1.msra.mxu0 0.0
    %687 = vmatprep.subr.mxu0 0.0
    %688 = vmatpush1.msra.mxu0 0.0
    %689 = vmatprep.subr.mxu0 0.0
    %690 = vmatpush1.msra.mxu0 0.0
    %691 = vmatprep.subr.mxu0 0.0
    %692 = vmatpush1.msra.mxu0 0.0
    %693 = vmatprep.subr.mxu0 0.0
    %694 = vmatpush1.msra.mxu0 0.0
    %695 = vmatprep.subr.mxu0 0.0
    %696 = vmatpush1.msra.mxu0 0.0
    %697 = vmatprep.subr.mxu0 0.0
    %698 = vmatpush1.msra.mxu0 0.0
    %699 = vmatprep.subr.mxu0 0.0
    %700 = vmatpush1.msra.mxu0 0.0
    %701 = vmatprep.subr.mxu0 0.0
    %702 = vmatpush1.msra.mxu0 0.0
    %703 = vmatprep.subr.mxu0 0.0
    %704 = vmatpush1.msra.mxu0 0.0
    %705 = vmatprep.subr.mxu0 0.0
    %706 = vmatpush1.msra.mxu0 0.0
    %707 = vmatprep.subr.mxu0 0.0
    %708 = vmatpush1.msra.mxu0 0.0
    %709 = vmatprep.subr.mxu0 0.0
    %710 = vmatpush1.msra.mxu0 0.0
    %711 = vmatprep.subr.mxu0 0.0
    %712 = vmatpush1.msra.mxu0 0.0
    %713 = vmatprep.subr.mxu0 0.0
    %714 = vmatpush1.msra.mxu0 0.0
    %715 = vmatprep.subr.mxu0 0.0
    %716 = vmatpush1.msra.mxu0 0.0
    %717 = vmatprep.subr.mxu0 0.0
    %718 = vmatpush1.msra.mxu0 0.0
    %719 = vmatprep.subr.mxu0 0.0
    %720 = vmatpush1.msra.mxu0 0.0
    %721 = vmatprep.subr.mxu0 0.0
    %722 = vmatpush1.msra.mxu0 0.0
    %723 = vmatprep.subr.mxu0 0.0
    %724 = vmatpush1.msra.mxu0 0.0
    %725 = vmatprep.subr.mxu0 0.0
    %726 = vmatpush1.msra.mxu0 0.0
    %727 = vmatprep.subr.mxu0 0.0
    %728 = vmatpush1.msra.mxu0 0.0
    %729 = vmatprep.subr.mxu0 0.0
    %730 = vmatpush1.msra.mxu0 0.0
    %731 = vmatprep.subr.mxu0 0.0
    %732 = vmatpush1.msra.mxu0 0.0
    %733 = vmatprep.subr.mxu0 0.0
    %734 = vmatpush1.msra.mxu0 0.0
    %735 = vmatprep.subr.mxu0 0.0
    %736 = vmatpush1.msra.mxu0 0.0
    %737 = vmatprep.subr.mxu0 0.0
    %738 = vmatpush1.msra.mxu0 0.0
    %739 = vmatprep.subr.mxu0 0.0
    %740 = vmatpush1.msra.mxu0 0.0
    %741 = vmatprep.mubr.f32.mxu0 0.0
    %742 = vmatmul.mubr.f32.gmra.mrb[0].mxu0 %v672
    %v743 = vpop.f32.mrb[0].mxu0
    %v744 = vadd.f32 0.0, %v743
    %v745 = vpop.f32.mrb[0].mxu0
    %746 = vmatprep.mubr.f32.mxu0 0.0
    %747 = vmatmul.mubr.f32.gmra.mrb[0].mxu0 %v675
    %v748 = vpop.f32.mrb[0].mxu0
    %v749 = vadd.f32 0.0, %v748
    %v750 = vpop.f32.mrb[0].mxu0
    %751 = vdwg.mxu0
    %v752 = vld [vmem:[#allocation13 + $0x3] sm:$0x1]
    %v753 = vlaneseq
    %v754 = vshrl.u32 %v753, 7
    %v755 = vsub.s32 0, %v754
    %v756 = vrot.slane %v752, %v755
    %v757 = vmul.f32 %v744, %v756
    %v758 = vmul.f32 %v749, %v756
    %v759 = vadd.f32 %v666, %v757
    %v760 = vadd.f32 %v667, %v758
    %s761 = scalar_lea.vmem [#allocation11], 64
    %v762 = vld [vmem:[%s761] sm:$0xff]
    %v763 = vld [vmem:[%s761 + $0x8] sm:$0xff]
    %v765 = vsel %vm391, %v762, 0
    %v768 = vsel %vm391, %v763, 0
    %770 = vmatprep.subr.mxu0 0.0
    %771 = vmatpush1.msra.mxu0 %v295
    %772 = vmatprep.subr.mxu0 0.0
    %773 = vmatpush1.msra.mxu0 %v300
    %774 = vmatprep.subr.mxu0 0.0
    %775 = vmatpush1.msra.mxu0 0.0
    %776 = vmatprep.subr.mxu0 0.0
    %777 = vmatpush1.msra.mxu0 0.0
    %778 = vmatprep.subr.mxu0 0.0
    %779 = vmatpush1.msra.mxu0 0.0
    %780 = vmatprep.subr.mxu0 0.0
    %781 = vmatpush1.msra.mxu0 0.0
    %782 = vmatprep.subr.mxu0 0.0
    %783 = vmatpush1.msra.mxu0 0.0
    %784 = vmatprep.subr.mxu0 0.0
    %785 = vmatpush1.msra.mxu0 0.0
    %786 = vmatprep.subr.mxu0 0.0
    %787 = vmatpush1.msra.mxu0 0.0
    %788 = vmatprep.subr.mxu0 0.0
    %789 = vmatpush1.msra.mxu0 0.0
    %790 = vmatprep.subr.mxu0 0.0
    %791 = vmatpush1.msra.mxu0 0.0
    %792 = vmatprep.subr.mxu0 0.0
    %793 = vmatpush1.msra.mxu0 0.0
    %794 = vmatprep.subr.mxu0 0.0
    %795 = vmatpush1.msra.mxu0 0.0
    %796 = vmatprep.subr.mxu0 0.0
    %797 = vmatpush1.msra.mxu0 0.0
    %798 = vmatprep.subr.mxu0 0.0
    %799 = vmatpush1.msra.mxu0 0.0
    %800 = vmatprep.subr.mxu0 0.0
    %801 = vmatpush1.msra.mxu0 0.0
    %802 = vmatprep.subr.mxu0 0.0
    %803 = vmatpush1.msra.mxu0 0.0
    %804 = vmatprep.subr.mxu0 0.0
    %805 = vmatpush1.msra.mxu0 0.0
    %806 = vmatprep.subr.mxu0 0.0
    %807 = vmatpush1.msra.mxu0 0.0
    %808 = vmatprep.subr.mxu0 0.0
    %809 = vmatpush1.msra.mxu0 0.0
    %810 = vmatprep.subr.mxu0 0.0
    %811 = vmatpush1.msra.mxu0 0.0
    %812 = vmatprep.subr.mxu0 0.0
    %813 = vmatpush1.msra.mxu0 0.0
    %814 = vmatprep.subr.mxu0 0.0
    %815 = vmatpush1.msra.mxu0 0.0
    %816 = vmatprep.subr.mxu0 0.0
    %817 = vmatpush1.msra.mxu0 0.0
    %818 = vmatprep.subr.mxu0 0.0
    %819 = vmatpush1.msra.mxu0 0.0
    %820 = vmatprep.subr.mxu0 0.0
    %821 = vmatpush1.msra.mxu0 0.0
    %822 = vmatprep.subr.mxu0 0.0
    %823 = vmatpush1.msra.mxu0 0.0
    %824 = vmatprep.subr.mxu0 0.0
    %825 = vmatpush1.msra.mxu0 0.0
    %826 = vmatprep.subr.mxu0 0.0
    %827 = vmatpush1.msra.mxu0 0.0
    %828 = vmatprep.subr.mxu0 0.0
    %829 = vmatpush1.msra.mxu0 0.0
    %830 = vmatprep.subr.mxu0 0.0
    %831 = vmatpush1.msra.mxu0 0.0
    %832 = vmatprep.subr.mxu0 0.0
    %833 = vmatpush1.msra.mxu0 0.0
    %834 = vmatprep.mubr.f32.mxu0 0.0
    %835 = vmatmul.mubr.f32.gmra.mrb[0].mxu0 %v765
    %v836 = vpop.f32.mrb[0].mxu0
    %v837 = vadd.f32 0.0, %v836
    %v838 = vpop.f32.mrb[0].mxu0
    %839 = vmatprep.mubr.f32.mxu0 0.0
    %840 = vmatmul.mubr.f32.gmra.mrb[0].mxu0 %v768
    %v841 = vpop.f32.mrb[0].mxu0
    %v842 = vadd.f32 0.0, %v841
    %v843 = vpop.f32.mrb[0].mxu0
    %844 = vdwg.mxu0
    %v845 = vld [vmem:[#allocation13 + $0x4] sm:$0x1]
    %v846 = vlaneseq
    %v847 = vshrl.u32 %v846, 7
    %v848 = vsub.s32 0, %v847
    %v849 = vrot.slane %v845, %v848
    %v850 = vmul.f32 %v837, %v849
    %v851 = vmul.f32 %v842, %v849
    %v852 = vadd.f32 %v759, %v850
    %v853 = vadd.f32 %v760, %v851
    %v854 = vld [vmem:[#allocation14] sm:$0x1]
    %v856 = vlaneseq
    %v857 = vshrl.u32 %v856, 7
    %v858 = vsub.s32 0, %v857
    %v859 = vrot.slane %v854, %v858
    %v861 = vadd.f32 %v852, %v859
    %v862 = vadd.f32 %v853, %v859
    %v863 = vxor.u32 %v861, 2147483648
    %v864 = vxor.u32 %v862, 2147483648
    %v865 = vmul.f32 %v863, 1.442695
    %v866 = vpow.pop %v865
    %v867 = vmul.f32 %v864, 1.442695
    %v868 = vpow.pop %v867
    %v869 = vadd.f32 %v866, 1.0
    %v870 = vadd.f32 %v868, 1.0
    %v871 = vrcp.pop %v869
    %v872 = vmul.f32 1.0, %v871
    %v873 = vrcp.pop %v870
    %v874 = vmul.f32 1.0, %v873
    %v875 = vmul.f32 %v861, %v872
    %v876 = vmul.f32 %v862, %v874
    %v877 = vld [vmem:[%s8] sm:$0xff]
    %v878 = vld [vmem:[%s8 + $0x8] sm:$0xff]
    %v879 = vld [vmem:[%s8 + $0x10] sm:$0xff]
    %v880 = vld [vmem:[%s8 + $0x18] sm:$0xff]
    %v881 = vld [vmem:[%s8 + $0x20] sm:$0xff]
    %v882 = vld [vmem:[%s8 + $0x28] sm:$0xff]
    %v883 = vld [vmem:[%s8 + $0x30] sm:$0xff]
    %v884 = vld [vmem:[%s8 + $0x38] sm:$0xff]
    %v885 = vld [vmem:[%s8 + $0x40] sm:$0xff]
    %v886 = vld [vmem:[%s8 + $0x48] sm:$0xff]
    %v887 = vld [vmem:[%s8 + $0x50] sm:$0xff]
    %v888 = vld [vmem:[%s8 + $0x58] sm:$0xff]
    %v889 = vld [vmem:[%s8 + $0x60] sm:$0xff]
    %v890 = vld [vmem:[%s8 + $0x68] sm:$0xff]
    %v891 = vld [vmem:[%s8 + $0x70] sm:$0xff]
    %v892 = vld [vmem:[%s8 + $0x78] sm:$0xff]
    %v893 = vld [vmem:[%s8 + $0x80] sm:$0xff]
    %v894 = vld [vmem:[%s8 + $0x88] sm:$0xff]
    %v895 = vld [vmem:[%s8 + $0x90] sm:$0xff]
    %v896 = vld [vmem:[%s8 + $0x98] sm:$0xff]
    %v897 = vld [vmem:[%s8 + $0xa0] sm:$0xff]
    %v898 = vld [vmem:[%s8 + $0xa8] sm:$0xff]
    %v899 = vld [vmem:[%s8 + $0xb0] sm:$0xff]
    %v900 = vld [vmem:[%s8 + $0xb8] sm:$0xff]
    %v901 = vld [vmem:[%s8 + $0xc0] sm:$0xff]
    %v902 = vld [vmem:[%s8 + $0xc8] sm:$0xff]
    %v903 = vld [vmem:[%s8 + $0xd0] sm:$0xff]
    %v904 = vld [vmem:[%s8 + $0xd8] sm:$0xff]
    %v905 = vld [vmem:[%s8 + $0xe0] sm:$0xff]
    %v906 = vld [vmem:[%s8 + $0xe8] sm:$0xff]
    %v907 = vld [vmem:[%s8 + $0xf0] sm:$0xff]
    %v908 = vld [vmem:[%s8 + $0xf8] sm:$0xff]
    %v909 = vld [vmem:[%s8 + $0x100] sm:$0xff]
    %v910 = vld [vmem:[%s8 + $0x108] sm:$0xff]
    %v911 = vld [vmem:[%s8 + $0x110] sm:$0xff]
    %v912 = vld [vmem:[%s8 + $0x118] sm:$0xff]
    %v913 = vld [vmem:[%s8 + $0x120] sm:$0xff]
    %v914 = vld [vmem:[%s8 + $0x128] sm:$0xff]
    %v915 = vld [vmem:[%s8 + $0x130] sm:$0xff]
    %v916 = vld [vmem:[%s8 + $0x138] sm:$0xff]
    %v917 = vld [vmem:[%s8 + $0x140] sm:$0xff]
    %v918 = vld [vmem:[%s8 + $0x148] sm:$0xff]
    %v919 = vld [vmem:[%s8 + $0x150] sm:$0xff]
    %v920 = vld [vmem:[%s8 + $0x158] sm:$0xff]
    %v921 = vld [vmem:[%s8 + $0x160] sm:$0xff]
    %v922 = vld [vmem:[%s8 + $0x168] sm:$0xff]
    %v923 = vld [vmem:[%s8 + $0x170] sm:$0xff]
    %v924 = vld [vmem:[%s8 + $0x178] sm:$0xff]
    %v925 = vld [vmem:[%s8 + $0x180] sm:$0xff]
    %v926 = vld [vmem:[%s8 + $0x188] sm:$0xff]
    %v927 = vld [vmem:[%s8 + $0x190] sm:$0xff]
    %v928 = vld [vmem:[%s8 + $0x198] sm:$0xff]
    %v929 = vld [vmem:[%s8 + $0x1a0] sm:$0xff]
    %v930 = vld [vmem:[%s8 + $0x1a8] sm:$0xff]
    %v931 = vld [vmem:[%s8 + $0x1b0] sm:$0xff]
    %v932 = vld [vmem:[%s8 + $0x1b8] sm:$0xff]
    %v933 = vld [vmem:[%s8 + $0x1c0] sm:$0xff]
    %v934 = vld [vmem:[%s8 + $0x1c8] sm:$0xff]
    %v935 = vld [vmem:[%s8 + $0x1d0] sm:$0xff]
    %v936 = vld [vmem:[%s8 + $0x1d8] sm:$0xff]
    %v937 = vld [vmem:[%s8 + $0x1e0] sm:$0xff]
    %v938 = vld [vmem:[%s8 + $0x1e8] sm:$0xff]
    %v939 = vld [vmem:[%s8 + $0x1f0] sm:$0xff]
    %v940 = vld [vmem:[%s8 + $0x1f8] sm:$0xff]
    %v941 = vld [vmem:[#allocation16] sm:$0xff]
    %v943 = vlaneseq
    %v944 = vshrl.u32 %v943, 7
    %v945 = vsub.s32 0, %v944
    %v946 = vrot.slane %v941, %v945
    %v947 = vlaneseq
    %v948 = vshrl.u32 %v947, 7
    %v949 = vsub.s32 1, %v948
    %v950 = vrot.slane %v941, %v949
    %v951 = vlaneseq
    %v952 = vshrl.u32 %v951, 7
    %v953 = vsub.s32 2, %v952
    %v954 = vrot.slane %v941, %v953
    %v955 = vlaneseq
    %v956 = vshrl.u32 %v955, 7
    %v957 = vsub.s32 3, %v956
    %v958 = vrot.slane %v941, %v957
    %v959 = vlaneseq
    %v960 = vshrl.u32 %v959, 7
    %v961 = vsub.s32 4, %v960
    %v962 = vrot.slane %v941, %v961
    %v963 = vlaneseq
    %v964 = vshrl.u32 %v963, 7
    %v965 = vsub.s32 5, %v964
    %v966 = vrot.slane %v941, %v965
    %v967 = vlaneseq
    %v968 = vshrl.u32 %v967, 7
    %v969 = vsub.s32 6, %v968
    %v970 = vrot.slane %v941, %v969
    %v971 = vlaneseq
    %v972 = vshrl.u32 %v971, 7
    %v973 = vsub.s32 7, %v972
    %v974 = vrot.slane %v941, %v973
    %vm983 = vcmask 523264
    %v985 = vsel %vm983, %v875, 0
    %v988 = vsel %vm983, %v876, 0
    %990 = vmatprep.subr.mxu0 %v878
    %991 = vmatpush1.msra.mxu0 %v877
    %992 = vmatprep.subr.mxu0 %v886
    %993 = vmatpush1.msra.mxu0 %v885
    %994 = vmatprep.subr.mxu0 %v894
    %995 = vmatpush1.msra.mxu0 %v893
    %996 = vmatprep.subr.mxu0 %v902
    %997 = vmatpush1.msra.mxu0 %v901
    %998 = vmatprep.subr.mxu0 %v910
    %999 = vmatpush1.msra.mxu0 %v909
    %1000 = vmatprep.subr.mxu0 %v918
    %1001 = vmatpush1.msra.mxu0 %v917
    %1002 = vmatprep.subr.mxu0 %v926
    %1003 = vmatpush1.msra.mxu0 %v925
    %1004 = vmatprep.subr.mxu0 %v934
    %1005 = vmatpush1.msra.mxu0 %v933
    %1006 = vmatprep.subr.mxu0 0.0
    %1007 = vmatpush1.msra.mxu0 0.0
    %1008 = vmatprep.subr.mxu0 0.0
    %1009 = vmatpush1.msra.mxu0 0.0
    %1010 = vmatprep.subr.mxu0 0.0
    %1011 = vmatpush1.msra.mxu0 0.0
    %1012 = vmatprep.subr.mxu0 0.0
    %1013 = vmatpush1.msra.mxu0 0.0
    %1014 = vmatprep.subr.mxu0 0.0
    %1015 = vmatpush1.msra.mxu0 0.0
    %1016 = vmatprep.subr.mxu0 0.0
    %1017 = vmatpush1.msra.mxu0 0.0
    %1018 = vmatprep.subr.mxu0 0.0
    %1019 = vmatpush1.msra.mxu0 0.0
    %1020 = vmatprep.subr.mxu0 0.0
    %1021 = vmatpush1.msra.mxu0 0.0
    %1022 = vmatprep.subr.mxu0 0.0
    %1023 = vmatpush1.msra.mxu0 0.0
    %1024 = vmatprep.subr.mxu0 0.0
    %1025 = vmatpush1.msra.mxu0 0.0
    %1026 = vmatprep.subr.mxu0 0.0
    %1027 = vmatpush1.msra.mxu0 0.0
    %1028 = vmatprep.subr.mxu0 0.0
    %1029 = vmatpush1.msra.mxu0 0.0
    %1030 = vmatprep.subr.mxu0 0.0
    %1031 = vmatpush1.msra.mxu0 0.0
    %1032 = vmatprep.subr.mxu0 0.0
    %1033 = vmatpush1.msra.mxu0 0.0
    %1034 = vmatprep.subr.mxu0 0.0
    %1035 = vmatpush1.msra.mxu0 0.0
    %1036 = vmatprep.subr.mxu0 0.0
    %1037 = vmatpush1.msra.mxu0 0.0
    %1038 = vmatprep.subr.mxu0 0.0
    %1039 = vmatpush1.msra.mxu0 0.0
    %1040 = vmatprep.subr.mxu0 0.0
    %1041 = vmatpush1.msra.mxu0 0.0
    %1042 = vmatprep.subr.mxu0 0.0
    %1043 = vmatpush1.msra.mxu0 0.0
    %1044 = vmatprep.subr.mxu0 0.0
    %1045 = vmatpush1.msra.mxu0 0.0
    %1046 = vmatprep.subr.mxu0 0.0
    %1047 = vmatpush1.msra.mxu0 0.0
    %1048 = vmatprep.subr.mxu0 0.0
    %1049 = vmatpush1.msra.mxu0 0.0
    %1050 = vmatprep.subr.mxu0 0.0
    %1051 = vmatpush1.msra.mxu0 0.0
    %1052 = vmatprep.subr.mxu0 0.0
    %1053 = vmatpush1.msra.mxu0 0.0
    %1054 = vmatprep.mubr.f32.mxu0 0.0
    %1055 = vmatmul.mubr.f32.gmra.mrb[0].mxu0 %v985
    %v1056 = vpop.f32.mrb[0].mxu0
    %v1057 = vadd.f32 %v946, %v1056
    %v1058 = vpop.f32.mrb[0].mxu0
    %v1059 = vadd.f32 %v950, %v1058
    %1060 = vmatprep.mubr.f32.mxu0 0.0
    %1061 = vmatmul.mubr.f32.gmra.mrb[0].mxu0 %v988
    %v1062 = vpop.f32.mrb[0].mxu0
    %v1063 = vadd.f32 %v946, %v1062
    %v1064 = vpop.f32.mrb[0].mxu0
    %v1065 = vadd.f32 %v950, %v1064
    %1066 = vdwg.mxu0
    %1067 = vmatprep.subr.mxu0 %v880
    %1068 = vmatpush1.msra.mxu0 %v879
    %1069 = vmatprep.subr.mxu0 %v888
    %1070 = vmatpush1.msra.mxu0 %v887
    %1071 = vmatprep.subr.mxu0 %v896
    %1072 = vmatpush1.msra.mxu0 %v895
    %1073 = vmatprep.subr.mxu0 %v904
    %1074 = vmatpush1.msra.mxu0 %v903
    %1075 = vmatprep.subr.mxu0 %v912
    %1076 = vmatpush1.msra.mxu0 %v911
    %1077 = vmatprep.subr.mxu0 %v920
    %1078 = vmatpush1.msra.mxu0 %v919
    %1079 = vmatprep.subr.mxu0 %v928
    %1080 = vmatpush1.msra.mxu0 %v927
    %1081 = vmatprep.subr.mxu0 %v936
    %1082 = vmatpush1.msra.mxu0 %v935
    %1083 = vmatprep.subr.mxu0 0.0
    %1084 = vmatpush1.msra.mxu0 0.0
    %1085 = vmatprep.subr.mxu0 0.0
    %1086 = vmatpush1.msra.mxu0 0.0
    %1087 = vmatprep.subr.mxu0 0.0
    %1088 = vmatpush1.msra.mxu0 0.0
    %1089 = vmatprep.subr.mxu0 0.0
    %1090 = vmatpush1.msra.mxu0 0.0
    %1091 = vmatprep.subr.mxu0 0.0
    %1092 = vmatpush1.msra.mxu0 0.0
    %1093 = vmatprep.subr.mxu0 0.0
    %1094 = vmatpush1.msra.mxu0 0.0
    %1095 = vmatprep.subr.mxu0 0.0
    %1096 = vmatpush1.msra.mxu0 0.0
    %1097 = vmatprep.subr.mxu0 0.0
    %1098 = vmatpush1.msra.mxu0 0.0
    %1099 = vmatprep.subr.mxu0 0.0
    %1100 = vmatpush1.msra.mxu0 0.0
    %1101 = vmatprep.subr.mxu0 0.0
    %1102 = vmatpush1.msra.mxu0 0.0
    %1103 = vmatprep.subr.mxu0 0.0
    %1104 = vmatpush1.msra.mxu0 0.0
    %1105 = vmatprep.subr.mxu0 0.0
    %1106 = vmatpush1.msra.mxu0 0.0
    %1107 = vmatprep.subr.mxu0 0.0
    %1108 = vmatpush1.msra.mxu0 0.0
    %1109 = vmatprep.subr.mxu0 0.0
    %1110 = vmatpush1.msra.mxu0 0.0
    %1111 = vmatprep.subr.mxu0 0.0
    %1112 = vmatpush1.msra.mxu0 0.0
    %1113 = vmatprep.subr.mxu0 0.0
    %1114 = vmatpush1.msra.mxu0 0.0
    %1115 = vmatprep.subr.mxu0 0.0
    %1116 = vmatpush1.msra.mxu0 0.0
    %1117 = vmatprep.subr.mxu0 0.0
    %1118 = vmatpush1.msra.mxu0 0.0
    %1119 = vmatprep.subr.mxu0 0.0
    %1120 = vmatpush1.msra.mxu0 0.0
    %1121 = vmatprep.subr.mxu0 0.0
    %1122 = vmatpush1.msra.mxu0 0.0
    %1123 = vmatprep.subr.mxu0 0.0
    %1124 = vmatpush1.msra.mxu0 0.0
    %1125 = vmatprep.subr.mxu0 0.0
    %1126 = vmatpush1.msra.mxu0 0.0
    %1127 = vmatprep.subr.mxu0 0.0
    %1128 = vmatpush1.msra.mxu0 0.0
    %1129 = vmatprep.subr.mxu0 0.0
    %1130 = vmatpush1.msra.mxu0 0.0
    %1131 = vmatprep.mubr.f32.mxu0 0.0
    %1132 = vmatmul.mubr.f32.gmra.mrb[0].mxu0 %v985
    %v1133 = vpop.f32.mrb[0].mxu0
    %v1134 = vadd.f32 %v954, %v1133
    %v1135 = vpop.f32.mrb[0].mxu0
    %v1136 = vadd.f32 %v958, %v1135
    %1137 = vmatprep.mubr.f32.mxu0 0.0
    %1138 = vmatmul.mubr.f32.gmra.mrb[0].mxu0 %v988
    %v1139 = vpop.f32.mrb[0].mxu0
    %v1140 = vadd.f32 %v954, %v1139
    %v1141 = vpop.f32.mrb[0].mxu0
    %v1142 = vadd.f32 %v958, %v1141
    %1143 = vdwg.mxu0
    %1144 = vmatprep.subr.mxu0 %v882
    %1145 = vmatpush1.msra.mxu0 %v881
    %1146 = vmatprep.subr.mxu0 %v890
    %1147 = vmatpush1.msra.mxu0 %v889
    %1148 = vmatprep.subr.mxu0 %v898
    %1149 = vmatpush1.msra.mxu0 %v897
    %1150 = vmatprep.subr.mxu0 %v906
    %1151 = vmatpush1.msra.mxu0 %v905
    %1152 = vmatprep.subr.mxu0 %v914
    %1153 = vmatpush1.msra.mxu0 %v913
    %1154 = vmatprep.subr.mxu0 %v922
    %1155 = vmatpush1.msra.mxu0 %v921
    %1156 = vmatprep.subr.mxu0 %v930
    %1157 = vmatpush1.msra.mxu0 %v929
    %1158 = vmatprep.subr.mxu0 %v938
    %1159 = vmatpush1.msra.mxu0 %v937
    %1160 = vmatprep.subr.mxu0 0.0
    %1161 = vmatpush1.msra.mxu0 0.0
    %1162 = vmatprep.subr.mxu0 0.0
    %1163 = vmatpush1.msra.mxu0 0.0
    %1164 = vmatprep.subr.mxu0 0.0
    %1165 = vmatpush1.msra.mxu0 0.0
    %1166 = vmatprep.subr.mxu0 0.0
    %1167 = vmatpush1.msra.mxu0 0.0
    %1168 = vmatprep.subr.mxu0 0.0
    %1169 = vmatpush1.msra.mxu0 0.0
    %1170 = vmatprep.subr.mxu0 0.0
    %1171 = vmatpush1.msra.mxu0 0.0
    %1172 = vmatprep.subr.mxu0 0.0
    %1173 = vmatpush1.msra.mxu0 0.0
    %1174 = vmatprep.subr.mxu0 0.0
    %1175 = vmatpush1.msra.mxu0 0.0
    %1176 = vmatprep.subr.mxu0 0.0
    %1177 = vmatpush1.msra.mxu0 0.0
    %1178 = vmatprep.subr.mxu0 0.0
    %1179 = vmatpush1.msra.mxu0 0.0
    %1180 = vmatprep.subr.mxu0 0.0
    %1181 = vmatpush1.msra.mxu0 0.0
    %1182 = vmatprep.subr.mxu0 0.0
    %1183 = vmatpush1.msra.mxu0 0.0
    %1184 = vmatprep.subr.mxu0 0.0
    %1185 = vmatpush1.msra.mxu0 0.0
    %1186 = vmatprep.subr.mxu0 0.0
    %1187 = vmatpush1.msra.mxu0 0.0
    %1188 = vmatprep.subr.mxu0 0.0
    %1189 = vmatpush1.msra.mxu0 0.0
    %1190 = vmatprep.subr.mxu0 0.0
    %1191 = vmatpush1.msra.mxu0 0.0
    %1192 = vmatprep.subr.mxu0 0.0
    %1193 = vmatpush1.msra.mxu0 0.0
    %1194 = vmatprep.subr.mxu0 0.0
    %1195 = vmatpush1.msra.mxu0 0.0
    %1196 = vmatprep.subr.mxu0 0.0
    %1197 = vmatpush1.msra.mxu0 0.0
    %1198 = vmatprep.subr.mxu0 0.0
    %1199 = vmatpush1.msra.mxu0 0.0
    %1200 = vmatprep.subr.mxu0 0.0
    %1201 = vmatpush1.msra.mxu0 0.0
    %1202 = vmatprep.subr.mxu0 0.0
    %1203 = vmatpush1.msra.mxu0 0.0
    %1204 = vmatprep.subr.mxu0 0.0
    %1205 = vmatpush1.msra.mxu0 0.0
    %1206 = vmatprep.subr.mxu0 0.0
    %1207 = vmatpush1.msra.mxu0 0.0
    %1208 = vmatprep.mubr.f32.mxu0 0.0
    %1209 = vmatmul.mubr.f32.gmra.mrb[0].mxu0 %v985
    %v1210 = vpop.f32.mrb[0].mxu0
    %v1211 = vadd.f32 %v962, %v1210
    %v1212 = vpop.f32.mrb[0].mxu0
    %v1213 = vadd.f32 %v966, %v1212
    %1214 = vmatprep.mubr.f32.mxu0 0.0
    %1215 = vmatmul.mubr.f32.gmra.mrb[0].mxu0 %v988
    %v1216 = vpop.f32.mrb[0].mxu0
    %v1217 = vadd.f32 %v962, %v1216
    %v1218 = vpop.f32.mrb[0].mxu0
    %v1219 = vadd.f32 %v966, %v1218
    %1220 = vdwg.mxu0
    %1221 = vmatprep.subr.mxu0 %v884
    %1222 = vmatpush1.msra.mxu0 %v883
    %1223 = vmatprep.subr.mxu0 %v892
    %1224 = vmatpush1.msra.mxu0 %v891
    %1225 = vmatprep.subr.mxu0 %v900
    %1226 = vmatpush1.msra.mxu0 %v899
    %1227 = vmatprep.subr.mxu0 %v908
    %1228 = vmatpush1.msra.mxu0 %v907
    %1229 = vmatprep.subr.mxu0 %v916
    %1230 = vmatpush1.msra.mxu0 %v915
    %1231 = vmatprep.subr.mxu0 %v924
    %1232 = vmatpush1.msra.mxu0 %v923
    %1233 = vmatprep.subr.mxu0 %v932
    %1234 = vmatpush1.msra.mxu0 %v931
    %1235 = vmatprep.subr.mxu0 %v940
    %1236 = vmatpush1.msra.mxu0 %v939
    %1237 = vmatprep.subr.mxu0 0.0
    %1238 = vmatpush1.msra.mxu0 0.0
    %1239 = vmatprep.subr.mxu0 0.0
    %1240 = vmatpush1.msra.mxu0 0.0
    %1241 = vmatprep.subr.mxu0 0.0
    %1242 = vmatpush1.msra.mxu0 0.0
    %1243 = vmatprep.subr.mxu0 0.0
    %1244 = vmatpush1.msra.mxu0 0.0
    %1245 = vmatprep.subr.mxu0 0.0
    %1246 = vmatpush1.msra.mxu0 0.0
    %1247 = vmatprep.subr.mxu0 0.0
    %1248 = vmatpush1.msra.mxu0 0.0
    %1249 = vmatprep.subr.mxu0 0.0
    %1250 = vmatpush1.msra.mxu0 0.0
    %1251 = vmatprep.subr.mxu0 0.0
    %1252 = vmatpush1.msra.mxu0 0.0
    %1253 = vmatprep.subr.mxu0 0.0
    %1254 = vmatpush1.msra.mxu0 0.0
    %1255 = vmatprep.subr.mxu0 0.0
    %1256 = vmatpush1.msra.mxu0 0.0
    %1257 = vmatprep.subr.mxu0 0.0
    %1258 = vmatpush1.msra.mxu0 0.0
    %1259 = vmatprep.subr.mxu0 0.0
    %1260 = vmatpush1.msra.mxu0 0.0
    %1261 = vmatprep.subr.mxu0 0.0
    %1262 = vmatpush1.msra.mxu0 0.0
    %1263 = vmatprep.subr.mxu0 0.0
    %1264 = vmatpush1.msra.mxu0 0.0
    %1265 = vmatprep.subr.mxu0 0.0
    %1266 = vmatpush1.msra.mxu0 0.0
    %1267 = vmatprep.subr.mxu0 0.0
    %1268 = vmatpush1.msra.mxu0 0.0
    %1269 = vmatprep.subr.mxu0 0.0
    %1270 = vmatpush1.msra.mxu0 0.0
    %1271 = vmatprep.subr.mxu0 0.0
    %1272 = vmatpush1.msra.mxu0 0.0
    %1273 = vmatprep.subr.mxu0 0.0
    %1274 = vmatpush1.msra.mxu0 0.0
    %1275 = vmatprep.subr.mxu0 0.0
    %1276 = vmatpush1.msra.mxu0 0.0
    %1277 = vmatprep.subr.mxu0 0.0
    %1278 = vmatpush1.msra.mxu0 0.0
    %1279 = vmatprep.subr.mxu0 0.0
    %1280 = vmatpush1.msra.mxu0 0.0
    %1281 = vmatprep.subr.mxu0 0.0
    %1282 = vmatpush1.msra.mxu0 0.0
    %1283 = vmatprep.subr.mxu0 0.0
    %1284 = vmatpush1.msra.mxu0 0.0
    %1285 = vmatprep.mubr.f32.mxu0 0.0
    %1286 = vmatmul.mubr.f32.gmra.mrb[0].mxu0 %v985
    %v1287 = vpop.f32.mrb[0].mxu0
    %v1288 = vadd.f32 %v970, %v1287
    %v1289 = vpop.f32.mrb[0].mxu0
    %v1290 = vadd.f32 %v974, %v1289
    %1291 = vmatprep.mubr.f32.mxu0 0.0
    %1292 = vmatmul.mubr.f32.gmra.mrb[0].mxu0 %v988
    %v1293 = vpop.f32.mrb[0].mxu0
    %v1294 = vadd.f32 %v970, %v1293
    %v1295 = vpop.f32.mrb[0].mxu0
    %v1296 = vadd.f32 %v974, %v1295
    %1297 = vdwg.mxu0
    %v1298 = vmax.f32 %v1057, 0.0
    %v1299 = vmax.f32 %v1059, 0.0
    %v1300 = vmax.f32 %v1134, 0.0
    %v1301 = vmax.f32 %v1136, 0.0
    %v1302 = vmax.f32 %v1211, 0.0
    %v1303 = vmax.f32 %v1213, 0.0
    %v1304 = vmax.f32 %v1288, 0.0
    %v1305 = vmax.f32 %v1290, 0.0
    %v1306 = vmax.f32 %v1063, 0.0
    %v1307 = vmax.f32 %v1065, 0.0
    %v1308 = vmax.f32 %v1140, 0.0
    %v1309 = vmax.f32 %v1142, 0.0
    %v1310 = vmax.f32 %v1217, 0.0
    %v1311 = vmax.f32 %v1219, 0.0
    %v1312 = vmax.f32 %v1294, 0.0
    %v1313 = vmax.f32 %v1296, 0.0
    %vm1314 = vcmp.ne.f32.partialorder %v1057, %v1057
    %vm1315 = vcmp.ne.f32.partialorder %v1059, %v1059
    %vm1316 = vcmp.ne.f32.partialorder %v1134, %v1134
    %vm1317 = vcmp.ne.f32.partialorder %v1136, %v1136
    %vm1318 = vcmp.ne.f32.partialorder %v1211, %v1211
    %vm1319 = vcmp.ne.f32.partialorder %v1213, %v1213
    %vm1320 = vcmp.ne.f32.partialorder %v1288, %v1288
    %vm1321 = vcmp.ne.f32.partialorder %v1290, %v1290
    %vm1322 = vcmp.ne.f32.partialorder %v1063, %v1063
    %vm1323 = vcmp.ne.f32.partialorder %v1065, %v1065
    %vm1324 = vcmp.ne.f32.partialorder %v1140, %v1140
    %vm1325 = vcmp.ne.f32.partialorder %v1142, %v1142
    %vm1326 = vcmp.ne.f32.partialorder %v1217, %v1217
    %vm1327 = vcmp.ne.f32.partialorder %v1219, %v1219
    %vm1328 = vcmp.ne.f32.partialorder %v1294, %v1294
    %vm1329 = vcmp.ne.f32.partialorder %v1296, %v1296
    %v1330 = vadd.f32 %v1057, 0.0
    %v1331 = vadd.f32 %v1059, 0.0
    %v1332 = vadd.f32 %v1134, 0.0
    %v1333 = vadd.f32 %v1136, 0.0
    %v1334 = vadd.f32 %v1211, 0.0
    %v1335 = vadd.f32 %v1213, 0.0
    %v1336 = vadd.f32 %v1288, 0.0
    %v1337 = vadd.f32 %v1290, 0.0
    %v1338 = vadd.f32 %v1063, 0.0
    %v1339 = vadd.f32 %v1065, 0.0
    %v1340 = vadd.f32 %v1140, 0.0
    %v1341 = vadd.f32 %v1142, 0.0
    %v1342 = vadd.f32 %v1217, 0.0
    %v1343 = vadd.f32 %v1219, 0.0
    %v1344 = vadd.f32 %v1294, 0.0
    %v1345 = vadd.f32 %v1296, 0.0
    %v1346 = vand.u32 2147483647, %v1057
    %v1347 = vand.u32 2147483647, %v1059
    %v1348 = vand.u32 2147483647, %v1134
    %v1349 = vand.u32 2147483647, %v1136
    %v1350 = vand.u32 2147483647, %v1211
    %v1351 = vand.u32 2147483647, %v1213
    %v1352 = vand.u32 2147483647, %v1288
    %v1353 = vand.u32 2147483647, %v1290
    %v1354 = vand.u32 2147483647, %v1063
    %v1355 = vand.u32 2147483647, %v1065
    %v1356 = vand.u32 2147483647, %v1140
    %v1357 = vand.u32 2147483647, %v1142
    %v1358 = vand.u32 2147483647, %v1217
    %v1359 = vand.u32 2147483647, %v1219
    %v1360 = vand.u32 2147483647, %v1294
    %v1361 = vand.u32 2147483647, %v1296
    %v1362 = vsub.f32 0.0, %v1346
    %v1363 = vsub.f32 0.0, %v1347
    %v1364 = vsub.f32 0.0, %v1348
    %v1365 = vsub.f32 0.0, %v1349
    %v1366 = vsub.f32 0.0, %v1350
    %v1367 = vsub.f32 0.0, %v1351
    %v1368 = vsub.f32 0.0, %v1352
    %v1369 = vsub.f32 0.0, %v1353
    %v1370 = vsub.f32 0.0, %v1354
    %v1371 = vsub.f32 0.0, %v1355
    %v1372 = vsub.f32 0.0, %v1356
    %v1373 = vsub.f32 0.0, %v1357
    %v1374 = vsub.f32 0.0, %v1358
    %v1375 = vsub.f32 0.0, %v1359
    %v1376 = vsub.f32 0.0, %v1360
    %v1377 = vsub.f32 0.0, %v1361
    %v1378 = vmul.f32 %v1362, 1.442695
    %v1379 = vpow.pop %v1378
    %v1380 = vmul.f32 %v1363, 1.442695
    %v1381 = vpow.pop %v1380
    %v1382 = vmul.f32 %v1364, 1.442695
    %v1383 = vpow.pop %v1382
    %v1384 = vmul.f32 %v1365, 1.442695
    %v1385 = vpow.pop %v1384
    %v1386 = vmul.f32 %v1366, 1.442695
    %v1387 = vpow.pop %v1386
    %v1388 = vmul.f32 %v1367, 1.442695
    %v1389 = vpow.pop %v1388
    %v1390 = vmul.f32 %v1368, 1.442695
    %v1391 = vpow.pop %v1390
    %v1392 = vmul.f32 %v1369, 1.442695
    %v1393 = vpow.pop %v1392
    %v1394 = vmul.f32 %v1370, 1.442695
    %v1395 = vpow.pop %v1394
    %v1396 = vmul.f32 %v1371, 1.442695
    %v1397 = vpow.pop %v1396
    %v1398 = vmul.f32 %v1372, 1.442695
    %v1399 = vpow.pop %v1398
    %v1400 = vmul.f32 %v1373, 1.442695
    %v1401 = vpow.pop %v1400
    %v1402 = vmul.f32 %v1374, 1.442695
    %v1403 = vpow.pop %v1402
    %v1404 = vmul.f32 %v1375, 1.442695
    %v1405 = vpow.pop %v1404
    %v1406 = vmul.f32 %v1376, 1.442695
    %v1407 = vpow.pop %v1406
    %v1408 = vmul.f32 %v1377, 1.442695
    %v1409 = vpow.pop %v1408
    %v1410 = vadd.f32 %v1379, 1.0
    %v1411 = vlog2.pop %v1410
    %v1412 = vmul.f32 %v1411, 0.6931472
    %v1413 = vmul.f32 -0.5, %v1379
    %v1414 = vadd.f32 %v1413, 1.0
    %v1415 = vmul.f32 %v1414, %v1379
    %v1416 = vand.u32 2147483647, %v1379
    %vm1417 = vcmp.lt.f32.partialorder %v1416, 0.0004427343
    %v1418 = vsel %vm1417, %v1415, %v1412
    %v1419 = vadd.f32 %v1381, 1.0
    %v1420 = vlog2.pop %v1419
    %v1421 = vmul.f32 %v1420, 0.6931472
    %v1422 = vmul.f32 -0.5, %v1381
    %v1423 = vadd.f32 %v1422, 1.0
    %v1424 = vmul.f32 %v1423, %v1381
    %v1425 = vand.u32 2147483647, %v1381
    %vm1426 = vcmp.lt.f32.partialorder %v1425, 0.0004427343
    %v1427 = vsel %vm1426, %v1424, %v1421
    %v1428 = vadd.f32 %v1383, 1.0
    %v1429 = vlog2.pop %v1428
    %v1430 = vmul.f32 %v1429, 0.6931472
    %v1431 = vmul.f32 -0.5, %v1383
    %v1432 = vadd.f32 %v1431, 1.0
    %v1433 = vmul.f32 %v1432, %v1383
    %v1434 = vand.u32 2147483647, %v1383
    %vm1435 = vcmp.lt.f32.partialorder %v1434, 0.0004427343
    %v1436 = vsel %vm1435, %v1433, %v1430
    %v1437 = vadd.f32 %v1385, 1.0
    %v1438 = vlog2.pop %v1437
    %v1439 = vmul.f32 %v1438, 0.6931472
    %v1440 = vmul.f32 -0.5, %v1385
    %v1441 = vadd.f32 %v1440, 1.0
    %v1442 = vmul.f32 %v1441, %v1385
    %v1443 = vand.u32 2147483647, %v1385
    %vm1444 = vcmp.lt.f32.partialorder %v1443, 0.0004427343
    %v1445 = vsel %vm1444, %v1442, %v1439
    %v1446 = vadd.f32 %v1387, 1.0
    %v1447 = vlog2.pop %v1446
    %v1448 = vmul.f32 %v1447, 0.6931472
    %v1449 = vmul.f32 -0.5, %v1387
    %v1450 = vadd.f32 %v1449, 1.0
    %v1451 = vmul.f32 %v1450, %v1387
    %v1452 = vand.u32 2147483647, %v1387
    %vm1453 = vcmp.lt.f32.partialorder %v1452, 0.0004427343
    %v1454 = vsel %vm1453, %v1451, %v1448
    %v1455 = vadd.f32 %v1389, 1.0
    %v1456 = vlog2.pop %v1455
    %v1457 = vmul.f32 %v1456, 0.6931472
    %v1458 = vmul.f32 -0.5, %v1389
    %v1459 = vadd.f32 %v1458, 1.0
    %v1460 = vmul.f32 %v1459, %v1389
    %v1461 = vand.u32 2147483647, %v1389
    %vm1462 = vcmp.lt.f32.partialorder %v1461, 0.0004427343
    %v1463 = vsel %vm1462, %v1460, %v1457
    %v1464 = vadd.f32 %v1391, 1.0
    %v1465 = vlog2.pop %v1464
    %v1466 = vmul.f32 %v1465, 0.6931472
    %v1467 = vmul.f32 -0.5, %v1391
    %v1468 = vadd.f32 %v1467, 1.0
    %v1469 = vmul.f32 %v1468, %v1391
    %v1470 = vand.u32 2147483647, %v1391
    %vm1471 = vcmp.lt.f32.partialorder %v1470, 0.0004427343
    %v1472 = vsel %vm1471, %v1469, %v1466
    %v1473 = vadd.f32 %v1393, 1.0
    %v1474 = vlog2.pop %v1473
    %v1475 = vmul.f32 %v1474, 0.6931472
    %v1476 = vmul.f32 -0.5, %v1393
    %v1477 = vadd.f32 %v1476, 1.0
    %v1478 = vmul.f32 %v1477, %v1393
    %v1479 = vand.u32 2147483647, %v1393
    %vm1480 = vcmp.lt.f32.partialorder %v1479, 0.0004427343
    %v1481 = vsel %vm1480, %v1478, %v1475
    %v1482 = vadd.f32 %v1395, 1.0
    %v1483 = vlog2.pop %v1482
    %v1484 = vmul.f32 %v1483, 0.6931472
    %v1485 = vmul.f32 -0.5, %v1395
    %v1486 = vadd.f32 %v1485, 1.0
    %v1487 = vmul.f32 %v1486, %v1395
    %v1488 = vand.u32 2147483647, %v1395
    %vm1489 = vcmp.lt.f32.partialorder %v1488, 0.0004427343
    %v1490 = vsel %vm1489, %v1487, %v1484
    %v1491 = vadd.f32 %v1397, 1.0
    %v1492 = vlog2.pop %v1491
    %v1493 = vmul.f32 %v1492, 0.6931472
    %v1494 = vmul.f32 -0.5, %v1397
    %v1495 = vadd.f32 %v1494, 1.0
    %v1496 = vmul.f32 %v1495, %v1397
    %v1497 = vand.u32 2147483647, %v1397
    %vm1498 = vcmp.lt.f32.partialorder %v1497, 0.0004427343
    %v1499 = vsel %vm1498, %v1496, %v1493
    %v1500 = vadd.f32 %v1399, 1.0
    %v1501 = vlog2.pop %v1500
    %v1502 = vmul.f32 %v1501, 0.6931472
    %v1503 = vmul.f32 -0.5, %v1399
    %v1504 = vadd.f32 %v1503, 1.0
    %v1505 = vmul.f32 %v1504, %v1399
    %v1506 = vand.u32 2147483647, %v1399
    %vm1507 = vcmp.lt.f32.partialorder %v1506, 0.0004427343
    %v1508 = vsel %vm1507, %v1505, %v1502
    %v1509 = vadd.f32 %v1401, 1.0
    %v1510 = vlog2.pop %v1509
    %v1511 = vmul.f32 %v1510, 0.6931472
    %v1512 = vmul.f32 -0.5, %v1401
    %v1513 = vadd.f32 %v1512, 1.0
    %v1514 = vmul.f32 %v1513, %v1401
    %v1515 = vand.u32 2147483647, %v1401
    %vm1516 = vcmp.lt.f32.partialorder %v1515, 0.0004427343
    %v1517 = vsel %vm1516, %v1514, %v1511
    %v1518 = vadd.f32 %v1403, 1.0
    %v1519 = vlog2.pop %v1518
    %v1520 = vmul.f32 %v1519, 0.6931472
    %v1521 = vmul.f32 -0.5, %v1403
    %v1522 = vadd.f32 %v1521, 1.0
    %v1523 = vmul.f32 %v1522, %v1403
    %v1524 = vand.u32 2147483647, %v1403
    %vm1525 = vcmp.lt.f32.partialorder %v1524, 0.0004427343
    %v1526 = vsel %vm1525, %v1523, %v1520
    %v1527 = vadd.f32 %v1405, 1.0
    %v1528 = vlog2.pop %v1527
    %v1529 = vmul.f32 %v1528, 0.6931472
    %v1530 = vmul.f32 -0.5, %v1405
    %v1531 = vadd.f32 %v1530, 1.0
    %v1532 = vmul.f32 %v1531, %v1405
    %v1533 = vand.u32 2147483647, %v1405
    %vm1534 = vcmp.lt.f32.partialorder %v1533, 0.0004427343
    %v1535 = vsel %vm1534, %v1532, %v1529
    %v1536 = vadd.f32 %v1407, 1.0
    %v1537 = vlog2.pop %v1536
    %v1538 = vmul.f32 %v1537, 0.6931472
    %v1539 = vmul.f32 -0.5, %v1407
    %v1540 = vadd.f32 %v1539, 1.0
    %v1541 = vmul.f32 %v1540, %v1407
    %v1542 = vand.u32 2147483647, %v1407
    %vm1543 = vcmp.lt.f32.partialorder %v1542, 0.0004427343
    %v1544 = vsel %vm1543, %v1541, %v1538
    %v1545 = vadd.f32 %v1409, 1.0
    %v1546 = vlog2.pop %v1545
    %v1547 = vmul.f32 %v1546, 0.6931472
    %v1548 = vmul.f32 -0.5, %v1409
    %v1549 = vadd.f32 %v1548, 1.0
    %v1550 = vmul.f32 %v1549, %v1409
    %v1551 = vand.u32 2147483647, %v1409
    %vm1552 = vcmp.lt.f32.partialorder %v1551, 0.0004427343
    %v1553 = vsel %vm1552, %v1550, %v1547
    %v1554 = vadd.f32 %v1298, %v1418
    %v1555 = vadd.f32 %v1299, %v1427
    %v1556 = vadd.f32 %v1300, %v1436
    %v1557 = vadd.f32 %v1301, %v1445
    %v1558 = vadd.f32 %v1302, %v1454
    %v1559 = vadd.f32 %v1303, %v1463
    %v1560 = vadd.f32 %v1304, %v1472
    %v1561 = vadd.f32 %v1305, %v1481
    %v1562 = vadd.f32 %v1306, %v1490
    %v1563 = vadd.f32 %v1307, %v1499
    %v1564 = vadd.f32 %v1308, %v1508
    %v1565 = vadd.f32 %v1309, %v1517
    %v1566 = vadd.f32 %v1310, %v1526
    %v1567 = vadd.f32 %v1311, %v1535
    %v1568 = vadd.f32 %v1312, %v1544
    %v1569 = vadd.f32 %v1313, %v1553
    %v1570 = vsel %vm1314, %v1330, %v1554
    %v1571 = vsel %vm1315, %v1331, %v1555
    %v1572 = vsel %vm1316, %v1332, %v1556
    %v1573 = vsel %vm1317, %v1333, %v1557
    %v1574 = vsel %vm1318, %v1334, %v1558
    %v1575 = vsel %vm1319, %v1335, %v1559
    %v1576 = vsel %vm1320, %v1336, %v1560
    %v1577 = vsel %vm1321, %v1337, %v1561
    %v1578 = vsel %vm1322, %v1338, %v1562
    %v1579 = vsel %vm1323, %v1339, %v1563
    %v1580 = vsel %vm1324, %v1340, %v1564
    %v1581 = vsel %vm1325, %v1341, %v1565
    %v1582 = vsel %vm1326, %v1342, %v1566
    %v1583 = vsel %vm1327, %v1343, %v1567
    %v1584 = vsel %vm1328, %v1344, %v1568
    %v1585 = vsel %vm1329, %v1345, %v1569
    %v1586 = vld [vmem:[%s10] sm:$0xff]
    %v1587 = vld [vmem:[%s10 + $0x8] sm:$0xff]
    %v1588 = vld [vmem:[%s10 + $0x10] sm:$0xff]
    %v1589 = vld [vmem:[%s10 + $0x18] sm:$0xff]
    %v1590 = vld [vmem:[%s10 + $0x20] sm:$0xff]
    %v1591 = vld [vmem:[%s10 + $0x28] sm:$0xff]
    %v1592 = vld [vmem:[%s10 + $0x30] sm:$0xff]
    %v1593 = vld [vmem:[%s10 + $0x38] sm:$0xff]
    %v1594 = vld [vmem:[%s10 + $0x40] sm:$0xff]
    %v1595 = vld [vmem:[%s10 + $0x48] sm:$0xff]
    %v1596 = vld [vmem:[%s10 + $0x50] sm:$0xff]
    %v1597 = vld [vmem:[%s10 + $0x58] sm:$0xff]
    %v1598 = vld [vmem:[%s10 + $0x60] sm:$0xff]
    %v1599 = vld [vmem:[%s10 + $0x68] sm:$0xff]
    %v1600 = vld [vmem:[%s10 + $0x70] sm:$0xff]
    %v1601 = vld [vmem:[%s10 + $0x78] sm:$0xff]
    %v1602 = vld [vmem:[%s10 + $0x80] sm:$0xff]
    %v1603 = vld [vmem:[%s10 + $0x88] sm:$0xff]
    %v1604 = vld [vmem:[%s10 + $0x90] sm:$0xff]
    %v1605 = vld [vmem:[%s10 + $0x98] sm:$0xff]
    %v1606 = vld [vmem:[%s10 + $0xa0] sm:$0xff]
    %v1607 = vld [vmem:[%s10 + $0xa8] sm:$0xff]
    %v1608 = vld [vmem:[%s10 + $0xb0] sm:$0xff]
    %v1609 = vld [vmem:[%s10 + $0xb8] sm:$0xff]
    %v1610 = vld [vmem:[%s10 + $0xc0] sm:$0xff]
    %v1611 = vld [vmem:[%s10 + $0xc8] sm:$0xff]
    %v1612 = vld [vmem:[%s10 + $0xd0] sm:$0xff]
    %v1613 = vld [vmem:[%s10 + $0xd8] sm:$0xff]
    %v1614 = vld [vmem:[%s10 + $0xe0] sm:$0xff]
    %v1615 = vld [vmem:[%s10 + $0xe8] sm:$0xff]
    %v1616 = vld [vmem:[%s10 + $0xf0] sm:$0xff]
    %v1617 = vld [vmem:[%s10 + $0xf8] sm:$0xff]
    %v1618 = vld [vmem:[%s10 + $0x100] sm:$0xff]
    %v1619 = vld [vmem:[%s10 + $0x108] sm:$0xff]
    %v1620 = vld [vmem:[%s10 + $0x110] sm:$0xff]
    %v1621 = vld [vmem:[%s10 + $0x118] sm:$0xff]
    %v1622 = vld [vmem:[%s10 + $0x120] sm:$0xff]
    %v1623 = vld [vmem:[%s10 + $0x128] sm:$0xff]
    %v1624 = vld [vmem:[%s10 + $0x130] sm:$0xff]
    %v1625 = vld [vmem:[%s10 + $0x138] sm:$0xff]
    %v1626 = vld [vmem:[%s10 + $0x140] sm:$0xff]
    %v1627 = vld [vmem:[%s10 + $0x148] sm:$0xff]
    %v1628 = vld [vmem:[%s10 + $0x150] sm:$0xff]
    %v1629 = vld [vmem:[%s10 + $0x158] sm:$0xff]
    %v1630 = vld [vmem:[%s10 + $0x160] sm:$0xff]
    %v1631 = vld [vmem:[%s10 + $0x168] sm:$0xff]
    %v1632 = vld [vmem:[%s10 + $0x170] sm:$0xff]
    %v1633 = vld [vmem:[%s10 + $0x178] sm:$0xff]
    %v1634 = vld [vmem:[%s10 + $0x180] sm:$0xff]
    %v1635 = vld [vmem:[%s10 + $0x188] sm:$0xff]
    %v1636 = vld [vmem:[%s10 + $0x190] sm:$0xff]
    %v1637 = vld [vmem:[%s10 + $0x198] sm:$0xff]
    %v1638 = vld [vmem:[%s10 + $0x1a0] sm:$0xff]
    %v1639 = vld [vmem:[%s10 + $0x1a8] sm:$0xff]
    %v1640 = vld [vmem:[%s10 + $0x1b0] sm:$0xff]
    %v1641 = vld [vmem:[%s10 + $0x1b8] sm:$0xff]
    %v1642 = vld [vmem:[%s10 + $0x1c0] sm:$0xff]
    %v1643 = vld [vmem:[%s10 + $0x1c8] sm:$0xff]
    %v1644 = vld [vmem:[%s10 + $0x1d0] sm:$0xff]
    %v1645 = vld [vmem:[%s10 + $0x1d8] sm:$0xff]
    %v1646 = vld [vmem:[%s10 + $0x1e0] sm:$0xff]
    %v1647 = vld [vmem:[%s10 + $0x1e8] sm:$0xff]
    %v1648 = vld [vmem:[%s10 + $0x1f0] sm:$0xff]
    %v1649 = vld [vmem:[%s10 + $0x1f8] sm:$0xff]
    %v1650 = vld [vmem:[%s11] sm:$0xff]
    %v1652 = vlaneseq
    %v1653 = vshrl.u32 %v1652, 7
    %v1654 = vsub.s32 0, %v1653
    %v1655 = vrot.slane %v1650, %v1654
    %v1656 = vlaneseq
    %v1657 = vshrl.u32 %v1656, 7
    %v1658 = vsub.s32 1, %v1657
    %v1659 = vrot.slane %v1650, %v1658
    %v1660 = vlaneseq
    %v1661 = vshrl.u32 %v1660, 7
    %v1662 = vsub.s32 2, %v1661
    %v1663 = vrot.slane %v1650, %v1662
    %v1664 = vlaneseq
    %v1665 = vshrl.u32 %v1664, 7
    %v1666 = vsub.s32 3, %v1665
    %v1667 = vrot.slane %v1650, %v1666
    %v1668 = vlaneseq
    %v1669 = vshrl.u32 %v1668, 7
    %v1670 = vsub.s32 4, %v1669
    %v1671 = vrot.slane %v1650, %v1670
    %v1672 = vlaneseq
    %v1673 = vshrl.u32 %v1672, 7
    %v1674 = vsub.s32 5, %v1673
    %v1675 = vrot.slane %v1650, %v1674
    %v1676 = vlaneseq
    %v1677 = vshrl.u32 %v1676, 7
    %v1678 = vsub.s32 6, %v1677
    %v1679 = vrot.slane %v1650, %v1678
    %v1680 = vlaneseq
    %v1681 = vshrl.u32 %v1680, 7
    %v1682 = vsub.s32 7, %v1681
    %v1683 = vrot.slane %v1650, %v1682
    %1692 = vmatprep.subr.mxu0 %v1587
    %1693 = vmatpush1.msra.mxu0 %v1586
    %1694 = vmatprep.subr.mxu0 %v1595
    %1695 = vmatpush1.msra.mxu0 %v1594
    %1696 = vmatprep.subr.mxu0 %v1603
    %1697 = vmatpush1.msra.mxu0 %v1602
    %1698 = vmatprep.subr.mxu0 %v1611
    %1699 = vmatpush1.msra.mxu0 %v1610
    %1700 = vmatprep.subr.mxu0 %v1619
    %1701 = vmatpush1.msra.mxu0 %v1618
    %1702 = vmatprep.subr.mxu0 %v1627
    %1703 = vmatpush1.msra.mxu0 %v1626
    %1704 = vmatprep.subr.mxu0 %v1635
    %1705 = vmatpush1.msra.mxu0 %v1634
    %1706 = vmatprep.subr.mxu0 %v1643
    %1707 = vmatpush1.msra.mxu0 %v1642
    %1708 = vmatprep.subr.mxu0 0.0
    %1709 = vmatpush1.msra.mxu0 0.0
    %1710 = vmatprep.subr.mxu0 0.0
    %1711 = vmatpush1.msra.mxu0 0.0
    %1712 = vmatprep.subr.mxu0 0.0
    %1713 = vmatpush1.msra.mxu0 0.0
    %1714 = vmatprep.subr.mxu0 0.0
    %1715 = vmatpush1.msra.mxu0 0.0
    %1716 = vmatprep.subr.mxu0 0.0
    %1717 = vmatpush1.msra.mxu0 0.0
    %1718 = vmatprep.subr.mxu0 0.0
    %1719 = vmatpush1.msra.mxu0 0.0
    %1720 = vmatprep.subr.mxu0 0.0
    %1721 = vmatpush1.msra.mxu0 0.0
    %1722 = vmatprep.subr.mxu0 0.0
    %1723 = vmatpush1.msra.mxu0 0.0
    %1724 = vmatprep.subr.mxu0 0.0
    %1725 = vmatpush1.msra.mxu0 0.0
    %1726 = vmatprep.subr.mxu0 0.0
    %1727 = vmatpush1.msra.mxu0 0.0
    %1728 = vmatprep.subr.mxu0 0.0
    %1729 = vmatpush1.msra.mxu0 0.0
    %1730 = vmatprep.subr.mxu0 0.0
    %1731 = vmatpush1.msra.mxu0 0.0
    %1732 = vmatprep.subr.mxu0 0.0
    %1733 = vmatpush1.msra.mxu0 0.0
    %1734 = vmatprep.subr.mxu0 0.0
    %1735 = vmatpush1.msra.mxu0 0.0
    %1736 = vmatprep.subr.mxu0 0.0
    %1737 = vmatpush1.msra.mxu0 0.0
    %1738 = vmatprep.subr.mxu0 0.0
    %1739 = vmatpush1.msra.mxu0 0.0
    %1740 = vmatprep.subr.mxu0 0.0
    %1741 = vmatpush1.msra.mxu0 0.0
    %1742 = vmatprep.subr.mxu0 0.0
    %1743 = vmatpush1.msra.mxu0 0.0
    %1744 = vmatprep.subr.mxu0 0.0
    %1745 = vmatpush1.msra.mxu0 0.0
    %1746 = vmatprep.subr.mxu0 0.0
    %1747 = vmatpush1.msra.mxu0 0.0
    %1748 = vmatprep.subr.mxu0 0.0
    %1749 = vmatpush1.msra.mxu0 0.0
    %1750 = vmatprep.subr.mxu0 0.0
    %1751 = vmatpush1.msra.mxu0 0.0
    %1752 = vmatprep.subr.mxu0 0.0
    %1753 = vmatpush1.msra.mxu0 0.0
    %1754 = vmatprep.subr.mxu0 0.0
    %1755 = vmatpush1.msra.mxu0 0.0
    %1756 = vmatprep.mubr.f32.mxu0 0.0
    %1757 = vmatmul.mubr.f32.gmra.mrb[0].mxu0 %v985
    %v1758 = vpop.f32.mrb[0].mxu0
    %v1759 = vadd.f32 %v1655, %v1758
    %v1760 = vpop.f32.mrb[0].mxu0
    %v1761 = vadd.f32 %v1659, %v1760
    %1762 = vmatprep.mubr.f32.mxu0 0.0
    %1763 = vmatmul.mubr.f32.gmra.mrb[0].mxu0 %v988
    %v1764 = vpop.f32.mrb[0].mxu0
    %v1765 = vadd.f32 %v1655, %v1764
    %v1766 = vpop.f32.mrb[0].mxu0
    %v1767 = vadd.f32 %v1659, %v1766
    %1768 = vdwg.mxu0
    %1769 = vmatprep.subr.mxu0 %v1589
    %1770 = vmatpush1.msra.mxu0 %v1588
    %1771 = vmatprep.subr.mxu0 %v1597
    %1772 = vmatpush1.msra.mxu0 %v1596
    %1773 = vmatprep.subr.mxu0 %v1605
    %1774 = vmatpush1.msra.mxu0 %v1604
    %1775 = vmatprep.subr.mxu0 %v1613
    %1776 = vmatpush1.msra.mxu0 %v1612
    %1777 = vmatprep.subr.mxu0 %v1621
    %1778 = vmatpush1.msra.mxu0 %v1620
    %1779 = vmatprep.subr.mxu0 %v1629
    %1780 = vmatpush1.msra.mxu0 %v1628
    %1781 = vmatprep.subr.mxu0 %v1637
    %1782 = vmatpush1.msra.mxu0 %v1636
    %1783 = vmatprep.subr.mxu0 %v1645
    %1784 = vmatpush1.msra.mxu0 %v1644
    %1785 = vmatprep.subr.mxu0 0.0
    %1786 = vmatpush1.msra.mxu0 0.0
    %1787 = vmatprep.subr.mxu0 0.0
    %1788 = vmatpush1.msra.mxu0 0.0
    %1789 = vmatprep.subr.mxu0 0.0
    %1790 = vmatpush1.msra.mxu0 0.0
    %1791 = vmatprep.subr.mxu0 0.0
    %1792 = vmatpush1.msra.mxu0 0.0
    %1793 = vmatprep.subr.mxu0 0.0
    %1794 = vmatpush1.msra.mxu0 0.0
    %1795 = vmatprep.subr.mxu0 0.0
    %1796 = vmatpush1.msra.mxu0 0.0
    %1797 = vmatprep.subr.mxu0 0.0
    %1798 = vmatpush1.msra.mxu0 0.0
    %1799 = vmatprep.subr.mxu0 0.0
    %1800 = vmatpush1.msra.mxu0 0.0
    %1801 = vmatprep.subr.mxu0 0.0
    %1802 = vmatpush1.msra.mxu0 0.0
    %1803 = vmatprep.subr.mxu0 0.0
    %1804 = vmatpush1.msra.mxu0 0.0
    %1805 = vmatprep.subr.mxu0 0.0
    %1806 = vmatpush1.msra.mxu0 0.0
    %1807 = vmatprep.subr.mxu0 0.0
    %1808 = vmatpush1.msra.mxu0 0.0
    %1809 = vmatprep.subr.mxu0 0.0
    %1810 = vmatpush1.msra.mxu0 0.0
    %1811 = vmatprep.subr.mxu0 0.0
    %1812 = vmatpush1.msra.mxu0 0.0
    %1813 = vmatprep.subr.mxu0 0.0
    %1814 = vmatpush1.msra.mxu0 0.0
    %1815 = vmatprep.subr.mxu0 0.0
    %1816 = vmatpush1.msra.mxu0 0.0
    %1817 = vmatprep.subr.mxu0 0.0
    %1818 = vmatpush1.msra.mxu0 0.0
    %1819 = vmatprep.subr.mxu0 0.0
    %1820 = vmatpush1.msra.mxu0 0.0
    %1821 = vmatprep.subr.mxu0 0.0
    %1822 = vmatpush1.msra.mxu0 0.0
    %1823 = vmatprep.subr.mxu0 0.0
    %1824 = vmatpush1.msra.mxu0 0.0
    %1825 = vmatprep.subr.mxu0 0.0
    %1826 = vmatpush1.msra.mxu0 0.0
    %1827 = vmatprep.subr.mxu0 0.0
    %1828 = vmatpush1.msra.mxu0 0.0
    %1829 = vmatprep.subr.mxu0 0.0
    %1830 = vmatpush1.msra.mxu0 0.0
    %1831 = vmatprep.subr.mxu0 0.0
    %1832 = vmatpush1.msra.mxu0 0.0
    %1833 = vmatprep.mubr.f32.mxu0 0.0
    %1834 = vmatmul.mubr.f32.gmra.mrb[0].mxu0 %v985
    %v1835 = vpop.f32.mrb[0].mxu0
    %v1836 = vadd.f32 %v1663, %v1835
    %v1837 = vpop.f32.mrb[0].mxu0
    %v1838 = vadd.f32 %v1667, %v1837
    %1839 = vmatprep.mubr.f32.mxu0 0.0
    %1840 = vmatmul.mubr.f32.gmra.mrb[0].mxu0 %v988
    %v1841 = vpop.f32.mrb[0].mxu0
    %v1842 = vadd.f32 %v1663, %v1841
    %v1843 = vpop.f32.mrb[0].mxu0
    %v1844 = vadd.f32 %v1667, %v1843
    %1845 = vdwg.mxu0
    %1846 = vmatprep.subr.mxu0 %v1591
    %1847 = vmatpush1.msra.mxu0 %v1590
    %1848 = vmatprep.subr.mxu0 %v1599
    %1849 = vmatpush1.msra.mxu0 %v1598
    %1850 = vmatprep.subr.mxu0 %v1607
    %1851 = vmatpush1.msra.mxu0 %v1606
    %1852 = vmatprep.subr.mxu0 %v1615
    %1853 = vmatpush1.msra.mxu0 %v1614
    %1854 = vmatprep.subr.mxu0 %v1623
    %1855 = vmatpush1.msra.mxu0 %v1622
    %1856 = vmatprep.subr.mxu0 %v1631
    %1857 = vmatpush1.msra.mxu0 %v1630
    %1858 = vmatprep.subr.mxu0 %v1639
    %1859 = vmatpush1.msra.mxu0 %v1638
    %1860 = vmatprep.subr.mxu0 %v1647
    %1861 = vmatpush1.msra.mxu0 %v1646
    %1862 = vmatprep.subr.mxu0 0.0
    %1863 = vmatpush1.msra.mxu0 0.0
    %1864 = vmatprep.subr.mxu0 0.0
    %1865 = vmatpush1.msra.mxu0 0.0
    %1866 = vmatprep.subr.mxu0 0.0
    %1867 = vmatpush1.msra.mxu0 0.0
    %1868 = vmatprep.subr.mxu0 0.0
    %1869 = vmatpush1.msra.mxu0 0.0
    %1870 = vmatprep.subr.mxu0 0.0
    %1871 = vmatpush1.msra.mxu0 0.0
    %1872 = vmatprep.subr.mxu0 0.0
    %1873 = vmatpush1.msra.mxu0 0.0
    %1874 = vmatprep.subr.mxu0 0.0
    %1875 = vmatpush1.msra.mxu0 0.0
    %1876 = vmatprep.subr.mxu0 0.0
    %1877 = vmatpush1.msra.mxu0 0.0
    %1878 = vmatprep.subr.mxu0 0.0
    %1879 = vmatpush1.msra.mxu0 0.0
    %1880 = vmatprep.subr.mxu0 0.0
    %1881 = vmatpush1.msra.mxu0 0.0
    %1882 = vmatprep.subr.mxu0 0.0
    %1883 = vmatpush1.msra.mxu0 0.0
    %1884 = vmatprep.subr.mxu0 0.0
    %1885 = vmatpush1.msra.mxu0 0.0
    %1886 = vmatprep.subr.mxu0 0.0
    %1887 = vmatpush1.msra.mxu0 0.0
    %1888 = vmatprep.subr.mxu0 0.0
    %1889 = vmatpush1.msra.mxu0 0.0
    %1890 = vmatprep.subr.mxu0 0.0
    %1891 = vmatpush1.msra.mxu0 0.0
    %1892 = vmatprep.subr.mxu0 0.0
    %1893 = vmatpush1.msra.mxu0 0.0
    %1894 = vmatprep.subr.mxu0 0.0
    %1895 = vmatpush1.msra.mxu0 0.0
    %1896 = vmatprep.subr.mxu0 0.0
    %1897 = vmatpush1.msra.mxu0 0.0
    %1898 = vmatprep.subr.mxu0 0.0
    %1899 = vmatpush1.msra.mxu0 0.0
    %1900 = vmatprep.subr.mxu0 0.0
    %1901 = vmatpush1.msra.mxu0 0.0
    %1902 = vmatprep.subr.mxu0 0.0
    %1903 = vmatpush1.msra.mxu0 0.0
    %1904 = vmatprep.subr.mxu0 0.0
    %1905 = vmatpush1.msra.mxu0 0.0
    %1906 = vmatprep.subr.mxu0 0.0
    %1907 = vmatpush1.msra.mxu0 0.0
    %1908 = vmatprep.subr.mxu0 0.0
    %1909 = vmatpush1.msra.mxu0 0.0
    %1910 = vmatprep.mubr.f32.mxu0 0.0
    %1911 = vmatmul.mubr.f32.gmra.mrb[0].mxu0 %v985
    %v1912 = vpop.f32.mrb[0].mxu0
    %v1913 = vadd.f32 %v1671, %v1912
    %v1914 = vpop.f32.mrb[0].mxu0
    %v1915 = vadd.f32 %v1675, %v1914
    %1916 = vmatprep.mubr.f32.mxu0 0.0
    %1917 = vmatmul.mubr.f32.gmra.mrb[0].mxu0 %v988
    %v1918 = vpop.f32.mrb[0].mxu0
    %v1919 = vadd.f32 %v1671, %v1918
    %v1920 = vpop.f32.mrb[0].mxu0
    %v1921 = vadd.f32 %v1675, %v1920
    %1922 = vdwg.mxu0
    %1923 = vmatprep.subr.mxu0 %v1593
    %1924 = vmatpush1.msra.mxu0 %v1592
    %1925 = vmatprep.subr.mxu0 %v1601
    %1926 = vmatpush1.msra.mxu0 %v1600
    %1927 = vmatprep.subr.mxu0 %v1609
    %1928 = vmatpush1.msra.mxu0 %v1608
    %1929 = vmatprep.subr.mxu0 %v1617
    %1930 = vmatpush1.msra.mxu0 %v1616
    %1931 = vmatprep.subr.mxu0 %v1625
    %1932 = vmatpush1.msra.mxu0 %v1624
    %1933 = vmatprep.subr.mxu0 %v1633
    %1934 = vmatpush1.msra.mxu0 %v1632
    %1935 = vmatprep.subr.mxu0 %v1641
    %1936 = vmatpush1.msra.mxu0 %v1640
    %1937 = vmatprep.subr.mxu0 %v1649
    %1938 = vmatpush1.msra.mxu0 %v1648
    %1939 = vmatprep.subr.mxu0 0.0
    %1940 = vmatpush1.msra.mxu0 0.0
    %1941 = vmatprep.subr.mxu0 0.0
    %1942 = vmatpush1.msra.mxu0 0.0
    %1943 = vmatprep.subr.mxu0 0.0
    %1944 = vmatpush1.msra.mxu0 0.0
    %1945 = vmatprep.subr.mxu0 0.0
    %1946 = vmatpush1.msra.mxu0 0.0
    %1947 = vmatprep.subr.mxu0 0.0
    %1948 = vmatpush1.msra.mxu0 0.0
    %1949 = vmatprep.subr.mxu0 0.0
    %1950 = vmatpush1.msra.mxu0 0.0
    %1951 = vmatprep.subr.mxu0 0.0
    %1952 = vmatpush1.msra.mxu0 0.0
    %1953 = vmatprep.subr.mxu0 0.0
    %1954 = vmatpush1.msra.mxu0 0.0
    %1955 = vmatprep.subr.mxu0 0.0
    %1956 = vmatpush1.msra.mxu0 0.0
    %1957 = vmatprep.subr.mxu0 0.0
    %1958 = vmatpush1.msra.mxu0 0.0
    %1959 = vmatprep.subr.mxu0 0.0
    %1960 = vmatpush1.msra.mxu0 0.0
    %1961 = vmatprep.subr.mxu0 0.0
    %1962 = vmatpush1.msra.mxu0 0.0
    %1963 = vmatprep.subr.mxu0 0.0
    %1964 = vmatpush1.msra.mxu0 0.0
    %1965 = vmatprep.subr.mxu0 0.0
    %1966 = vmatpush1.msra.mxu0 0.0
    %1967 = vmatprep.subr.mxu0 0.0
    %1968 = vmatpush1.msra.mxu0 0.0
    %1969 = vmatprep.subr.mxu0 0.0
    %1970 = vmatpush1.msra.mxu0 0.0
    %1971 = vmatprep.subr.mxu0 0.0
    %1972 = vmatpush1.msra.mxu0 0.0
    %1973 = vmatprep.subr.mxu0 0.0
    %1974 = vmatpush1.msra.mxu0 0.0
    %1975 = vmatprep.subr.mxu0 0.0
    %1976 = vmatpush1.msra.mxu0 0.0
    %1977 = vmatprep.subr.mxu0 0.0
    %1978 = vmatpush1.msra.mxu0 0.0
    %1979 = vmatprep.subr.mxu0 0.0
    %1980 = vmatpush1.msra.mxu0 0.0
    %1981 = vmatprep.subr.mxu0 0.0
    %1982 = vmatpush1.msra.mxu0 0.0
    %1983 = vmatprep.subr.mxu0 0.0
    %1984 = vmatpush1.msra.mxu0 0.0
    %1985 = vmatprep.subr.mxu0 0.0
    %1986 = vmatpush1.msra.mxu0 0.0
    %1987 = vmatprep.mubr.f32.mxu0 0.0
    %1988 = vmatmul.mubr.f32.gmra.mrb[0].mxu0 %v985
    %v1989 = vpop.f32.mrb[0].mxu0
    %v1990 = vadd.f32 %v1679, %v1989
    %v1991 = vpop.f32.mrb[0].mxu0
    %v1992 = vadd.f32 %v1683, %v1991
    %1993 = vmatprep.mubr.f32.mxu0 0.0
    %1994 = vmatmul.mubr.f32.gmra.mrb[0].mxu0 %v988
    %v1995 = vpop.f32.mrb[0].mxu0
    %v1996 = vadd.f32 %v1679, %v1995
    %v1997 = vpop.f32.mrb[0].mxu0
    %v1998 = vadd.f32 %v1683, %v1997
    %1999 = vdwg.mxu0
    %v2000 = vld [vmem:[%s12] sm:$0xff]
    %v2001 = vld [vmem:[%s12 + $0x8] sm:$0xff]
    %v2002 = vld [vmem:[%s12 + $0x10] sm:$0xff]
    %v2003 = vld [vmem:[%s12 + $0x18] sm:$0xff]
    %v2004 = vld [vmem:[%s12 + $0x20] sm:$0xff]
    %v2005 = vld [vmem:[%s12 + $0x28] sm:$0xff]
    %v2006 = vld [vmem:[%s12 + $0x30] sm:$0xff]
    %v2007 = vld [vmem:[%s12 + $0x38] sm:$0xff]
    %v2008 = vld [vmem:[%s12 + $0x40] sm:$0xff]
    %v2009 = vld [vmem:[%s12 + $0x48] sm:$0xff]
    %v2010 = vld [vmem:[%s12 + $0x50] sm:$0xff]
    %v2011 = vld [vmem:[%s12 + $0x58] sm:$0xff]
    %v2012 = vld [vmem:[%s12 + $0x60] sm:$0xff]
    %v2013 = vld [vmem:[%s12 + $0x68] sm:$0xff]
    %v2014 = vld [vmem:[%s12 + $0x70] sm:$0xff]
    %v2015 = vld [vmem:[%s12 + $0x78] sm:$0xff]
    %v2016 = vld [vmem:[%s12 + $0x80] sm:$0xff]
    %v2017 = vld [vmem:[%s12 + $0x88] sm:$0xff]
    %v2018 = vld [vmem:[%s12 + $0x90] sm:$0xff]
    %v2019 = vld [vmem:[%s12 + $0x98] sm:$0xff]
    %v2020 = vld [vmem:[%s12 + $0xa0] sm:$0xff]
    %v2021 = vld [vmem:[%s12 + $0xa8] sm:$0xff]
    %v2022 = vld [vmem:[%s12 + $0xb0] sm:$0xff]
    %v2023 = vld [vmem:[%s12 + $0xb8] sm:$0xff]
    %v2024 = vld [vmem:[%s12 + $0xc0] sm:$0xff]
    %v2025 = vld [vmem:[%s12 + $0xc8] sm:$0xff]
    %v2026 = vld [vmem:[%s12 + $0xd0] sm:$0xff]
    %v2027 = vld [vmem:[%s12 + $0xd8] sm:$0xff]
    %v2028 = vld [vmem:[%s12 + $0xe0] sm:$0xff]
    %v2029 = vld [vmem:[%s12 + $0xe8] sm:$0xff]
    %v2030 = vld [vmem:[%s12 + $0xf0] sm:$0xff]
    %v2031 = vld [vmem:[%s12 + $0xf8] sm:$0xff]
    %v2032 = vld [vmem:[%s12 + $0x100] sm:$0xff]
    %v2033 = vld [vmem:[%s12 + $0x108] sm:$0xff]
    %v2034 = vld [vmem:[%s12 + $0x110] sm:$0xff]
    %v2035 = vld [vmem:[%s12 + $0x118] sm:$0xff]
    %v2036 = vld [vmem:[%s12 + $0x120] sm:$0xff]
    %v2037 = vld [vmem:[%s12 + $0x128] sm:$0xff]
    %v2038 = vld [vmem:[%s12 + $0x130] sm:$0xff]
    %v2039 = vld [vmem:[%s12 + $0x138] sm:$0xff]
    %v2040 = vld [vmem:[%s12 + $0x140] sm:$0xff]
    %v2041 = vld [vmem:[%s12 + $0x148] sm:$0xff]
    %v2042 = vld [vmem:[%s12 + $0x150] sm:$0xff]
    %v2043 = vld [vmem:[%s12 + $0x158] sm:$0xff]
    %v2044 = vld [vmem:[%s12 + $0x160] sm:$0xff]
    %v2045 = vld [vmem:[%s12 + $0x168] sm:$0xff]
    %v2046 = vld [vmem:[%s12 + $0x170] sm:$0xff]
    %v2047 = vld [vmem:[%s12 + $0x178] sm:$0xff]
    %v2048 = vld [vmem:[%s12 + $0x180] sm:$0xff]
    %v2049 = vld [vmem:[%s12 + $0x188] sm:$0xff]
    %v2050 = vld [vmem:[%s12 + $0x190] sm:$0xff]
    %v2051 = vld [vmem:[%s12 + $0x198] sm:$0xff]
    %v2052 = vld [vmem:[%s12 + $0x1a0] sm:$0xff]
    %v2053 = vld [vmem:[%s12 + $0x1a8] sm:$0xff]
    %v2054 = vld [vmem:[%s12 + $0x1b0] sm:$0xff]
    %v2055 = vld [vmem:[%s12 + $0x1b8] sm:$0xff]
    %v2056 = vld [vmem:[%s12 + $0x1c0] sm:$0xff]
    %v2057 = vld [vmem:[%s12 + $0x1c8] sm:$0xff]
    %v2058 = vld [vmem:[%s12 + $0x1d0] sm:$0xff]
    %v2059 = vld [vmem:[%s12 + $0x1d8] sm:$0xff]
    %v2060 = vld [vmem:[%s12 + $0x1e0] sm:$0xff]
    %v2061 = vld [vmem:[%s12 + $0x1e8] sm:$0xff]
    %v2062 = vld [vmem:[%s12 + $0x1f0] sm:$0xff]
    %v2063 = vld [vmem:[%s12 + $0x1f8] sm:$0xff]
    %v2064 = vld [vmem:[%s13] sm:$0xff]
    %v2066 = vlaneseq
    %v2067 = vshrl.u32 %v2066, 7
    %v2068 = vsub.s32 0, %v2067
    %v2069 = vrot.slane %v2064, %v2068
    %v2070 = vlaneseq
    %v2071 = vshrl.u32 %v2070, 7
    %v2072 = vsub.s32 1, %v2071
    %v2073 = vrot.slane %v2064, %v2072
    %v2074 = vlaneseq
    %v2075 = vshrl.u32 %v2074, 7
    %v2076 = vsub.s32 2, %v2075
    %v2077 = vrot.slane %v2064, %v2076
    %v2078 = vlaneseq
    %v2079 = vshrl.u32 %v2078, 7
    %v2080 = vsub.s32 3, %v2079
    %v2081 = vrot.slane %v2064, %v2080
    %v2082 = vlaneseq
    %v2083 = vshrl.u32 %v2082, 7
    %v2084 = vsub.s32 4, %v2083
    %v2085 = vrot.slane %v2064, %v2084
    %v2086 = vlaneseq
    %v2087 = vshrl.u32 %v2086, 7
    %v2088 = vsub.s32 5, %v2087
    %v2089 = vrot.slane %v2064, %v2088
    %v2090 = vlaneseq
    %v2091 = vshrl.u32 %v2090, 7
    %v2092 = vsub.s32 6, %v2091
    %v2093 = vrot.slane %v2064, %v2092
    %v2094 = vlaneseq
    %v2095 = vshrl.u32 %v2094, 7
    %v2096 = vsub.s32 7, %v2095
    %v2097 = vrot.slane %v2064, %v2096
    %2106 = vmatprep.subr.mxu0 %v2001
    %2107 = vmatpush1.msra.mxu0 %v2000
    %2108 = vmatprep.subr.mxu0 %v2009
    %2109 = vmatpush1.msra.mxu0 %v2008
    %2110 = vmatprep.subr.mxu0 %v2017
    %2111 = vmatpush1.msra.mxu0 %v2016
    %2112 = vmatprep.subr.mxu0 %v2025
    %2113 = vmatpush1.msra.mxu0 %v2024
    %2114 = vmatprep.subr.mxu0 %v2033
    %2115 = vmatpush1.msra.mxu0 %v2032
    %2116 = vmatprep.subr.mxu0 %v2041
    %2117 = vmatpush1.msra.mxu0 %v2040
    %2118 = vmatprep.subr.mxu0 %v2049
    %2119 = vmatpush1.msra.mxu0 %v2048
    %2120 = vmatprep.subr.mxu0 %v2057
    %2121 = vmatpush1.msra.mxu0 %v2056
    %2122 = vmatprep.subr.mxu0 0.0
    %2123 = vmatpush1.msra.mxu0 0.0
    %2124 = vmatprep.subr.mxu0 0.0
    %2125 = vmatpush1.msra.mxu0 0.0
    %2126 = vmatprep.subr.mxu0 0.0
    %2127 = vmatpush1.msra.mxu0 0.0
    %2128 = vmatprep.subr.mxu0 0.0
    %2129 = vmatpush1.msra.mxu0 0.0
    %2130 = vmatprep.subr.mxu0 0.0
    %2131 = vmatpush1.msra.mxu0 0.0
    %2132 = vmatprep.subr.mxu0 0.0
    %2133 = vmatpush1.msra.mxu0 0.0
    %2134 = vmatprep.subr.mxu0 0.0
    %2135 = vmatpush1.msra.mxu0 0.0
    %2136 = vmatprep.subr.mxu0 0.0
    %2137 = vmatpush1.msra.mxu0 0.0
    %2138 = vmatprep.subr.mxu0 0.0
    %2139 = vmatpush1.msra.mxu0 0.0
    %2140 = vmatprep.subr.mxu0 0.0
    %2141 = vmatpush1.msra.mxu0 0.0
    %2142 = vmatprep.subr.mxu0 0.0
    %2143 = vmatpush1.msra.mxu0 0.0
    %2144 = vmatprep.subr.mxu0 0.0
    %2145 = vmatpush1.msra.mxu0 0.0
    %2146 = vmatprep.subr.mxu0 0.0
    %2147 = vmatpush1.msra.mxu0 0.0
    %2148 = vmatprep.subr.mxu0 0.0
    %2149 = vmatpush1.msra.mxu0 0.0
    %2150 = vmatprep.subr.mxu0 0.0
    %2151 = vmatpush1.msra.mxu0 0.0
    %2152 = vmatprep.subr.mxu0 0.0
    %2153 = vmatpush1.msra.mxu0 0.0
    %2154 = vmatprep.subr.mxu0 0.0
    %2155 = vmatpush1.msra.mxu0 0.0
    %2156 = vmatprep.subr.mxu0 0.0
    %2157 = vmatpush1.msra.mxu0 0.0
    %2158 = vmatprep.subr.mxu0 0.0
    %2159 = vmatpush1.msra.mxu0 0.0
    %2160 = vmatprep.subr.mxu0 0.0
    %2161 = vmatpush1.msra.mxu0 0.0
    %2162 = vmatprep.subr.mxu0 0.0
    %2163 = vmatpush1.msra.mxu0 0.0
    %2164 = vmatprep.subr.mxu0 0.0
    %2165 = vmatpush1.msra.mxu0 0.0
    %2166 = vmatprep.subr.mxu0 0.0
    %2167 = vmatpush1.msra.mxu0 0.0
    %2168 = vmatprep.subr.mxu0 0.0
    %2169 = vmatpush1.msra.mxu0 0.0
    %2170 = vmatprep.mubr.f32.mxu0 0.0
    %2171 = vmatmul.mubr.f32.gmra.mrb[0].mxu0 %v985
    %v2172 = vpop.f32.mrb[0].mxu0
    %v2173 = vadd.f32 %v2069, %v2172
    %v2174 = vpop.f32.mrb[0].mxu0
    %v2175 = vadd.f32 %v2073, %v2174
    %2176 = vmatprep.mubr.f32.mxu0 0.0
    %2177 = vmatmul.mubr.f32.gmra.mrb[0].mxu0 %v988
    %v2178 = vpop.f32.mrb[0].mxu0
    %v2179 = vadd.f32 %v2069, %v2178
    %v2180 = vpop.f32.mrb[0].mxu0
    %v2181 = vadd.f32 %v2073, %v2180
    %2182 = vdwg.mxu0
    %2183 = vmatprep.subr.mxu0 %v2003
    %2184 = vmatpush1.msra.mxu0 %v2002
    %2185 = vmatprep.subr.mxu0 %v2011
    %2186 = vmatpush1.msra.mxu0 %v2010
    %2187 = vmatprep.subr.mxu0 %v2019
    %2188 = vmatpush1.msra.mxu0 %v2018
    %2189 = vmatprep.subr.mxu0 %v2027
    %2190 = vmatpush1.msra.mxu0 %v2026
    %2191 = vmatprep.subr.mxu0 %v2035
    %2192 = vmatpush1.msra.mxu0 %v2034
    %2193 = vmatprep.subr.mxu0 %v2043
    %2194 = vmatpush1.msra.mxu0 %v2042
    %2195 = vmatprep.subr.mxu0 %v2051
    %2196 = vmatpush1.msra.mxu0 %v2050
    %2197 = vmatprep.subr.mxu0 %v2059
    %2198 = vmatpush1.msra.mxu0 %v2058
    %2199 = vmatprep.subr.mxu0 0.0
    %2200 = vmatpush1.msra.mxu0 0.0
    %2201 = vmatprep.subr.mxu0 0.0
    %2202 = vmatpush1.msra.mxu0 0.0
    %2203 = vmatprep.subr.mxu0 0.0
    %2204 = vmatpush1.msra.mxu0 0.0
    %2205 = vmatprep.subr.mxu0 0.0
    %2206 = vmatpush1.msra.mxu0 0.0
    %2207 = vmatprep.subr.mxu0 0.0
    %2208 = vmatpush1.msra.mxu0 0.0
    %2209 = vmatprep.subr.mxu0 0.0
    %2210 = vmatpush1.msra.mxu0 0.0
    %2211 = vmatprep.subr.mxu0 0.0
    %2212 = vmatpush1.msra.mxu0 0.0
    %2213 = vmatprep.subr.mxu0 0.0
    %2214 = vmatpush1.msra.mxu0 0.0
    %2215 = vmatprep.subr.mxu0 0.0
    %2216 = vmatpush1.msra.mxu0 0.0
    %2217 = vmatprep.subr.mxu0 0.0
    %2218 = vmatpush1.msra.mxu0 0.0
    %2219 = vmatprep.subr.mxu0 0.0
    %2220 = vmatpush1.msra.mxu0 0.0
    %2221 = vmatprep.subr.mxu0 0.0
    %2222 = vmatpush1.msra.mxu0 0.0
    %2223 = vmatprep.subr.mxu0 0.0
    %2224 = vmatpush1.msra.mxu0 0.0
    %2225 = vmatprep.subr.mxu0 0.0
    %2226 = vmatpush1.msra.mxu0 0.0
    %2227 = vmatprep.subr.mxu0 0.0
    %2228 = vmatpush1.msra.mxu0 0.0
    %2229 = vmatprep.subr.mxu0 0.0
    %2230 = vmatpush1.msra.mxu0 0.0
    %2231 = vmatprep.subr.mxu0 0.0
    %2232 = vmatpush1.msra.mxu0 0.0
    %2233 = vmatprep.subr.mxu0 0.0
    %2234 = vmatpush1.msra.mxu0 0.0
    %2235 = vmatprep.subr.mxu0 0.0
    %2236 = vmatpush1.msra.mxu0 0.0
    %2237 = vmatprep.subr.mxu0 0.0
    %2238 = vmatpush1.msra.mxu0 0.0
    %2239 = vmatprep.subr.mxu0 0.0
    %2240 = vmatpush1.msra.mxu0 0.0
    %2241 = vmatprep.subr.mxu0 0.0
    %2242 = vmatpush1.msra.mxu0 0.0
    %2243 = vmatprep.subr.mxu0 0.0
    %2244 = vmatpush1.msra.mxu0 0.0
    %2245 = vmatprep.subr.mxu0 0.0
    %2246 = vmatpush1.msra.mxu0 0.0
    %2247 = vmatprep.mubr.f32.mxu0 0.0
    %2248 = vmatmul.mubr.f32.gmra.mrb[0].mxu0 %v985
    %v2249 = vpop.f32.mrb[0].mxu0
    %v2250 = vadd.f32 %v2077, %v2249
    %v2251 = vpop.f32.mrb[0].mxu0
    %v2252 = vadd.f32 %v2081, %v2251
    %2253 = vmatprep.mubr.f32.mxu0 0.0
    %2254 = vmatmul.mubr.f32.gmra.mrb[0].mxu0 %v988
    %v2255 = vpop.f32.mrb[0].mxu0
    %v2256 = vadd.f32 %v2077, %v2255
    %v2257 = vpop.f32.mrb[0].mxu0
    %v2258 = vadd.f32 %v2081, %v2257
    %2259 = vdwg.mxu0
    %2260 = vmatprep.subr.mxu0 %v2005
    %2261 = vmatpush1.msra.mxu0 %v2004
    %2262 = vmatprep.subr.mxu0 %v2013
    %2263 = vmatpush1.msra.mxu0 %v2012
    %2264 = vmatprep.subr.mxu0 %v2021
    %2265 = vmatpush1.msra.mxu0 %v2020
    %2266 = vmatprep.subr.mxu0 %v2029
    %2267 = vmatpush1.msra.mxu0 %v2028
    %2268 = vmatprep.subr.mxu0 %v2037
    %2269 = vmatpush1.msra.mxu0 %v2036
    %2270 = vmatprep.subr.mxu0 %v2045
    %2271 = vmatpush1.msra.mxu0 %v2044
    %2272 = vmatprep.subr.mxu0 %v2053
    %2273 = vmatpush1.msra.mxu0 %v2052
    %2274 = vmatprep.subr.mxu0 %v2061
    %2275 = vmatpush1.msra.mxu0 %v2060
    %2276 = vmatprep.subr.mxu0 0.0
    %2277 = vmatpush1.msra.mxu0 0.0
    %2278 = vmatprep.subr.mxu0 0.0
    %2279 = vmatpush1.msra.mxu0 0.0
    %2280 = vmatprep.subr.mxu0 0.0
    %2281 = vmatpush1.msra.mxu0 0.0
    %2282 = vmatprep.subr.mxu0 0.0
    %2283 = vmatpush1.msra.mxu0 0.0
    %2284 = vmatprep.subr.mxu0 0.0
    %2285 = vmatpush1.msra.mxu0 0.0
    %2286 = vmatprep.subr.mxu0 0.0
    %2287 = vmatpush1.msra.mxu0 0.0
    %2288 = vmatprep.subr.mxu0 0.0
    %2289 = vmatpush1.msra.mxu0 0.0
    %2290 = vmatprep.subr.mxu0 0.0
    %2291 = vmatpush1.msra.mxu0 0.0
    %2292 = vmatprep.subr.mxu0 0.0
    %2293 = vmatpush1.msra.mxu0 0.0
    %2294 = vmatprep.subr.mxu0 0.0
    %2295 = vmatpush1.msra.mxu0 0.0
    %2296 = vmatprep.subr.mxu0 0.0
    %2297 = vmatpush1.msra.mxu0 0.0
    %2298 = vmatprep.subr.mxu0 0.0
    %2299 = vmatpush1.msra.mxu0 0.0
    %2300 = vmatprep.subr.mxu0 0.0
    %2301 = vmatpush1.msra.mxu0 0.0
    %2302 = vmatprep.subr.mxu0 0.0
    %2303 = vmatpush1.msra.mxu0 0.0
    %2304 = vmatprep.subr.mxu0 0.0
    %2305 = vmatpush1.msra.mxu0 0.0
    %2306 = vmatprep.subr.mxu0 0.0
    %2307 = vmatpush1.msra.mxu0 0.0
    %2308 = vmatprep.subr.mxu0 0.0
    %2309 = vmatpush1.msra.mxu0 0.0
    %2310 = vmatprep.subr.mxu0 0.0
    %2311 = vmatpush1.msra.mxu0 0.0
    %2312 = vmatprep.subr.mxu0 0.0
    %2313 = vmatpush1.msra.mxu0 0.0
    %2314 = vmatprep.subr.mxu0 0.0
    %2315 = vmatpush1.msra.mxu0 0.0
    %2316 = vmatprep.subr.mxu0 0.0
    %2317 = vmatpush1.msra.mxu0 0.0
    %2318 = vmatprep.subr.mxu0 0.0
    %2319 = vmatpush1.msra.mxu0 0.0
    %2320 = vmatprep.subr.mxu0 0.0
    %2321 = vmatpush1.msra.mxu0 0.0
    %2322 = vmatprep.subr.mxu0 0.0
    %2323 = vmatpush1.msra.mxu0 0.0
    %2324 = vmatprep.mubr.f32.mxu0 0.0
    %2325 = vmatmul.mubr.f32.gmra.mrb[0].mxu0 %v985
    %v2326 = vpop.f32.mrb[0].mxu0
    %v2327 = vadd.f32 %v2085, %v2326
    %v2328 = vpop.f32.mrb[0].mxu0
    %v2329 = vadd.f32 %v2089, %v2328
    %2330 = vmatprep.mubr.f32.mxu0 0.0
    %2331 = vmatmul.mubr.f32.gmra.mrb[0].mxu0 %v988
    %v2332 = vpop.f32.mrb[0].mxu0
    %v2333 = vadd.f32 %v2085, %v2332
    %v2334 = vpop.f32.mrb[0].mxu0
    %v2335 = vadd.f32 %v2089, %v2334
    %2336 = vdwg.mxu0
    %2337 = vmatprep.subr.mxu0 %v2007
    %2338 = vmatpush1.msra.mxu0 %v2006
    %2339 = vmatprep.subr.mxu0 %v2015
    %2340 = vmatpush1.msra.mxu0 %v2014
    %2341 = vmatprep.subr.mxu0 %v2023
    %2342 = vmatpush1.msra.mxu0 %v2022
    %2343 = vmatprep.subr.mxu0 %v2031
    %2344 = vmatpush1.msra.mxu0 %v2030
    %2345 = vmatprep.subr.mxu0 %v2039
    %2346 = vmatpush1.msra.mxu0 %v2038
    %2347 = vmatprep.subr.mxu0 %v2047
    %2348 = vmatpush1.msra.mxu0 %v2046
    %2349 = vmatprep.subr.mxu0 %v2055
    %2350 = vmatpush1.msra.mxu0 %v2054
    %2351 = vmatprep.subr.mxu0 %v2063
    %2352 = vmatpush1.msra.mxu0 %v2062
    %2353 = vmatprep.subr.mxu0 0.0
    %2354 = vmatpush1.msra.mxu0 0.0
    %2355 = vmatprep.subr.mxu0 0.0
    %2356 = vmatpush1.msra.mxu0 0.0
    %2357 = vmatprep.subr.mxu0 0.0
    %2358 = vmatpush1.msra.mxu0 0.0
    %2359 = vmatprep.subr.mxu0 0.0
    %2360 = vmatpush1.msra.mxu0 0.0
    %2361 = vmatprep.subr.mxu0 0.0
    %2362 = vmatpush1.msra.mxu0 0.0
    %2363 = vmatprep.subr.mxu0 0.0
    %2364 = vmatpush1.msra.mxu0 0.0
    %2365 = vmatprep.subr.mxu0 0.0
    %2366 = vmatpush1.msra.mxu0 0.0
    %2367 = vmatprep.subr.mxu0 0.0
    %2368 = vmatpush1.msra.mxu0 0.0
    %2369 = vmatprep.subr.mxu0 0.0
    %2370 = vmatpush1.msra.mxu0 0.0
    %2371 = vmatprep.subr.mxu0 0.0
    %2372 = vmatpush1.msra.mxu0 0.0
    %2373 = vmatprep.subr.mxu0 0.0
    %2374 = vmatpush1.msra.mxu0 0.0
    %2375 = vmatprep.subr.mxu0 0.0
    %2376 = vmatpush1.msra.mxu0 0.0
    %2377 = vmatprep.subr.mxu0 0.0
    %2378 = vmatpush1.msra.mxu0 0.0
    %2379 = vmatprep.subr.mxu0 0.0
    %2380 = vmatpush1.msra.mxu0 0.0
    %2381 = vmatprep.subr.mxu0 0.0
    %2382 = vmatpush1.msra.mxu0 0.0
    %2383 = vmatprep.subr.mxu0 0.0
    %2384 = vmatpush1.msra.mxu0 0.0
    %2385 = vmatprep.subr.mxu0 0.0
    %2386 = vmatpush1.msra.mxu0 0.0
    %2387 = vmatprep.subr.mxu0 0.0
    %2388 = vmatpush1.msra.mxu0 0.0
    %2389 = vmatprep.subr.mxu0 0.0
    %2390 = vmatpush1.msra.mxu0 0.0
    %2391 = vmatprep.subr.mxu0 0.0
    %2392 = vmatpush1.msra.mxu0 0.0
    %2393 = vmatprep.subr.mxu0 0.0
    %2394 = vmatpush1.msra.mxu0 0.0
    %2395 = vmatprep.subr.mxu0 0.0
    %2396 = vmatpush1.msra.mxu0 0.0
    %2397 = vmatprep.subr.mxu0 0.0
    %2398 = vmatpush1.msra.mxu0 0.0
    %2399 = vmatprep.subr.mxu0 0.0
    %2400 = vmatpush1.msra.mxu0 0.0
    %2401 = vmatprep.mubr.f32.mxu0 0.0
    %2402 = vmatmul.mubr.f32.gmra.mrb[0].mxu0 %v985
    %v2403 = vpop.f32.mrb[0].mxu0
    %v2404 = vadd.f32 %v2093, %v2403
    %v2405 = vpop.f32.mrb[0].mxu0
    %v2406 = vadd.f32 %v2097, %v2405
    %2407 = vmatprep.mubr.f32.mxu0 0.0
    %2408 = vmatmul.mubr.f32.gmra.mrb[0].mxu0 %v988
    %v2409 = vpop.f32.mrb[0].mxu0
    %v2410 = vadd.f32 %v2093, %v2409
    %v2411 = vpop.f32.mrb[0].mxu0
    %v2412 = vadd.f32 %v2097, %v2411
    %2413 = vdwg.mxu0
    %v2414 = vld [vmem:[#allocation17] sm:$0xff]
    %v2415 = vld [vmem:[#allocation17 + $0x8] sm:$0xff]
    %v2416 = vld [vmem:[#allocation17 + $0x10] sm:$0xff]
    %v2417 = vld [vmem:[#allocation17 + $0x18] sm:$0xff]
    %v2418 = vld [vmem:[#allocation17 + $0x20] sm:$0xff]
    %v2419 = vld [vmem:[#allocation17 + $0x28] sm:$0xff]
    %v2420 = vld [vmem:[#allocation17 + $0x30] sm:$0xff]
    %v2421 = vld [vmem:[#allocation17 + $0x38] sm:$0xff]
    %v2422 = vld [vmem:[#allocation17 + $0x40] sm:$0xff]
    %v2423 = vld [vmem:[#allocation17 + $0x48] sm:$0xff]
    %v2424 = vld [vmem:[#allocation17 + $0x50] sm:$0xff]
    %v2425 = vld [vmem:[#allocation17 + $0x58] sm:$0xff]
    %v2426 = vld [vmem:[#allocation17 + $0x60] sm:$0xff]
    %v2427 = vld [vmem:[#allocation17 + $0x68] sm:$0xff]
    %v2428 = vld [vmem:[#allocation17 + $0x70] sm:$0xff]
    %v2429 = vld [vmem:[#allocation17 + $0x78] sm:$0xff]
    %v2430 = vld [vmem:[#allocation17 + $0x80] sm:$0xff]
    %v2431 = vld [vmem:[#allocation17 + $0x88] sm:$0xff]
    %v2432 = vld [vmem:[#allocation17 + $0x90] sm:$0xff]
    %v2433 = vld [vmem:[#allocation17 + $0x98] sm:$0xff]
    %v2434 = vld [vmem:[#allocation17 + $0xa0] sm:$0xff]
    %v2435 = vld [vmem:[#allocation17 + $0xa8] sm:$0xff]
    %v2436 = vld [vmem:[#allocation17 + $0xb0] sm:$0xff]
    %v2437 = vld [vmem:[#allocation17 + $0xb8] sm:$0xff]
    %v2438 = vld [vmem:[#allocation17 + $0xc0] sm:$0xff]
    %v2439 = vld [vmem:[#allocation17 + $0xc8] sm:$0xff]
    %v2440 = vld [vmem:[#allocation17 + $0xd0] sm:$0xff]
    %v2441 = vld [vmem:[#allocation17 + $0xd8] sm:$0xff]
    %v2442 = vld [vmem:[#allocation17 + $0xe0] sm:$0xff]
    %v2443 = vld [vmem:[#allocation17 + $0xe8] sm:$0xff]
    %v2444 = vld [vmem:[#allocation17 + $0xf0] sm:$0xff]
    %v2445 = vld [vmem:[#allocation17 + $0xf8] sm:$0xff]
    %v2446 = vld [vmem:[#allocation17 + $0x100] sm:$0xff]
    %v2447 = vld [vmem:[#allocation17 + $0x108] sm:$0xff]
    %v2448 = vld [vmem:[#allocation17 + $0x110] sm:$0xff]
    %v2449 = vld [vmem:[#allocation17 + $0x118] sm:$0xff]
    %v2450 = vld [vmem:[#allocation17 + $0x120] sm:$0xff]
    %v2451 = vld [vmem:[#allocation17 + $0x128] sm:$0xff]
    %v2452 = vld [vmem:[#allocation17 + $0x130] sm:$0xff]
    %v2453 = vld [vmem:[#allocation17 + $0x138] sm:$0xff]
    %v2454 = vld [vmem:[#allocation17 + $0x140] sm:$0xff]
    %v2455 = vld [vmem:[#allocation17 + $0x148] sm:$0xff]
    %v2456 = vld [vmem:[#allocation17 + $0x150] sm:$0xff]
    %v2457 = vld [vmem:[#allocation17 + $0x158] sm:$0xff]
    %v2458 = vld [vmem:[#allocation17 + $0x160] sm:$0xff]
    %v2459 = vld [vmem:[#allocation17 + $0x168] sm:$0xff]
    %v2460 = vld [vmem:[#allocation17 + $0x170] sm:$0xff]
    %v2461 = vld [vmem:[#allocation17 + $0x178] sm:$0xff]
    %v2462 = vld [vmem:[#allocation17 + $0x180] sm:$0xff]
    %v2463 = vld [vmem:[#allocation17 + $0x188] sm:$0xff]
    %v2464 = vld [vmem:[#allocation17 + $0x190] sm:$0xff]
    %v2465 = vld [vmem:[#allocation17 + $0x198] sm:$0xff]
    %v2466 = vld [vmem:[#allocation17 + $0x1a0] sm:$0xff]
    %v2467 = vld [vmem:[#allocation17 + $0x1a8] sm:$0xff]
    %v2468 = vld [vmem:[#allocation17 + $0x1b0] sm:$0xff]
    %v2469 = vld [vmem:[#allocation17 + $0x1b8] sm:$0xff]
    %v2470 = vld [vmem:[#allocation17 + $0x1c0] sm:$0xff]
    %v2471 = vld [vmem:[#allocation17 + $0x1c8] sm:$0xff]
    %v2472 = vld [vmem:[#allocation17 + $0x1d0] sm:$0xff]
    %v2473 = vld [vmem:[#allocation17 + $0x1d8] sm:$0xff]
    %v2474 = vld [vmem:[#allocation17 + $0x1e0] sm:$0xff]
    %v2475 = vld [vmem:[#allocation17 + $0x1e8] sm:$0xff]
    %v2476 = vld [vmem:[#allocation17 + $0x1f0] sm:$0xff]
    %v2477 = vld [vmem:[#allocation17 + $0x1f8] sm:$0xff]
    %2478 = vmatprep.subr.mxu0 %v2415
    %2479 = vmatpush1.msra.mxu0 %v2414
    %2480 = vmatprep.subr.mxu0 %v2423
    %2481 = vmatpush1.msra.mxu0 %v2422
    %2482 = vmatprep.subr.mxu0 %v2431
    %2483 = vmatpush1.msra.mxu0 %v2430
    %2484 = vmatprep.subr.mxu0 %v2439
    %2485 = vmatpush1.msra.mxu0 %v2438
    %2486 = vmatprep.subr.mxu0 %v2447
    %2487 = vmatpush1.msra.mxu0 %v2446
    %2488 = vmatprep.subr.mxu0 %v2455
    %2489 = vmatpush1.msra.mxu0 %v2454
    %2490 = vmatprep.subr.mxu0 %v2463
    %2491 = vmatpush1.msra.mxu0 %v2462
    %2492 = vmatprep.subr.mxu0 %v2471
    %2493 = vmatpush1.msra.mxu0 %v2470
    %2494 = vmatprep.subr.mxu0 0.0
    %2495 = vmatpush1.msra.mxu0 0.0
    %2496 = vmatprep.subr.mxu0 0.0
    %2497 = vmatpush1.msra.mxu0 0.0
    %2498 = vmatprep.subr.mxu0 0.0
    %2499 = vmatpush1.msra.mxu0 0.0
    %2500 = vmatprep.subr.mxu0 0.0
    %2501 = vmatpush1.msra.mxu0 0.0
    %2502 = vmatprep.subr.mxu0 0.0
    %2503 = vmatpush1.msra.mxu0 0.0
    %2504 = vmatprep.subr.mxu0 0.0
    %2505 = vmatpush1.msra.mxu0 0.0
    %2506 = vmatprep.subr.mxu0 0.0
    %2507 = vmatpush1.msra.mxu0 0.0
    %2508 = vmatprep.subr.mxu0 0.0
    %2509 = vmatpush1.msra.mxu0 0.0
    %2510 = vmatprep.subr.mxu0 0.0
    %2511 = vmatpush1.msra.mxu0 0.0
    %2512 = vmatprep.subr.mxu0 0.0
    %2513 = vmatpush1.msra.mxu0 0.0
    %2514 = vmatprep.subr.mxu0 0.0
    %2515 = vmatpush1.msra.mxu0 0.0
    %2516 = vmatprep.subr.mxu0 0.0
    %2517 = vmatpush1.msra.mxu0 0.0
    %2518 = vmatprep.subr.mxu0 0.0
    %2519 = vmatpush1.msra.mxu0 0.0
    %2520 = vmatprep.subr.mxu0 0.0
    %2521 = vmatpush1.msra.mxu0 0.0
    %2522 = vmatprep.subr.mxu0 0.0
    %2523 = vmatpush1.msra.mxu0 0.0
    %2524 = vmatprep.subr.mxu0 0.0
    %2525 = vmatpush1.msra.mxu0 0.0
    %2526 = vmatprep.subr.mxu0 0.0
    %2527 = vmatpush1.msra.mxu0 0.0
    %2528 = vmatprep.subr.mxu0 0.0
    %2529 = vmatpush1.msra.mxu0 0.0
    %2530 = vmatprep.subr.mxu0 0.0
    %2531 = vmatpush1.msra.mxu0 0.0
    %2532 = vmatprep.subr.mxu0 0.0
    %2533 = vmatpush1.msra.mxu0 0.0
    %2534 = vmatprep.subr.mxu0 0.0
    %2535 = vmatpush1.msra.mxu0 0.0
    %2536 = vmatprep.subr.mxu0 0.0
    %2537 = vmatpush1.msra.mxu0 0.0
    %2538 = vmatprep.subr.mxu0 0.0
    %2539 = vmatpush1.msra.mxu0 0.0
    %2540 = vmatprep.subr.mxu0 0.0
    %2541 = vmatpush1.msra.mxu0 0.0
    %2542 = vmatprep.mubr.f32.mxu0 0.0
    %2543 = vmatmul.mubr.f32.gmra.mrb[0].mxu0 %v985
    %v2544 = vpop.f32.mrb[0].mxu0
    %v2545 = vadd.f32 0.0, %v2544
    %v2546 = vpop.f32.mrb[0].mxu0
    %v2547 = vadd.f32 0.0, %v2546
    %2548 = vmatprep.mubr.f32.mxu0 0.0
    %2549 = vmatmul.mubr.f32.gmra.mrb[0].mxu0 %v988
    %v2550 = vpop.f32.mrb[0].mxu0
    %v2551 = vadd.f32 0.0, %v2550
    %v2552 = vpop.f32.mrb[0].mxu0
    %v2553 = vadd.f32 0.0, %v2552
    %2554 = vdwg.mxu0
    %2555 = vmatprep.subr.mxu0 %v2417
    %2556 = vmatpush1.msra.mxu0 %v2416
    %2557 = vmatprep.subr.mxu0 %v2425
    %2558 = vmatpush1.msra.mxu0 %v2424
    %2559 = vmatprep.subr.mxu0 %v2433
    %2560 = vmatpush1.msra.mxu0 %v2432
    %2561 = vmatprep.subr.mxu0 %v2441
    %2562 = vmatpush1.msra.mxu0 %v2440
    %2563 = vmatprep.subr.mxu0 %v2449
    %2564 = vmatpush1.msra.mxu0 %v2448
    %2565 = vmatprep.subr.mxu0 %v2457
    %2566 = vmatpush1.msra.mxu0 %v2456
    %2567 = vmatprep.subr.mxu0 %v2465
    %2568 = vmatpush1.msra.mxu0 %v2464
    %2569 = vmatprep.subr.mxu0 %v2473
    %2570 = vmatpush1.msra.mxu0 %v2472
    %2571 = vmatprep.subr.mxu0 0.0
    %2572 = vmatpush1.msra.mxu0 0.0
    %2573 = vmatprep.subr.mxu0 0.0
    %2574 = vmatpush1.msra.mxu0 0.0
    %2575 = vmatprep.subr.mxu0 0.0
    %2576 = vmatpush1.msra.mxu0 0.0
    %2577 = vmatprep.subr.mxu0 0.0
    %2578 = vmatpush1.msra.mxu0 0.0
    %2579 = vmatprep.subr.mxu0 0.0
    %2580 = vmatpush1.msra.mxu0 0.0
    %2581 = vmatprep.subr.mxu0 0.0
    %2582 = vmatpush1.msra.mxu0 0.0
    %2583 = vmatprep.subr.mxu0 0.0
    %2584 = vmatpush1.msra.mxu0 0.0
    %2585 = vmatprep.subr.mxu0 0.0
    %2586 = vmatpush1.msra.mxu0 0.0
    %2587 = vmatprep.subr.mxu0 0.0
    %2588 = vmatpush1.msra.mxu0 0.0
    %2589 = vmatprep.subr.mxu0 0.0
    %2590 = vmatpush1.msra.mxu0 0.0
    %2591 = vmatprep.subr.mxu0 0.0
    %2592 = vmatpush1.msra.mxu0 0.0
    %2593 = vmatprep.subr.mxu0 0.0
    %2594 = vmatpush1.msra.mxu0 0.0
    %2595 = vmatprep.subr.mxu0 0.0
    %2596 = vmatpush1.msra.mxu0 0.0
    %2597 = vmatprep.subr.mxu0 0.0
    %2598 = vmatpush1.msra.mxu0 0.0
    %2599 = vmatprep.subr.mxu0 0.0
    %2600 = vmatpush1.msra.mxu0 0.0
    %2601 = vmatprep.subr.mxu0 0.0
    %2602 = vmatpush1.msra.mxu0 0.0
    %2603 = vmatprep.subr.mxu0 0.0
    %2604 = vmatpush1.msra.mxu0 0.0
    %2605 = vmatprep.subr.mxu0 0.0
    %2606 = vmatpush1.msra.mxu0 0.0
    %2607 = vmatprep.subr.mxu0 0.0
    %2608 = vmatpush1.msra.mxu0 0.0
    %2609 = vmatprep.subr.mxu0 0.0
    %2610 = vmatpush1.msra.mxu0 0.0
    %2611 = vmatprep.subr.mxu0 0.0
    %2612 = vmatpush1.msra.mxu0 0.0
    %2613 = vmatprep.subr.mxu0 0.0
    %2614 = vmatpush1.msra.mxu0 0.0
    %2615 = vmatprep.subr.mxu0 0.0
    %2616 = vmatpush1.msra.mxu0 0.0
    %2617 = vmatprep.subr.mxu0 0.0
    %2618 = vmatpush1.msra.mxu0 0.0
    %2619 = vmatprep.mubr.f32.mxu0 0.0
    %2620 = vmatmul.mubr.f32.gmra.mrb[0].mxu0 %v985
    %v2621 = vpop.f32.mrb[0].mxu0
    %v2622 = vadd.f32 0.0, %v2621
    %v2623 = vpop.f32.mrb[0].mxu0
    %v2624 = vadd.f32 0.0, %v2623
    %2625 = vmatprep.mubr.f32.mxu0 0.0
    %2626 = vmatmul.mubr.f32.gmra.mrb[0].mxu0 %v988
    %v2627 = vpop.f32.mrb[0].mxu0
    %v2628 = vadd.f32 0.0, %v2627
    %v2629 = vpop.f32.mrb[0].mxu0
    %v2630 = vadd.f32 0.0, %v2629
    %2631 = vdwg.mxu0
    %2632 = vmatprep.subr.mxu0 %v2419
    %2633 = vmatpush1.msra.mxu0 %v2418
    %2634 = vmatprep.subr.mxu0 %v2427
    %2635 = vmatpush1.msra.mxu0 %v2426
    %2636 = vmatprep.subr.mxu0 %v2435
    %2637 = vmatpush1.msra.mxu0 %v2434
    %2638 = vmatprep.subr.mxu0 %v2443
    %2639 = vmatpush1.msra.mxu0 %v2442
    %2640 = vmatprep.subr.mxu0 %v2451
    %2641 = vmatpush1.msra.mxu0 %v2450
    %2642 = vmatprep.subr.mxu0 %v2459
    %2643 = vmatpush1.msra.mxu0 %v2458
    %2644 = vmatprep.subr.mxu0 %v2467
    %2645 = vmatpush1.msra.mxu0 %v2466
    %2646 = vmatprep.subr.mxu0 %v2475
    %2647 = vmatpush1.msra.mxu0 %v2474
    %2648 = vmatprep.subr.mxu0 0.0
    %2649 = vmatpush1.msra.mxu0 0.0
    %2650 = vmatprep.subr.mxu0 0.0
    %2651 = vmatpush1.msra.mxu0 0.0
    %2652 = vmatprep.subr.mxu0 0.0
    %2653 = vmatpush1.msra.mxu0 0.0
    %2654 = vmatprep.subr.mxu0 0.0
    %2655 = vmatpush1.msra.mxu0 0.0
    %2656 = vmatprep.subr.mxu0 0.0
    %2657 = vmatpush1.msra.mxu0 0.0
    %2658 = vmatprep.subr.mxu0 0.0
    %2659 = vmatpush1.msra.mxu0 0.0
    %2660 = vmatprep.subr.mxu0 0.0
    %2661 = vmatpush1.msra.mxu0 0.0
    %2662 = vmatprep.subr.mxu0 0.0
    %2663 = vmatpush1.msra.mxu0 0.0
    %2664 = vmatprep.subr.mxu0 0.0
    %2665 = vmatpush1.msra.mxu0 0.0
    %2666 = vmatprep.subr.mxu0 0.0
    %2667 = vmatpush1.msra.mxu0 0.0
    %2668 = vmatprep.subr.mxu0 0.0
    %2669 = vmatpush1.msra.mxu0 0.0
    %2670 = vmatprep.subr.mxu0 0.0
    %2671 = vmatpush1.msra.mxu0 0.0
    %2672 = vmatprep.subr.mxu0 0.0
    %2673 = vmatpush1.msra.mxu0 0.0
    %2674 = vmatprep.subr.mxu0 0.0
    %2675 = vmatpush1.msra.mxu0 0.0
    %2676 = vmatprep.subr.mxu0 0.0
    %2677 = vmatpush1.msra.mxu0 0.0
    %2678 = vmatprep.subr.mxu0 0.0
    %2679 = vmatpush1.msra.mxu0 0.0
    %2680 = vmatprep.subr.mxu0 0.0
    %2681 = vmatpush1.msra.mxu0 0.0
    %2682 = vmatprep.subr.mxu0 0.0
    %2683 = vmatpush1.msra.mxu0 0.0
    %2684 = vmatprep.subr.mxu0 0.0
    %2685 = vmatpush1.msra.mxu0 0.0
    %2686 = vmatprep.subr.mxu0 0.0
    %2687 = vmatpush1.msra.mxu0 0.0
    %2688 = vmatprep.subr.mxu0 0.0
    %2689 = vmatpush1.msra.mxu0 0.0
    %2690 = vmatprep.subr.mxu0 0.0
    %2691 = vmatpush1.msra.mxu0 0.0
    %2692 = vmatprep.subr.mxu0 0.0
    %2693 = vmatpush1.msra.mxu0 0.0
    %2694 = vmatprep.subr.mxu0 0.0
    %2695 = vmatpush1.msra.mxu0 0.0
    %2696 = vmatprep.mubr.f32.mxu0 0.0
    %2697 = vmatmul.mubr.f32.gmra.mrb[0].mxu0 %v985
    %v2698 = vpop.f32.mrb[0].mxu0
    %v2699 = vadd.f32 0.0, %v2698
    %v2700 = vpop.f32.mrb[0].mxu0
    %v2701 = vadd.f32 0.0, %v2700
    %2702 = vmatprep.mubr.f32.mxu0 0.0
    %2703 = vmatmul.mubr.f32.gmra.mrb[0].mxu0 %v988
    %v2704 = vpop.f32.mrb[0].mxu0
    %v2705 = vadd.f32 0.0, %v2704
    %v2706 = vpop.f32.mrb[0].mxu0
    %v2707 = vadd.f32 0.0, %v2706
    %2708 = vdwg.mxu0
    %2709 = vmatprep.subr.mxu0 %v2421
    %2710 = vmatpush1.msra.mxu0 %v2420
    %2711 = vmatprep.subr.mxu0 %v2429
    %2712 = vmatpush1.msra.mxu0 %v2428
    %2713 = vmatprep.subr.mxu0 %v2437
    %2714 = vmatpush1.msra.mxu0 %v2436
    %2715 = vmatprep.subr.mxu0 %v2445
    %2716 = vmatpush1.msra.mxu0 %v2444
    %2717 = vmatprep.subr.mxu0 %v2453
    %2718 = vmatpush1.msra.mxu0 %v2452
    %2719 = vmatprep.subr.mxu0 %v2461
    %2720 = vmatpush1.msra.mxu0 %v2460
    %2721 = vmatprep.subr.mxu0 %v2469
    %2722 = vmatpush1.msra.mxu0 %v2468
    %2723 = vmatprep.subr.mxu0 %v2477
    %2724 = vmatpush1.msra.mxu0 %v2476
    %2725 = vmatprep.subr.mxu0 0.0
    %2726 = vmatpush1.msra.mxu0 0.0
    %2727 = vmatprep.subr.mxu0 0.0
    %2728 = vmatpush1.msra.mxu0 0.0
    %2729 = vmatprep.subr.mxu0 0.0
    %2730 = vmatpush1.msra.mxu0 0.0
    %2731 = vmatprep.subr.mxu0 0.0
    %2732 = vmatpush1.msra.mxu0 0.0
    %2733 = vmatprep.subr.mxu0 0.0
    %2734 = vmatpush1.msra.mxu0 0.0
    %2735 = vmatprep.subr.mxu0 0.0
    %2736 = vmatpush1.msra.mxu0 0.0
    %2737 = vmatprep.subr.mxu0 0.0
    %2738 = vmatpush1.msra.mxu0 0.0
    %2739 = vmatprep.subr.mxu0 0.0
    %2740 = vmatpush1.msra.mxu0 0.0
    %2741 = vmatprep.subr.mxu0 0.0
    %2742 = vmatpush1.msra.mxu0 0.0
    %2743 = vmatprep.subr.mxu0 0.0
    %2744 = vmatpush1.msra.mxu0 0.0
    %2745 = vmatprep.subr.mxu0 0.0
    %2746 = vmatpush1.msra.mxu0 0.0
    %2747 = vmatprep.subr.mxu0 0.0
    %2748 = vmatpush1.msra.mxu0 0.0
    %2749 = vmatprep.subr.mxu0 0.0
    %2750 = vmatpush1.msra.mxu0 0.0
    %2751 = vmatprep.subr.mxu0 0.0
    %2752 = vmatpush1.msra.mxu0 0.0
    %2753 = vmatprep.subr.mxu0 0.0
    %2754 = vmatpush1.msra.mxu0 0.0
    %2755 = vmatprep.subr.mxu0 0.0
    %2756 = vmatpush1.msra.mxu0 0.0
    %2757 = vmatprep.subr.mxu0 0.0
    %2758 = vmatpush1.msra.mxu0 0.0
    %2759 = vmatprep.subr.mxu0 0.0
    %2760 = vmatpush1.msra.mxu0 0.0
    %2761 = vmatprep.subr.mxu0 0.0
    %2762 = vmatpush1.msra.mxu0 0.0
    %2763 = vmatprep.subr.mxu0 0.0
    %2764 = vmatpush1.msra.mxu0 0.0
    %2765 = vmatprep.subr.mxu0 0.0
    %2766 = vmatpush1.msra.mxu0 0.0
    %2767 = vmatprep.subr.mxu0 0.0
    %2768 = vmatpush1.msra.mxu0 0.0
    %2769 = vmatprep.subr.mxu0 0.0
    %2770 = vmatpush1.msra.mxu0 0.0
    %2771 = vmatprep.subr.mxu0 0.0
    %2772 = vmatpush1.msra.mxu0 0.0
    %2773 = vmatprep.mubr.f32.mxu0 0.0
    %2774 = vmatmul.mubr.f32.gmra.mrb[0].mxu0 %v985
    %v2775 = vpop.f32.mrb[0].mxu0
    %v2776 = vadd.f32 0.0, %v2775
    %v2777 = vpop.f32.mrb[0].mxu0
    %v2778 = vadd.f32 0.0, %v2777
    %2779 = vmatprep.mubr.f32.mxu0 0.0
    %2780 = vmatmul.mubr.f32.gmra.mrb[0].mxu0 %v988
    %v2781 = vpop.f32.mrb[0].mxu0
    %v2782 = vadd.f32 0.0, %v2781
    %v2783 = vpop.f32.mrb[0].mxu0
    %v2784 = vadd.f32 0.0, %v2783
    %2785 = vdwg.mxu0
    %v2786 = vld [vmem:[%s16] sm:$0xff]
    %v2788 = vlaneseq
    %v2789 = vshrl.u32 %v2788, 7
    %v2790 = vsub.s32 0, %v2789
    %v2791 = vrot.slane %v2786, %v2790
    %v2792 = vlaneseq
    %v2793 = vshrl.u32 %v2792, 7
    %v2794 = vsub.s32 1, %v2793
    %v2795 = vrot.slane %v2786, %v2794
    %v2796 = vlaneseq
    %v2797 = vshrl.u32 %v2796, 7
    %v2798 = vsub.s32 2, %v2797
    %v2799 = vrot.slane %v2786, %v2798
    %v2800 = vlaneseq
    %v2801 = vshrl.u32 %v2800, 7
    %v2802 = vsub.s32 3, %v2801
    %v2803 = vrot.slane %v2786, %v2802
    %v2804 = vlaneseq
    %v2805 = vshrl.u32 %v2804, 7
    %v2806 = vsub.s32 4, %v2805
    %v2807 = vrot.slane %v2786, %v2806
    %v2808 = vlaneseq
    %v2809 = vshrl.u32 %v2808, 7
    %v2810 = vsub.s32 5, %v2809
    %v2811 = vrot.slane %v2786, %v2810
    %v2812 = vlaneseq
    %v2813 = vshrl.u32 %v2812, 7
    %v2814 = vsub.s32 6, %v2813
    %v2815 = vrot.slane %v2786, %v2814
    %v2816 = vlaneseq
    %v2817 = vshrl.u32 %v2816, 7
    %v2818 = vsub.s32 7, %v2817
    %v2819 = vrot.slane %v2786, %v2818
    %v2828 = vmul.f32 %v1570, %v2791
    %v2829 = vmul.f32 %v1571, %v2795
    %v2830 = vmul.f32 %v1572, %v2799
    %v2831 = vmul.f32 %v1573, %v2803
    %v2832 = vmul.f32 %v1574, %v2807
    %v2833 = vmul.f32 %v1575, %v2811
    %v2834 = vmul.f32 %v1576, %v2815
    %v2835 = vmul.f32 %v1577, %v2819
    %v2836 = vmul.f32 %v1578, %v2791
    %v2837 = vmul.f32 %v1579, %v2795
    %v2838 = vmul.f32 %v1580, %v2799
    %v2839 = vmul.f32 %v1581, %v2803
    %v2840 = vmul.f32 %v1582, %v2807
    %v2841 = vmul.f32 %v1583, %v2811
    %v2842 = vmul.f32 %v1584, %v2815
    %v2843 = vmul.f32 %v1585, %v2819
    %v2844 = vmul.f32 %v2828, 1.442695
    %v2845 = vpow.pop %v2844
    %v2846 = vmul.f32 %v2829, 1.442695
    %v2847 = vpow.pop %v2846
    %v2848 = vmul.f32 %v2830, 1.442695
    %v2849 = vpow.pop %v2848
    %v2850 = vmul.f32 %v2831, 1.442695
    %v2851 = vpow.pop %v2850
    %v2852 = vmul.f32 %v2832, 1.442695
    %v2853 = vpow.pop %v2852
    %v2854 = vmul.f32 %v2833, 1.442695
    %v2855 = vpow.pop %v2854
    %v2856 = vmul.f32 %v2834, 1.442695
    %v2857 = vpow.pop %v2856
    %v2858 = vmul.f32 %v2835, 1.442695
    %v2859 = vpow.pop %v2858
    %v2860 = vmul.f32 %v2836, 1.442695
    %v2861 = vpow.pop %v2860
    %v2862 = vmul.f32 %v2837, 1.442695
    %v2863 = vpow.pop %v2862
    %v2864 = vmul.f32 %v2838, 1.442695
    %v2865 = vpow.pop %v2864
    %v2866 = vmul.f32 %v2839, 1.442695
    %v2867 = vpow.pop %v2866
    %v2868 = vmul.f32 %v2840, 1.442695
    %v2869 = vpow.pop %v2868
    %v2870 = vmul.f32 %v2841, 1.442695
    %v2871 = vpow.pop %v2870
    %v2872 = vmul.f32 %v2842, 1.442695
    %v2873 = vpow.pop %v2872
    %v2874 = vmul.f32 %v2843, 1.442695
    %v2875 = vpow.pop %v2874
    %v2876 = vmul.f32 %v1570, %v1759
    %v2877 = vmul.f32 %v1571, %v1761
    %v2878 = vmul.f32 %v1572, %v1836
    %v2879 = vmul.f32 %v1573, %v1838
    %v2880 = vmul.f32 %v1574, %v1913
    %v2881 = vmul.f32 %v1575, %v1915
    %v2882 = vmul.f32 %v1576, %v1990
    %v2883 = vmul.f32 %v1577, %v1992
    %v2884 = vmul.f32 %v1578, %v1765
    %v2885 = vmul.f32 %v1579, %v1767
    %v2886 = vmul.f32 %v1580, %v1842
    %v2887 = vmul.f32 %v1581, %v1844
    %v2888 = vmul.f32 %v1582, %v1919
    %v2889 = vmul.f32 %v1583, %v1921
    %v2890 = vmul.f32 %v1584, %v1996
    %v2891 = vmul.f32 %v1585, %v1998
    %v2892 = vmul.f32 %v2876, %v2545
    %v2893 = vmul.f32 %v2877, %v2547
    %v2894 = vmul.f32 %v2878, %v2622
    %v2895 = vmul.f32 %v2879, %v2624
    %v2896 = vmul.f32 %v2880, %v2699
    %v2897 = vmul.f32 %v2881, %v2701
    %v2898 = vmul.f32 %v2882, %v2776
    %v2899 = vmul.f32 %v2883, %v2778
    %v2900 = vmul.f32 %v2884, %v2551
    %v2901 = vmul.f32 %v2885, %v2553
    %v2902 = vmul.f32 %v2886, %v2628
    %v2903 = vmul.f32 %v2887, %v2630
    %v2904 = vmul.f32 %v2888, %v2705
    %v2905 = vmul.f32 %v2889, %v2707
    %v2906 = vmul.f32 %v2890, %v2782
    %v2907 = vmul.f32 %v2891, %v2784
    %v2908 = vld [vmem:[#allocation19] sm:$0xff]
    %v2909 = vld [vmem:[#allocation19 + $0x8] sm:$0xff]
    %v2911 = vsel %vm391, %v2908, 0
    %v2914 = vsel %vm391, %v2909, 0
    %2916 = vmatprep.subr.mxu0 %v2893
    %2917 = vmatpush1.msra.mxu0 %v2892
    %2918 = vmatprep.subr.mxu0 %v2901
    %2919 = vmatpush1.msra.mxu0 %v2900
    %2920 = vmatprep.subr.mxu0 0.0
    %2921 = vmatpush1.msra.mxu0 0.0
    %2922 = vmatprep.subr.mxu0 0.0
    %2923 = vmatpush1.msra.mxu0 0.0
    %2924 = vmatprep.subr.mxu0 0.0
    %2925 = vmatpush1.msra.mxu0 0.0
    %2926 = vmatprep.subr.mxu0 0.0
    %2927 = vmatpush1.msra.mxu0 0.0
    %2928 = vmatprep.subr.mxu0 0.0
    %2929 = vmatpush1.msra.mxu0 0.0
    %2930 = vmatprep.subr.mxu0 0.0
    %2931 = vmatpush1.msra.mxu0 0.0
    %2932 = vmatprep.subr.mxu0 0.0
    %2933 = vmatpush1.msra.mxu0 0.0
    %2934 = vmatprep.subr.mxu0 0.0
    %2935 = vmatpush1.msra.mxu0 0.0
    %2936 = vmatprep.subr.mxu0 0.0
    %2937 = vmatpush1.msra.mxu0 0.0
    %2938 = vmatprep.subr.mxu0 0.0
    %2939 = vmatpush1.msra.mxu0 0.0
    %2940 = vmatprep.subr.mxu0 0.0
    %2941 = vmatpush1.msra.mxu0 0.0
    %2942 = vmatprep.subr.mxu0 0.0
    %2943 = vmatpush1.msra.mxu0 0.0
    %2944 = vmatprep.subr.mxu0 0.0
    %2945 = vmatpush1.msra.mxu0 0.0
    %2946 = vmatprep.subr.mxu0 0.0
    %2947 = vmatpush1.msra.mxu0 0.0
    %2948 = vmatprep.subr.mxu0 0.0
    %2949 = vmatpush1.msra.mxu0 0.0
    %2950 = vmatprep.subr.mxu0 0.0
    %2951 = vmatpush1.msra.mxu0 0.0
    %2952 = vmatprep.subr.mxu0 0.0
    %2953 = vmatpush1.msra.mxu0 0.0
    %2954 = vmatprep.subr.mxu0 0.0
    %2955 = vmatpush1.msra.mxu0 0.0
    %2956 = vmatprep.subr.mxu0 0.0
    %2957 = vmatpush1.msra.mxu0 0.0
    %2958 = vmatprep.subr.mxu0 0.0
    %2959 = vmatpush1.msra.mxu0 0.0
    %2960 = vmatprep.subr.mxu0 0.0
    %2961 = vmatpush1.msra.mxu0 0.0
    %2962 = vmatprep.subr.mxu0 0.0
    %2963 = vmatpush1.msra.mxu0 0.0
    %2964 = vmatprep.subr.mxu0 0.0
    %2965 = vmatpush1.msra.mxu0 0.0
    %2966 = vmatprep.subr.mxu0 0.0
    %2967 = vmatpush1.msra.mxu0 0.0
    %2968 = vmatprep.subr.mxu0 0.0
    %2969 = vmatpush1.msra.mxu0 0.0
    %2970 = vmatprep.subr.mxu0 0.0
    %2971 = vmatpush1.msra.mxu0 0.0
    %2972 = vmatprep.subr.mxu0 0.0
    %2973 = vmatpush1.msra.mxu0 0.0
    %2974 = vmatprep.subr.mxu0 0.0
    %2975 = vmatpush1.msra.mxu0 0.0
    %2976 = vmatprep.subr.mxu0 0.0
    %2977 = vmatpush1.msra.mxu0 0.0
    %2978 = vmatprep.subr.mxu0 0.0
    %2979 = vmatpush1.msra.mxu0 0.0
    %2980 = vmatprep.mubr.f32.mxu0 0.0
    %2981 = vmatmul.mubr.f32.gmra.mrb[0].mxu0 %v2911
    %v2982 = vpop.f32.mrb[0].mxu0
    %v2983 = vadd.f32 0.0, %v2982
    %v2984 = vpop.f32.mrb[0].mxu0
    %v2985 = vadd.f32 0.0, %v2984
    %2986 = vmatprep.mubr.f32.mxu0 0.0
    %2987 = vmatmul.mubr.f32.gmra.mrb[0].mxu0 %v2914
    %v2988 = vpop.f32.mrb[0].mxu0
    %v2989 = vadd.f32 0.0, %v2988
    %v2990 = vpop.f32.mrb[0].mxu0
    %v2991 = vadd.f32 0.0, %v2990
    %2992 = vdwg.mxu0
    %2993 = vmatprep.subr.mxu0 %v2895
    %2994 = vmatpush1.msra.mxu0 %v2894
    %2995 = vmatprep.subr.mxu0 %v2903
    %2996 = vmatpush1.msra.mxu0 %v2902
    %2997 = vmatprep.subr.mxu0 0.0
    %2998 = vmatpush1.msra.mxu0 0.0
    %2999 = vmatprep.subr.mxu0 0.0
    %3000 = vmatpush1.msra.mxu0 0.0
    %3001 = vmatprep.subr.mxu0 0.0
    %3002 = vmatpush1.msra.mxu0 0.0
    %3003 = vmatprep.subr.mxu0 0.0
    %3004 = vmatpush1.msra.mxu0 0.0
    %3005 = vmatprep.subr.mxu0 0.0
    %3006 = vmatpush1.msra.mxu0 0.0
    %3007 = vmatprep.subr.mxu0 0.0
    %3008 = vmatpush1.msra.mxu0 0.0
    %3009 = vmatprep.subr.mxu0 0.0
    %3010 = vmatpush1.msra.mxu0 0.0
    %3011 = vmatprep.subr.mxu0 0.0
    %3012 = vmatpush1.msra.mxu0 0.0
    %3013 = vmatprep.subr.mxu0 0.0
    %3014 = vmatpush1.msra.mxu0 0.0
    %3015 = vmatprep.subr.mxu0 0.0
    %3016 = vmatpush1.msra.mxu0 0.0
    %3017 = vmatprep.subr.mxu0 0.0
    %3018 = vmatpush1.msra.mxu0 0.0
    %3019 = vmatprep.subr.mxu0 0.0
    %3020 = vmatpush1.msra.mxu0 0.0
    %3021 = vmatprep.subr.mxu0 0.0
    %3022 = vmatpush1.msra.mxu0 0.0
    %3023 = vmatprep.subr.mxu0 0.0
    %3024 = vmatpush1.msra.mxu0 0.0
    %3025 = vmatprep.subr.mxu0 0.0
    %3026 = vmatpush1.msra.mxu0 0.0
    %3027 = vmatprep.subr.mxu0 0.0
    %3028 = vmatpush1.msra.mxu0 0.0
    %3029 = vmatprep.subr.mxu0 0.0
    %3030 = vmatpush1.msra.mxu0 0.0
    %3031 = vmatprep.subr.mxu0 0.0
    %3032 = vmatpush1.msra.mxu0 0.0
    %3033 = vmatprep.subr.mxu0 0.0
    %3034 = vmatpush1.msra.mxu0 0.0
    %3035 = vmatprep.subr.mxu0 0.0
    %3036 = vmatpush1.msra.mxu0 0.0
    %3037 = vmatprep.subr.mxu0 0.0
    %3038 = vmatpush1.msra.mxu0 0.0
    %3039 = vmatprep.subr.mxu0 0.0
    %3040 = vmatpush1.msra.mxu0 0.0
    %3041 = vmatprep.subr.mxu0 0.0
    %3042 = vmatpush1.msra.mxu0 0.0
    %3043 = vmatprep.subr.mxu0 0.0
    %3044 = vmatpush1.msra.mxu0 0.0
    %3045 = vmatprep.subr.mxu0 0.0
    %3046 = vmatpush1.msra.mxu0 0.0
    %3047 = vmatprep.subr.mxu0 0.0
    %3048 = vmatpush1.msra.mxu0 0.0
    %3049 = vmatprep.subr.mxu0 0.0
    %3050 = vmatpush1.msra.mxu0 0.0
    %3051 = vmatprep.subr.mxu0 0.0
    %3052 = vmatpush1.msra.mxu0 0.0
    %3053 = vmatprep.subr.mxu0 0.0
    %3054 = vmatpush1.msra.mxu0 0.0
    %3055 = vmatprep.subr.mxu0 0.0
    %3056 = vmatpush1.msra.mxu0 0.0
    %3057 = vmatprep.mubr.f32.mxu0 0.0
    %3058 = vmatmul.mubr.f32.gmra.mrb[0].mxu0 %v2911
    %v3059 = vpop.f32.mrb[0].mxu0
    %v3060 = vadd.f32 0.0, %v3059
    %v3061 = vpop.f32.mrb[0].mxu0
    %v3062 = vadd.f32 0.0, %v3061
    %3063 = vmatprep.mubr.f32.mxu0 0.0
    %3064 = vmatmul.mubr.f32.gmra.mrb[0].mxu0 %v2914
    %v3065 = vpop.f32.mrb[0].mxu0
    %v3066 = vadd.f32 0.0, %v3065
    %v3067 = vpop.f32.mrb[0].mxu0
    %v3068 = vadd.f32 0.0, %v3067
    %3069 = vdwg.mxu0
    %3070 = vmatprep.subr.mxu0 %v2897
    %3071 = vmatpush1.msra.mxu0 %v2896
    %3072 = vmatprep.subr.mxu0 %v2905
    %3073 = vmatpush1.msra.mxu0 %v2904
    %3074 = vmatprep.subr.mxu0 0.0
    %3075 = vmatpush1.msra.mxu0 0.0
    %3076 = vmatprep.subr.mxu0 0.0
    %3077 = vmatpush1.msra.mxu0 0.0
    %3078 = vmatprep.subr.mxu0 0.0
    %3079 = vmatpush1.msra.mxu0 0.0
    %3080 = vmatprep.subr.mxu0 0.0
    %3081 = vmatpush1.msra.mxu0 0.0
    %3082 = vmatprep.subr.mxu0 0.0
    %3083 = vmatpush1.msra.mxu0 0.0
    %3084 = vmatprep.subr.mxu0 0.0
    %3085 = vmatpush1.msra.mxu0 0.0
    %3086 = vmatprep.subr.mxu0 0.0
    %3087 = vmatpush1.msra.mxu0 0.0
    %3088 = vmatprep.subr.mxu0 0.0
    %3089 = vmatpush1.msra.mxu0 0.0
    %3090 = vmatprep.subr.mxu0 0.0
    %3091 = vmatpush1.msra.mxu0 0.0
    %3092 = vmatprep.subr.mxu0 0.0
    %3093 = vmatpush1.msra.mxu0 0.0
    %3094 = vmatprep.subr.mxu0 0.0
    %3095 = vmatpush1.msra.mxu0 0.0
    %3096 = vmatprep.subr.mxu0 0.0
    %3097 = vmatpush1.msra.mxu0 0.0
    %3098 = vmatprep.subr.mxu0 0.0
    %3099 = vmatpush1.msra.mxu0 0.0
    %3100 = vmatprep.subr.mxu0 0.0
    %3101 = vmatpush1.msra.mxu0 0.0
    %3102 = vmatprep.subr.mxu0 0.0
    %3103 = vmatpush1.msra.mxu0 0.0
    %3104 = vmatprep.subr.mxu0 0.0
    %3105 = vmatpush1.msra.mxu0 0.0
    %3106 = vmatprep.subr.mxu0 0.0
    %3107 = vmatpush1.msra.mxu0 0.0
    %3108 = vmatprep.subr.mxu0 0.0
    %3109 = vmatpush1.msra.mxu0 0.0
    %3110 = vmatprep.subr.mxu0 0.0
    %3111 = vmatpush1.msra.mxu0 0.0
    %3112 = vmatprep.subr.mxu0 0.0
    %3113 = vmatpush1.msra.mxu0 0.0
    %3114 = vmatprep.subr.mxu0 0.0
    %3115 = vmatpush1.msra.mxu0 0.0
    %3116 = vmatprep.subr.mxu0 0.0
    %3117 = vmatpush1.msra.mxu0 0.0
    %3118 = vmatprep.subr.mxu0 0.0
    %3119 = vmatpush1.msra.mxu0 0.0
    %3120 = vmatprep.subr.mxu0 0.0
    %3121 = vmatpush1.msra.mxu0 0.0
    %3122 = vmatprep.subr.mxu0 0.0
    %3123 = vmatpush1.msra.mxu0 0.0
    %3124 = vmatprep.subr.mxu0 0.0
    %3125 = vmatpush1.msra.mxu0 0.0
    %3126 = vmatprep.subr.mxu0 0.0
    %3127 = vmatpush1.msra.mxu0 0.0
    %3128 = vmatprep.subr.mxu0 0.0
    %3129 = vmatpush1.msra.mxu0 0.0
    %3130 = vmatprep.subr.mxu0 0.0
    %3131 = vmatpush1.msra.mxu0 0.0
    %3132 = vmatprep.subr.mxu0 0.0
    %3133 = vmatpush1.msra.mxu0 0.0
    %3134 = vmatprep.mubr.f32.mxu0 0.0
    %3135 = vmatmul.mubr.f32.gmra.mrb[0].mxu0 %v2911
    %v3136 = vpop.f32.mrb[0].mxu0
    %v3137 = vadd.f32 0.0, %v3136
    %v3138 = vpop.f32.mrb[0].mxu0
    %v3139 = vadd.f32 0.0, %v3138
    %3140 = vmatprep.mubr.f32.mxu0 0.0
    %3141 = vmatmul.mubr.f32.gmra.mrb[0].mxu0 %v2914
    %v3142 = vpop.f32.mrb[0].mxu0
    %v3143 = vadd.f32 0.0, %v3142
    %v3144 = vpop.f32.mrb[0].mxu0
    %v3145 = vadd.f32 0.0, %v3144
    %3146 = vdwg.mxu0
    %3147 = vmatprep.subr.mxu0 %v2899
    %3148 = vmatpush1.msra.mxu0 %v2898
    %3149 = vmatprep.subr.mxu0 %v2907
    %3150 = vmatpush1.msra.mxu0 %v2906
    %3151 = vmatprep.subr.mxu0 0.0
    %3152 = vmatpush1.msra.mxu0 0.0
    %3153 = vmatprep.subr.mxu0 0.0
    %3154 = vmatpush1.msra.mxu0 0.0
    %3155 = vmatprep.subr.mxu0 0.0
    %3156 = vmatpush1.msra.mxu0 0.0
    %3157 = vmatprep.subr.mxu0 0.0
    %3158 = vmatpush1.msra.mxu0 0.0
    %3159 = vmatprep.subr.mxu0 0.0
    %3160 = vmatpush1.msra.mxu0 0.0
    %3161 = vmatprep.subr.mxu0 0.0
    %3162 = vmatpush1.msra.mxu0 0.0
    %3163 = vmatprep.subr.mxu0 0.0
    %3164 = vmatpush1.msra.mxu0 0.0
    %3165 = vmatprep.subr.mxu0 0.0
    %3166 = vmatpush1.msra.mxu0 0.0
    %3167 = vmatprep.subr.mxu0 0.0
    %3168 = vmatpush1.msra.mxu0 0.0
    %3169 = vmatprep.subr.mxu0 0.0
    %3170 = vmatpush1.msra.mxu0 0.0
    %3171 = vmatprep.subr.mxu0 0.0
    %3172 = vmatpush1.msra.mxu0 0.0
    %3173 = vmatprep.subr.mxu0 0.0
    %3174 = vmatpush1.msra.mxu0 0.0
    %3175 = vmatprep.subr.mxu0 0.0
    %3176 = vmatpush1.msra.mxu0 0.0
    %3177 = vmatprep.subr.mxu0 0.0
    %3178 = vmatpush1.msra.mxu0 0.0
    %3179 = vmatprep.subr.mxu0 0.0
    %3180 = vmatpush1.msra.mxu0 0.0
    %3181 = vmatprep.subr.mxu0 0.0
    %3182 = vmatpush1.msra.mxu0 0.0
    %3183 = vmatprep.subr.mxu0 0.0
    %3184 = vmatpush1.msra.mxu0 0.0
    %3185 = vmatprep.subr.mxu0 0.0
    %3186 = vmatpush1.msra.mxu0 0.0
    %3187 = vmatprep.subr.mxu0 0.0
    %3188 = vmatpush1.msra.mxu0 0.0
    %3189 = vmatprep.subr.mxu0 0.0
    %3190 = vmatpush1.msra.mxu0 0.0
    %3191 = vmatprep.subr.mxu0 0.0
    %3192 = vmatpush1.msra.mxu0 0.0
    %3193 = vmatprep.subr.mxu0 0.0
    %3194 = vmatpush1.msra.mxu0 0.0
    %3195 = vmatprep.subr.mxu0 0.0
    %3196 = vmatpush1.msra.mxu0 0.0
    %3197 = vmatprep.subr.mxu0 0.0
    %3198 = vmatpush1.msra.mxu0 0.0
    %3199 = vmatprep.subr.mxu0 0.0
    %3200 = vmatpush1.msra.mxu0 0.0
    %3201 = vmatprep.subr.mxu0 0.0
    %3202 = vmatpush1.msra.mxu0 0.0
    %3203 = vmatprep.subr.mxu0 0.0
    %3204 = vmatpush1.msra.mxu0 0.0
    %3205 = vmatprep.subr.mxu0 0.0
    %3206 = vmatpush1.msra.mxu0 0.0
    %3207 = vmatprep.subr.mxu0 0.0
    %3208 = vmatpush1.msra.mxu0 0.0
    %3209 = vmatprep.subr.mxu0 0.0
    %3210 = vmatpush1.msra.mxu0 0.0
    %3211 = vmatprep.mubr.f32.mxu0 0.0
    %3212 = vmatmul.mubr.f32.gmra.mrb[0].mxu0 %v2911
    %v3213 = vpop.f32.mrb[0].mxu0
    %v3214 = vadd.f32 0.0, %v3213
    %v3215 = vpop.f32.mrb[0].mxu0
    %v3216 = vadd.f32 0.0, %v3215
    %3217 = vmatprep.mubr.f32.mxu0 0.0
    %3218 = vmatmul.mubr.f32.gmra.mrb[0].mxu0 %v2914
    %v3219 = vpop.f32.mrb[0].mxu0
    %v3220 = vadd.f32 0.0, %v3219
    %v3221 = vpop.f32.mrb[0].mxu0
    %v3222 = vadd.f32 0.0, %v3221
    %3223 = vdwg.mxu0
    %v3224 = vld [vmem:[%s18] sm:$0xff]
    %v3225 = vld [vmem:[%s18 + $0x8] sm:$0xff]
    %3227 = vset.pattern.permute.xlu0 0
    %3228 = vperm.xlu0 %3227, %v3224
    %v3229 = vpop.permute.xlu0 %3228
    %3232 = vset.pattern.permute.xlu0 0
    %3233 = vperm.xlu0 %3232, %v3225
    %v3234 = vpop.permute.xlu0 %3233
    %3236 = vmatprep.subr.mxu0 %v2847
    %3237 = vmatpush1.msra.mxu0 %v2845
    %3238 = vmatprep.subr.mxu0 %v2863
    %3239 = vmatpush1.msra.mxu0 %v2861
    %3240 = vmatprep.subr.mxu0 0.0
    %3241 = vmatpush1.msra.mxu0 0.0
    %3242 = vmatprep.subr.mxu0 0.0
    %3243 = vmatpush1.msra.mxu0 0.0
    %3244 = vmatprep.subr.mxu0 0.0
    %3245 = vmatpush1.msra.mxu0 0.0
    %3246 = vmatprep.subr.mxu0 0.0
    %3247 = vmatpush1.msra.mxu0 0.0
    %3248 = vmatprep.subr.mxu0 0.0
    %3249 = vmatpush1.msra.mxu0 0.0
    %3250 = vmatprep.subr.mxu0 0.0
    %3251 = vmatpush1.msra.mxu0 0.0
    %3252 = vmatprep.subr.mxu0 0.0
    %3253 = vmatpush1.msra.mxu0 0.0
    %3254 = vmatprep.subr.mxu0 0.0
    %3255 = vmatpush1.msra.mxu0 0.0
    %3256 = vmatprep.subr.mxu0 0.0
    %3257 = vmatpush1.msra.mxu0 0.0
    %3258 = vmatprep.subr.mxu0 0.0
    %3259 = vmatpush1.msra.mxu0 0.0
    %3260 = vmatprep.subr.mxu0 0.0
    %3261 = vmatpush1.msra.mxu0 0.0
    %3262 = vmatprep.subr.mxu0 0.0
    %3263 = vmatpush1.msra.mxu0 0.0
    %3264 = vmatprep.subr.mxu0 0.0
    %3265 = vmatpush1.msra.mxu0 0.0
    %3266 = vmatprep.subr.mxu0 0.0
    %3267 = vmatpush1.msra.mxu0 0.0
    %3268 = vmatprep.subr.mxu0 0.0
    %3269 = vmatpush1.msra.mxu0 0.0
    %3270 = vmatprep.subr.mxu0 0.0
    %3271 = vmatpush1.msra.mxu0 0.0
    %3272 = vmatprep.subr.mxu0 0.0
    %3273 = vmatpush1.msra.mxu0 0.0
    %3274 = vmatprep.subr.mxu0 0.0
    %3275 = vmatpush1.msra.mxu0 0.0
    %3276 = vmatprep.subr.mxu0 0.0
    %3277 = vmatpush1.msra.mxu0 0.0
    %3278 = vmatprep.subr.mxu0 0.0
    %3279 = vmatpush1.msra.mxu0 0.0
    %3280 = vmatprep.subr.mxu0 0.0
    %3281 = vmatpush1.msra.mxu0 0.0
    %3282 = vmatprep.subr.mxu0 0.0
    %3283 = vmatpush1.msra.mxu0 0.0
    %3284 = vmatprep.subr.mxu0 0.0
    %3285 = vmatpush1.msra.mxu0 0.0
    %3286 = vmatprep.subr.mxu0 0.0
    %3287 = vmatpush1.msra.mxu0 0.0
    %3288 = vmatprep.subr.mxu0 0.0
    %3289 = vmatpush1.msra.mxu0 0.0
    %3290 = vmatprep.subr.mxu0 0.0
    %3291 = vmatpush1.msra.mxu0 0.0
    %3292 = vmatprep.subr.mxu0 0.0
    %3293 = vmatpush1.msra.mxu0 0.0
    %3294 = vmatprep.subr.mxu0 0.0
    %3295 = vmatpush1.msra.mxu0 0.0
    %3296 = vmatprep.subr.mxu0 0.0
    %3297 = vmatpush1.msra.mxu0 0.0
    %3298 = vmatprep.subr.mxu0 0.0
    %3299 = vmatpush1.msra.mxu0 0.0
    %3300 = vmatprep.mubr.f32.mxu0 0.0
    %3301 = vmatmul.mubr.f32.gmra.mrb[0].mxu0 %v2911
    %v3302 = vpop.f32.mrb[0].mxu0
    %v3303 = vadd.f32 %v3229, %v3302
    %v3304 = vpop.f32.mrb[0].mxu0
    %v3305 = vadd.f32 %v3229, %v3304
    %3306 = vmatprep.mubr.f32.mxu0 0.0
    %3307 = vmatmul.mubr.f32.gmra.mrb[0].mxu0 %v2914
    %v3308 = vpop.f32.mrb[0].mxu0
    %v3309 = vadd.f32 %v3234, %v3308
    %v3310 = vpop.f32.mrb[0].mxu0
    %v3311 = vadd.f32 %v3234, %v3310
    %3312 = vdwg.mxu0
    %3313 = vmatprep.subr.mxu0 %v2851
    %3314 = vmatpush1.msra.mxu0 %v2849
    %3315 = vmatprep.subr.mxu0 %v2867
    %3316 = vmatpush1.msra.mxu0 %v2865
    %3317 = vmatprep.subr.mxu0 0.0
    %3318 = vmatpush1.msra.mxu0 0.0
    %3319 = vmatprep.subr.mxu0 0.0
    %3320 = vmatpush1.msra.mxu0 0.0
    %3321 = vmatprep.subr.mxu0 0.0
    %3322 = vmatpush1.msra.mxu0 0.0
    %3323 = vmatprep.subr.mxu0 0.0
    %3324 = vmatpush1.msra.mxu0 0.0
    %3325 = vmatprep.subr.mxu0 0.0
    %3326 = vmatpush1.msra.mxu0 0.0
    %3327 = vmatprep.subr.mxu0 0.0
    %3328 = vmatpush1.msra.mxu0 0.0
    %3329 = vmatprep.subr.mxu0 0.0
    %3330 = vmatpush1.msra.mxu0 0.0
    %3331 = vmatprep.subr.mxu0 0.0
    %3332 = vmatpush1.msra.mxu0 0.0
    %3333 = vmatprep.subr.mxu0 0.0
    %3334 = vmatpush1.msra.mxu0 0.0
    %3335 = vmatprep.subr.mxu0 0.0
    %3336 = vmatpush1.msra.mxu0 0.0
    %3337 = vmatprep.subr.mxu0 0.0
    %3338 = vmatpush1.msra.mxu0 0.0
    %3339 = vmatprep.subr.mxu0 0.0
    %3340 = vmatpush1.msra.mxu0 0.0
    %3341 = vmatprep.subr.mxu0 0.0
    %3342 = vmatpush1.msra.mxu0 0.0
    %3343 = vmatprep.subr.mxu0 0.0
    %3344 = vmatpush1.msra.mxu0 0.0
    %3345 = vmatprep.subr.mxu0 0.0
    %3346 = vmatpush1.msra.mxu0 0.0
    %3347 = vmatprep.subr.mxu0 0.0
    %3348 = vmatpush1.msra.mxu0 0.0
    %3349 = vmatprep.subr.mxu0 0.0
    %3350 = vmatpush1.msra.mxu0 0.0
    %3351 = vmatprep.subr.mxu0 0.0
    %3352 = vmatpush1.msra.mxu0 0.0
    %3353 = vmatprep.subr.mxu0 0.0
    %3354 = vmatpush1.msra.mxu0 0.0
    %3355 = vmatprep.subr.mxu0 0.0
    %3356 = vmatpush1.msra.mxu0 0.0
    %3357 = vmatprep.subr.mxu0 0.0
    %3358 = vmatpush1.msra.mxu0 0.0
    %3359 = vmatprep.subr.mxu0 0.0
    %3360 = vmatpush1.msra.mxu0 0.0
    %3361 = vmatprep.subr.mxu0 0.0
    %3362 = vmatpush1.msra.mxu0 0.0
    %3363 = vmatprep.subr.mxu0 0.0
    %3364 = vmatpush1.msra.mxu0 0.0
    %3365 = vmatprep.subr.mxu0 0.0
    %3366 = vmatpush1.msra.mxu0 0.0
    %3367 = vmatprep.subr.mxu0 0.0
    %3368 = vmatpush1.msra.mxu0 0.0
    %3369 = vmatprep.subr.mxu0 0.0
    %3370 = vmatpush1.msra.mxu0 0.0
    %3371 = vmatprep.subr.mxu0 0.0
    %3372 = vmatpush1.msra.mxu0 0.0
    %3373 = vmatprep.subr.mxu0 0.0
    %3374 = vmatpush1.msra.mxu0 0.0
    %3375 = vmatprep.subr.mxu0 0.0
    %3376 = vmatpush1.msra.mxu0 0.0
    %3377 = vmatprep.mubr.f32.mxu0 0.0
    %3378 = vmatmul.mubr.f32.gmra.mrb[0].mxu0 %v2911
    %v3379 = vpop.f32.mrb[0].mxu0
    %v3380 = vadd.f32 %v3229, %v3379
    %v3381 = vpop.f32.mrb[0].mxu0
    %v3382 = vadd.f32 %v3229, %v3381
    %3383 = vmatprep.mubr.f32.mxu0 0.0
    %3384 = vmatmul.mubr.f32.gmra.mrb[0].mxu0 %v2914
    %v3385 = vpop.f32.mrb[0].mxu0
    %v3386 = vadd.f32 %v3234, %v3385
    %v3387 = vpop.f32.mrb[0].mxu0
    %v3388 = vadd.f32 %v3234, %v3387
    %3389 = vdwg.mxu0
    %3390 = vmatprep.subr.mxu0 %v2855
    %3391 = vmatpush1.msra.mxu0 %v2853
    %3392 = vmatprep.subr.mxu0 %v2871
    %3393 = vmatpush1.msra.mxu0 %v2869
    %3394 = vmatprep.subr.mxu0 0.0
    %3395 = vmatpush1.msra.mxu0 0.0
    %3396 = vmatprep.subr.mxu0 0.0
    %3397 = vmatpush1.msra.mxu0 0.0
    %3398 = vmatprep.subr.mxu0 0.0
    %3399 = vmatpush1.msra.mxu0 0.0
    %3400 = vmatprep.subr.mxu0 0.0
    %3401 = vmatpush1.msra.mxu0 0.0
    %3402 = vmatprep.subr.mxu0 0.0
    %3403 = vmatpush1.msra.mxu0 0.0
    %3404 = vmatprep.subr.mxu0 0.0
    %3405 = vmatpush1.msra.mxu0 0.0
    %3406 = vmatprep.subr.mxu0 0.0
    %3407 = vmatpush1.msra.mxu0 0.0
    %3408 = vmatprep.subr.mxu0 0.0
    %3409 = vmatpush1.msra.mxu0 0.0
    %3410 = vmatprep.subr.mxu0 0.0
    %3411 = vmatpush1.msra.mxu0 0.0
    %3412 = vmatprep.subr.mxu0 0.0
    %3413 = vmatpush1.msra.mxu0 0.0
    %3414 = vmatprep.subr.mxu0 0.0
    %3415 = vmatpush1.msra.mxu0 0.0
    %3416 = vmatprep.subr.mxu0 0.0
    %3417 = vmatpush1.msra.mxu0 0.0
    %3418 = vmatprep.subr.mxu0 0.0
    %3419 = vmatpush1.msra.mxu0 0.0
    %3420 = vmatprep.subr.mxu0 0.0
    %3421 = vmatpush1.msra.mxu0 0.0
    %3422 = vmatprep.subr.mxu0 0.0
    %3423 = vmatpush1.msra.mxu0 0.0
    %3424 = vmatprep.subr.mxu0 0.0
    %3425 = vmatpush1.msra.mxu0 0.0
    %3426 = vmatprep.subr.mxu0 0.0
    %3427 = vmatpush1.msra.mxu0 0.0
    %3428 = vmatprep.subr.mxu0 0.0
    %3429 = vmatpush1.msra.mxu0 0.0
    %3430 = vmatprep.subr.mxu0 0.0
    %3431 = vmatpush1.msra.mxu0 0.0
    %3432 = vmatprep.subr.mxu0 0.0
    %3433 = vmatpush1.msra.mxu0 0.0
    %3434 = vmatprep.subr.mxu0 0.0
    %3435 = vmatpush1.msra.mxu0 0.0
    %3436 = vmatprep.subr.mxu0 0.0
    %3437 = vmatpush1.msra.mxu0 0.0
    %3438 = vmatprep.subr.mxu0 0.0
    %3439 = vmatpush1.msra.mxu0 0.0
    %3440 = vmatprep.subr.mxu0 0.0
    %3441 = vmatpush1.msra.mxu0 0.0
    %3442 = vmatprep.subr.mxu0 0.0
    %3443 = vmatpush1.msra.mxu0 0.0
    %3444 = vmatprep.subr.mxu0 0.0
    %3445 = vmatpush1.msra.mxu0 0.0
    %3446 = vmatprep.subr.mxu0 0.0
    %3447 = vmatpush1.msra.mxu0 0.0
    %3448 = vmatprep.subr.mxu0 0.0
    %3449 = vmatpush1.msra.mxu0 0.0
    %3450 = vmatprep.subr.mxu0 0.0
    %3451 = vmatpush1.msra.mxu0 0.0
    %3452 = vmatprep.subr.mxu0 0.0
    %3453 = vmatpush1.msra.mxu0 0.0
    %3454 = vmatprep.mubr.f32.mxu0 0.0
    %3455 = vmatmul.mubr.f32.gmra.mrb[0].mxu0 %v2911
    %v3456 = vpop.f32.mrb[0].mxu0
    %v3457 = vadd.f32 %v3229, %v3456
    %v3458 = vpop.f32.mrb[0].mxu0
    %v3459 = vadd.f32 %v3229, %v3458
    %3460 = vmatprep.mubr.f32.mxu0 0.0
    %3461 = vmatmul.mubr.f32.gmra.mrb[0].mxu0 %v2914
    %v3462 = vpop.f32.mrb[0].mxu0
    %v3463 = vadd.f32 %v3234, %v3462
    %v3464 = vpop.f32.mrb[0].mxu0
    %v3465 = vadd.f32 %v3234, %v3464
    %3466 = vdwg.mxu0
    %3467 = vmatprep.subr.mxu0 %v2859
    %3468 = vmatpush1.msra.mxu0 %v2857
    %3469 = vmatprep.subr.mxu0 %v2875
    %3470 = vmatpush1.msra.mxu0 %v2873
    %3471 = vmatprep.subr.mxu0 0.0
    %3472 = vmatpush1.msra.mxu0 0.0
    %3473 = vmatprep.subr.mxu0 0.0
    %3474 = vmatpush1.msra.mxu0 0.0
    %3475 = vmatprep.subr.mxu0 0.0
    %3476 = vmatpush1.msra.mxu0 0.0
    %3477 = vmatprep.subr.mxu0 0.0
    %3478 = vmatpush1.msra.mxu0 0.0
    %3479 = vmatprep.subr.mxu0 0.0
    %3480 = vmatpush1.msra.mxu0 0.0
    %3481 = vmatprep.subr.mxu0 0.0
    %3482 = vmatpush1.msra.mxu0 0.0
    %3483 = vmatprep.subr.mxu0 0.0
    %3484 = vmatpush1.msra.mxu0 0.0
    %3485 = vmatprep.subr.mxu0 0.0
    %3486 = vmatpush1.msra.mxu0 0.0
    %3487 = vmatprep.subr.mxu0 0.0
    %3488 = vmatpush1.msra.mxu0 0.0
    %3489 = vmatprep.subr.mxu0 0.0
    %3490 = vmatpush1.msra.mxu0 0.0
    %3491 = vmatprep.subr.mxu0 0.0
    %3492 = vmatpush1.msra.mxu0 0.0
    %3493 = vmatprep.subr.mxu0 0.0
    %3494 = vmatpush1.msra.mxu0 0.0
    %3495 = vmatprep.subr.mxu0 0.0
    %3496 = vmatpush1.msra.mxu0 0.0
    %3497 = vmatprep.subr.mxu0 0.0
    %3498 = vmatpush1.msra.mxu0 0.0
    %3499 = vmatprep.subr.mxu0 0.0
    %3500 = vmatpush1.msra.mxu0 0.0
    %3501 = vmatprep.subr.mxu0 0.0
    %3502 = vmatpush1.msra.mxu0 0.0
    %3503 = vmatprep.subr.mxu0 0.0
    %3504 = vmatpush1.msra.mxu0 0.0
    %3505 = vmatprep.subr.mxu0 0.0
    %3506 = vmatpush1.msra.mxu0 0.0
    %3507 = vmatprep.subr.mxu0 0.0
    %3508 = vmatpush1.msra.mxu0 0.0
    %3509 = vmatprep.subr.mxu0 0.0
    %3510 = vmatpush1.msra.mxu0 0.0
    %3511 = vmatprep.subr.mxu0 0.0
    %3512 = vmatpush1.msra.mxu0 0.0
    %3513 = vmatprep.subr.mxu0 0.0
    %3514 = vmatpush1.msra.mxu0 0.0
    %3515 = vmatprep.subr.mxu0 0.0
    %3516 = vmatpush1.msra.mxu0 0.0
    %3517 = vmatprep.subr.mxu0 0.0
    %3518 = vmatpush1.msra.mxu0 0.0
    %3519 = vmatprep.subr.mxu0 0.0
    %3520 = vmatpush1.msra.mxu0 0.0
    %3521 = vmatprep.subr.mxu0 0.0
    %3522 = vmatpush1.msra.mxu0 0.0
    %3523 = vmatprep.subr.mxu0 0.0
    %3524 = vmatpush1.msra.mxu0 0.0
    %3525 = vmatprep.subr.mxu0 0.0
    %3526 = vmatpush1.msra.mxu0 0.0
    %3527 = vmatprep.subr.mxu0 0.0
    %3528 = vmatpush1.msra.mxu0 0.0
    %3529 = vmatprep.subr.mxu0 0.0
    %3530 = vmatpush1.msra.mxu0 0.0
    %3531 = vmatprep.mubr.f32.mxu0 0.0
    %3532 = vmatmul.mubr.f32.gmra.mrb[0].mxu0 %v2911
    %v3533 = vpop.f32.mrb[0].mxu0
    %v3534 = vadd.f32 %v3229, %v3533
    %v3535 = vpop.f32.mrb[0].mxu0
    %v3536 = vadd.f32 %v3229, %v3535
    %3537 = vmatprep.mubr.f32.mxu0 0.0
    %3538 = vmatmul.mubr.f32.gmra.mrb[0].mxu0 %v2914
    %v3539 = vpop.f32.mrb[0].mxu0
    %v3540 = vadd.f32 %v3234, %v3539
    %v3541 = vpop.f32.mrb[0].mxu0
    %v3542 = vadd.f32 %v3234, %v3541
    %3543 = vdwg.mxu0
    %v3544 = vmul.f32 %v2845, %v2983
    %v3545 = vmul.f32 %v2847, %v2985
    %v3546 = vmul.f32 %v2849, %v3060
    %v3547 = vmul.f32 %v2851, %v3062
    %v3548 = vmul.f32 %v2853, %v3137
    %v3549 = vmul.f32 %v2855, %v3139
    %v3550 = vmul.f32 %v2857, %v3214
    %v3551 = vmul.f32 %v2859, %v3216
    %v3552 = vmul.f32 %v2861, %v2989
    %v3553 = vmul.f32 %v2863, %v2991
    %v3554 = vmul.f32 %v2865, %v3066
    %v3555 = vmul.f32 %v2867, %v3068
    %v3556 = vmul.f32 %v2869, %v3143
    %v3557 = vmul.f32 %v2871, %v3145
    %v3558 = vmul.f32 %v2873, %v3220
    %v3559 = vmul.f32 %v2875, %v3222
    %v3560 = vadd.f32 %v3544, %v2892
    %v3561 = vadd.f32 %v3545, %v2893
    %v3562 = vadd.f32 %v3546, %v2894
    %v3563 = vadd.f32 %v3547, %v2895
    %v3564 = vadd.f32 %v3548, %v2896
    %v3565 = vadd.f32 %v3549, %v2897
    %v3566 = vadd.f32 %v3550, %v2898
    %v3567 = vadd.f32 %v3551, %v2899
    %v3568 = vadd.f32 %v3552, %v2900
    %v3569 = vadd.f32 %v3553, %v2901
    %v3570 = vadd.f32 %v3554, %v2902
    %v3571 = vadd.f32 %v3555, %v2903
    %v3572 = vadd.f32 %v3556, %v2904
    %v3573 = vadd.f32 %v3557, %v2905
    %v3574 = vadd.f32 %v3558, %v2906
    %v3575 = vadd.f32 %v3559, %v2907
    %v3576 = vmul.f32 %v2845, %v3303
    %v3577 = vmul.f32 %v2847, %v3305
    %v3578 = vmul.f32 %v2849, %v3380
    %v3579 = vmul.f32 %v2851, %v3382
    %v3580 = vmul.f32 %v2853, %v3457
    %v3581 = vmul.f32 %v2855, %v3459
    %v3582 = vmul.f32 %v2857, %v3534
    %v3583 = vmul.f32 %v2859, %v3536
    %v3584 = vmul.f32 %v2861, %v3309
    %v3585 = vmul.f32 %v2863, %v3311
    %v3586 = vmul.f32 %v2865, %v3386
    %v3587 = vmul.f32 %v2867, %v3388
    %v3588 = vmul.f32 %v2869, %v3463
    %v3589 = vmul.f32 %v2871, %v3465
    %v3590 = vmul.f32 %v2873, %v3540
    %v3591 = vmul.f32 %v2875, %v3542
    %s3592 = scalar_lea.vmem [#allocation19], 16
    %v3593 = vld [vmem:[%s3592] sm:$0xff]
    %v3594 = vld [vmem:[%s3592 + $0x8] sm:$0xff]
    %v3596 = vsel %vm391, %v3593, 0
    %v3599 = vsel %vm391, %v3594, 0
    %3601 = vmatprep.subr.mxu0 %v3561
    %3602 = vmatpush1.msra.mxu0 %v3560
    %3603 = vmatprep.subr.mxu0 %v3569
    %3604 = vmatpush1.msra.mxu0 %v3568
    %3605 = vmatprep.subr.mxu0 0.0
    %3606 = vmatpush1.msra.mxu0 0.0
    %3607 = vmatprep.subr.mxu0 0.0
    %3608 = vmatpush1.msra.mxu0 0.0
    %3609 = vmatprep.subr.mxu0 0.0
    %3610 = vmatpush1.msra.mxu0 0.0
    %3611 = vmatprep.subr.mxu0 0.0
    %3612 = vmatpush1.msra.mxu0 0.0
    %3613 = vmatprep.subr.mxu0 0.0
    %3614 = vmatpush1.msra.mxu0 0.0
    %3615 = vmatprep.subr.mxu0 0.0
    %3616 = vmatpush1.msra.mxu0 0.0
    %3617 = vmatprep.subr.mxu0 0.0
    %3618 = vmatpush1.msra.mxu0 0.0
    %3619 = vmatprep.subr.mxu0 0.0
    %3620 = vmatpush1.msra.mxu0 0.0
    %3621 = vmatprep.subr.mxu0 0.0
    %3622 = vmatpush1.msra.mxu0 0.0
    %3623 = vmatprep.subr.mxu0 0.0
    %3624 = vmatpush1.msra.mxu0 0.0
    %3625 = vmatprep.subr.mxu0 0.0
    %3626 = vmatpush1.msra.mxu0 0.0
    %3627 = vmatprep.subr.mxu0 0.0
    %3628 = vmatpush1.msra.mxu0 0.0
    %3629 = vmatprep.subr.mxu0 0.0
    %3630 = vmatpush1.msra.mxu0 0.0
    %3631 = vmatprep.subr.mxu0 0.0
    %3632 = vmatpush1.msra.mxu0 0.0
    %3633 = vmatprep.subr.mxu0 0.0
    %3634 = vmatpush1.msra.mxu0 0.0
    %3635 = vmatprep.subr.mxu0 0.0
    %3636 = vmatpush1.msra.mxu0 0.0
    %3637 = vmatprep.subr.mxu0 0.0
    %3638 = vmatpush1.msra.mxu0 0.0
    %3639 = vmatprep.subr.mxu0 0.0
    %3640 = vmatpush1.msra.mxu0 0.0
    %3641 = vmatprep.subr.mxu0 0.0
    %3642 = vmatpush1.msra.mxu0 0.0
    %3643 = vmatprep.subr.mxu0 0.0
    %3644 = vmatpush1.msra.mxu0 0.0
    %3645 = vmatprep.subr.mxu0 0.0
    %3646 = vmatpush1.msra.mxu0 0.0
    %3647 = vmatprep.subr.mxu0 0.0
    %3648 = vmatpush1.msra.mxu0 0.0
    %3649 = vmatprep.subr.mxu0 0.0
    %3650 = vmatpush1.msra.mxu0 0.0
    %3651 = vmatprep.subr.mxu0 0.0
    %3652 = vmatpush1.msra.mxu0 0.0
    %3653 = vmatprep.subr.mxu0 0.0
    %3654 = vmatpush1.msra.mxu0 0.0
    %3655 = vmatprep.subr.mxu0 0.0
    %3656 = vmatpush1.msra.mxu0 0.0
    %3657 = vmatprep.subr.mxu0 0.0
    %3658 = vmatpush1.msra.mxu0 0.0
    %3659 = vmatprep.subr.mxu0 0.0
    %3660 = vmatpush1.msra.mxu0 0.0
    %3661 = vmatprep.subr.mxu0 0.0
    %3662 = vmatpush1.msra.mxu0 0.0
    %3663 = vmatprep.subr.mxu0 0.0
    %3664 = vmatpush1.msra.mxu0 0.0
    %3665 = vmatprep.mubr.f32.mxu0 0.0
    %3666 = vmatmul.mubr.f32.gmra.mrb[0].mxu0 %v3596
    %v3667 = vpop.f32.mrb[0].mxu0
    %v3668 = vadd.f32 0.0, %v3667
    %v3669 = vpop.f32.mrb[0].mxu0
    %v3670 = vadd.f32 0.0, %v3669
    %3671 = vmatprep.mubr.f32.mxu0 0.0
    %3672 = vmatmul.mubr.f32.gmra.mrb[0].mxu0 %v3599
    %v3673 = vpop.f32.mrb[0].mxu0
    %v3674 = vadd.f32 0.0, %v3673
    %v3675 = vpop.f32.mrb[0].mxu0
    %v3676 = vadd.f32 0.0, %v3675
    %3677 = vdwg.mxu0
    %3678 = vmatprep.subr.mxu0 %v3563
    %3679 = vmatpush1.msra.mxu0 %v3562
    %3680 = vmatprep.subr.mxu0 %v3571
    %3681 = vmatpush1.msra.mxu0 %v3570
    %3682 = vmatprep.subr.mxu0 0.0
    %3683 = vmatpush1.msra.mxu0 0.0
    %3684 = vmatprep.subr.mxu0 0.0
    %3685 = vmatpush1.msra.mxu0 0.0
    %3686 = vmatprep.subr.mxu0 0.0
    %3687 = vmatpush1.msra.mxu0 0.0
    %3688 = vmatprep.subr.mxu0 0.0
    %3689 = vmatpush1.msra.mxu0 0.0
    %3690 = vmatprep.subr.mxu0 0.0
    %3691 = vmatpush1.msra.mxu0 0.0
    %3692 = vmatprep.subr.mxu0 0.0
    %3693 = vmatpush1.msra.mxu0 0.0
    %3694 = vmatprep.subr.mxu0 0.0
    %3695 = vmatpush1.msra.mxu0 0.0
    %3696 = vmatprep.subr.mxu0 0.0
    %3697 = vmatpush1.msra.mxu0 0.0
    %3698 = vmatprep.subr.mxu0 0.0
    %3699 = vmatpush1.msra.mxu0 0.0
    %3700 = vmatprep.subr.mxu0 0.0
    %3701 = vmatpush1.msra.mxu0 0.0
    %3702 = vmatprep.subr.mxu0 0.0
    %3703 = vmatpush1.msra.mxu0 0.0
    %3704 = vmatprep.subr.mxu0 0.0
    %3705 = vmatpush1.msra.mxu0 0.0
    %3706 = vmatprep.subr.mxu0 0.0
    %3707 = vmatpush1.msra.mxu0 0.0
    %3708 = vmatprep.subr.mxu0 0.0
    %3709 = vmatpush1.msra.mxu0 0.0
    %3710 = vmatprep.subr.mxu0 0.0
    %3711 = vmatpush1.msra.mxu0 0.0
    %3712 = vmatprep.subr.mxu0 0.0
    %3713 = vmatpush1.msra.mxu0 0.0
    %3714 = vmatprep.subr.mxu0 0.0
    %3715 = vmatpush1.msra.mxu0 0.0
    %3716 = vmatprep.subr.mxu0 0.0
    %3717 = vmatpush1.msra.mxu0 0.0
    %3718 = vmatprep.subr.mxu0 0.0
    %3719 = vmatpush1.msra.mxu0 0.0
    %3720 = vmatprep.subr.mxu0 0.0
    %3721 = vmatpush1.msra.mxu0 0.0
    %3722 = vmatprep.subr.mxu0 0.0
    %3723 = vmatpush1.msra.mxu0 0.0
    %3724 = vmatprep.subr.mxu0 0.0
    %3725 = vmatpush1.msra.mxu0 0.0
    %3726 = vmatprep.subr.mxu0 0.0
    %3727 = vmatpush1.msra.mxu0 0.0
    %3728 = vmatprep.subr.mxu0 0.0
    %3729 = vmatpush1.msra.mxu0 0.0
    %3730 = vmatprep.subr.mxu0 0.0
    %3731 = vmatpush1.msra.mxu0 0.0
    %3732 = vmatprep.subr.mxu0 0.0
    %3733 = vmatpush1.msra.mxu0 0.0
    %3734 = vmatprep.subr.mxu0 0.0
    %3735 = vmatpush1.msra.mxu0 0.0
    %3736 = vmatprep.subr.mxu0 0.0
    %3737 = vmatpush1.msra.mxu0 0.0
    %3738 = vmatprep.subr.mxu0 0.0
    %3739 = vmatpush1.msra.mxu0 0.0
    %3740 = vmatprep.subr.mxu0 0.0
    %3741 = vmatpush1.msra.mxu0 0.0
    %3742 = vmatprep.mubr.f32.mxu0 0.0
    %3743 = vmatmul.mubr.f32.gmra.mrb[0].mxu0 %v3596
    %v3744 = vpop.f32.mrb[0].mxu0
    %v3745 = vadd.f32 0.0, %v3744
    %v3746 = vpop.f32.mrb[0].mxu0
    %v3747 = vadd.f32 0.0, %v3746
    %3748 = vmatprep.mubr.f32.mxu0 0.0
    %3749 = vmatmul.mubr.f32.gmra.mrb[0].mxu0 %v3599
    %v3750 = vpop.f32.mrb[0].mxu0
    %v3751 = vadd.f32 0.0, %v3750
    %v3752 = vpop.f32.mrb[0].mxu0
    %v3753 = vadd.f32 0.0, %v3752
    %3754 = vdwg.mxu0
    %3755 = vmatprep.subr.mxu0 %v3565
    %3756 = vmatpush1.msra.mxu0 %v3564
    %3757 = vmatprep.subr.mxu0 %v3573
    %3758 = vmatpush1.msra.mxu0 %v3572
    %3759 = vmatprep.subr.mxu0 0.0
    %3760 = vmatpush1.msra.mxu0 0.0
    %3761 = vmatprep.subr.mxu0 0.0
    %3762 = vmatpush1.msra.mxu0 0.0
    %3763 = vmatprep.subr.mxu0 0.0
    %3764 = vmatpush1.msra.mxu0 0.0
    %3765 = vmatprep.subr.mxu0 0.0
    %3766 = vmatpush1.msra.mxu0 0.0
    %3767 = vmatprep.subr.mxu0 0.0
    %3768 = vmatpush1.msra.mxu0 0.0
    %3769 = vmatprep.subr.mxu0 0.0
    %3770 = vmatpush1.msra.mxu0 0.0
    %3771 = vmatprep.subr.mxu0 0.0
    %3772 = vmatpush1.msra.mxu0 0.0
    %3773 = vmatprep.subr.mxu0 0.0
    %3774 = vmatpush1.msra.mxu0 0.0
    %3775 = vmatprep.subr.mxu0 0.0
    %3776 = vmatpush1.msra.mxu0 0.0
    %3777 = vmatprep.subr.mxu0 0.0
    %3778 = vmatpush1.msra.mxu0 0.0
    %3779 = vmatprep.subr.mxu0 0.0
    %3780 = vmatpush1.msra.mxu0 0.0
    %3781 = vmatprep.subr.mxu0 0.0
    %3782 = vmatpush1.msra.mxu0 0.0
    %3783 = vmatprep.subr.mxu0 0.0
    %3784 = vmatpush1.msra.mxu0 0.0
    %3785 = vmatprep.subr.mxu0 0.0
    %3786 = vmatpush1.msra.mxu0 0.0
    %3787 = vmatprep.subr.mxu0 0.0
    %3788 = vmatpush1.msra.mxu0 0.0
    %3789 = vmatprep.subr.mxu0 0.0
    %3790 = vmatpush1.msra.mxu0 0.0
    %3791 = vmatprep.subr.mxu0 0.0
    %3792 = vmatpush1.msra.mxu0 0.0
    %3793 = vmatprep.subr.mxu0 0.0
    %3794 = vmatpush1.msra.mxu0 0.0
    %3795 = vmatprep.subr.mxu0 0.0
    %3796 = vmatpush1.msra.mxu0 0.0
    %3797 = vmatprep.subr.mxu0 0.0
    %3798 = vmatpush1.msra.mxu0 0.0
    %3799 = vmatprep.subr.mxu0 0.0
    %3800 = vmatpush1.msra.mxu0 0.0
    %3801 = vmatprep.subr.mxu0 0.0
    %3802 = vmatpush1.msra.mxu0 0.0
    %3803 = vmatprep.subr.mxu0 0.0
    %3804 = vmatpush1.msra.mxu0 0.0
    %3805 = vmatprep.subr.mxu0 0.0
    %3806 = vmatpush1.msra.mxu0 0.0
    %3807 = vmatprep.subr.mxu0 0.0
    %3808 = vmatpush1.msra.mxu0 0.0
    %3809 = vmatprep.subr.mxu0 0.0
    %3810 = vmatpush1.msra.mxu0 0.0
    %3811 = vmatprep.subr.mxu0 0.0
    %3812 = vmatpush1.msra.mxu0 0.0
    %3813 = vmatprep.subr.mxu0 0.0
    %3814 = vmatpush1.msra.mxu0 0.0
    %3815 = vmatprep.subr.mxu0 0.0
    %3816 = vmatpush1.msra.mxu0 0.0
    %3817 = vmatprep.subr.mxu0 0.0
    %3818 = vmatpush1.msra.mxu0 0.0
    %3819 = vmatprep.mubr.f32.mxu0 0.0
    %3820 = vmatmul.mubr.f32.gmra.mrb[0].mxu0 %v3596
    %v3821 = vpop.f32.mrb[0].mxu0
    %v3822 = vadd.f32 0.0, %v3821
    %v3823 = vpop.f32.mrb[0].mxu0
    %v3824 = vadd.f32 0.0, %v3823
    %3825 = vmatprep.mubr.f32.mxu0 0.0
    %3826 = vmatmul.mubr.f32.gmra.mrb[0].mxu0 %v3599
    %v3827 = vpop.f32.mrb[0].mxu0
    %v3828 = vadd.f32 0.0, %v3827
    %v3829 = vpop.f32.mrb[0].mxu0
    %v3830 = vadd.f32 0.0, %v3829
    %3831 = vdwg.mxu0
    %3832 = vmatprep.subr.mxu0 %v3567
    %3833 = vmatpush1.msra.mxu0 %v3566
    %3834 = vmatprep.subr.mxu0 %v3575
    %3835 = vmatpush1.msra.mxu0 %v3574
    %3836 = vmatprep.subr.mxu0 0.0
    %3837 = vmatpush1.msra.mxu0 0.0
    %3838 = vmatprep.subr.mxu0 0.0
    %3839 = vmatpush1.msra.mxu0 0.0
    %3840 = vmatprep.subr.mxu0 0.0
    %3841 = vmatpush1.msra.mxu0 0.0
    %3842 = vmatprep.subr.mxu0 0.0
    %3843 = vmatpush1.msra.mxu0 0.0
    %3844 = vmatprep.subr.mxu0 0.0
    %3845 = vmatpush1.msra.mxu0 0.0
    %3846 = vmatprep.subr.mxu0 0.0
    %3847 = vmatpush1.msra.mxu0 0.0
    %3848 = vmatprep.subr.mxu0 0.0
    %3849 = vmatpush1.msra.mxu0 0.0
    %3850 = vmatprep.subr.mxu0 0.0
    %3851 = vmatpush1.msra.mxu0 0.0
    %3852 = vmatprep.subr.mxu0 0.0
    %3853 = vmatpush1.msra.mxu0 0.0
    %3854 = vmatprep.subr.mxu0 0.0
    %3855 = vmatpush1.msra.mxu0 0.0
    %3856 = vmatprep.subr.mxu0 0.0
    %3857 = vmatpush1.msra.mxu0 0.0
    %3858 = vmatprep.subr.mxu0 0.0
    %3859 = vmatpush1.msra.mxu0 0.0
    %3860 = vmatprep.subr.mxu0 0.0
    %3861 = vmatpush1.msra.mxu0 0.0
    %3862 = vmatprep.subr.mxu0 0.0
    %3863 = vmatpush1.msra.mxu0 0.0
    %3864 = vmatprep.subr.mxu0 0.0
    %3865 = vmatpush1.msra.mxu0 0.0
    %3866 = vmatprep.subr.mxu0 0.0
    %3867 = vmatpush1.msra.mxu0 0.0
    %3868 = vmatprep.subr.mxu0 0.0
    %3869 = vmatpush1.msra.mxu0 0.0
    %3870 = vmatprep.subr.mxu0 0.0
    %3871 = vmatpush1.msra.mxu0 0.0
    %3872 = vmatprep.subr.mxu0 0.0
    %3873 = vmatpush1.msra.mxu0 0.0
    %3874 = vmatprep.subr.mxu0 0.0
    %3875 = vmatpush1.msra.mxu0 0.0
    %3876 = vmatprep.subr.mxu0 0.0
    %3877 = vmatpush1.msra.mxu0 0.0
    %3878 = vmatprep.subr.mxu0 0.0
    %3879 = vmatpush1.msra.mxu0 0.0
    %3880 = vmatprep.subr.mxu0 0.0
    %3881 = vmatpush1.msra.mxu0 0.0
    %3882 = vmatprep.subr.mxu0 0.0
    %3883 = vmatpush1.msra.mxu0 0.0
    %3884 = vmatprep.subr.mxu0 0.0
    %3885 = vmatpush1.msra.mxu0 0.0
    %3886 = vmatprep.subr.mxu0 0.0
    %3887 = vmatpush1.msra.mxu0 0.0
    %3888 = vmatprep.subr.mxu0 0.0
    %3889 = vmatpush1.msra.mxu0 0.0
    %3890 = vmatprep.subr.mxu0 0.0
    %3891 = vmatpush1.msra.mxu0 0.0
    %3892 = vmatprep.subr.mxu0 0.0
    %3893 = vmatpush1.msra.mxu0 0.0
    %3894 = vmatprep.subr.mxu0 0.0
    %3895 = vmatpush1.msra.mxu0 0.0
    %3896 = vmatprep.mubr.f32.mxu0 0.0
    %3897 = vmatmul.mubr.f32.gmra.mrb[0].mxu0 %v3596
    %v3898 = vpop.f32.mrb[0].mxu0
    %v3899 = vadd.f32 0.0, %v3898
    %v3900 = vpop.f32.mrb[0].mxu0
    %v3901 = vadd.f32 0.0, %v3900
    %3902 = vmatprep.mubr.f32.mxu0 0.0
    %3903 = vmatmul.mubr.f32.gmra.mrb[0].mxu0 %v3599
    %v3904 = vpop.f32.mrb[0].mxu0
    %v3905 = vadd.f32 0.0, %v3904
    %v3906 = vpop.f32.mrb[0].mxu0
    %v3907 = vadd.f32 0.0, %v3906
    %3908 = vdwg.mxu0
    %s3909 = scalar_lea.vmem %s18, 16
    %v3910 = vld [vmem:[%s3909] sm:$0xff]
    %v3911 = vld [vmem:[%s3909 + $0x8] sm:$0xff]
    %3913 = vset.pattern.permute.xlu0 0
    %3914 = vperm.xlu0 %3913, %v3910
    %v3915 = vpop.permute.xlu0 %3914
    %3918 = vset.pattern.permute.xlu0 0
    %3919 = vperm.xlu0 %3918, %v3911
    %v3920 = vpop.permute.xlu0 %3919
    %3922 = vmatprep.subr.mxu0 %v3577
    %3923 = vmatpush1.msra.mxu0 %v3576
    %3924 = vmatprep.subr.mxu0 %v3585
    %3925 = vmatpush1.msra.mxu0 %v3584
    %3926 = vmatprep.subr.mxu0 0.0
    %3927 = vmatpush1.msra.mxu0 0.0
    %3928 = vmatprep.subr.mxu0 0.0
    %3929 = vmatpush1.msra.mxu0 0.0
    %3930 = vmatprep.subr.mxu0 0.0
    %3931 = vmatpush1.msra.mxu0 0.0
    %3932 = vmatprep.subr.mxu0 0.0
    %3933 = vmatpush1.msra.mxu0 0.0
    %3934 = vmatprep.subr.mxu0 0.0
    %3935 = vmatpush1.msra.mxu0 0.0
    %3936 = vmatprep.subr.mxu0 0.0
    %3937 = vmatpush1.msra.mxu0 0.0
    %3938 = vmatprep.subr.mxu0 0.0
    %3939 = vmatpush1.msra.mxu0 0.0
    %3940 = vmatprep.subr.mxu0 0.0
    %3941 = vmatpush1.msra.mxu0 0.0
    %3942 = vmatprep.subr.mxu0 0.0
    %3943 = vmatpush1.msra.mxu0 0.0
    %3944 = vmatprep.subr.mxu0 0.0
    %3945 = vmatpush1.msra.mxu0 0.0
    %3946 = vmatprep.subr.mxu0 0.0
    %3947 = vmatpush1.msra.mxu0 0.0
    %3948 = vmatprep.subr.mxu0 0.0
    %3949 = vmatpush1.msra.mxu0 0.0
    %3950 = vmatprep.subr.mxu0 0.0
    %3951 = vmatpush1.msra.mxu0 0.0
    %3952 = vmatprep.subr.mxu0 0.0
    %3953 = vmatpush1.msra.mxu0 0.0
    %3954 = vmatprep.subr.mxu0 0.0
    %3955 = vmatpush1.msra.mxu0 0.0
    %3956 = vmatprep.subr.mxu0 0.0
    %3957 = vmatpush1.msra.mxu0 0.0
    %3958 = vmatprep.subr.mxu0 0.0
    %3959 = vmatpush1.msra.mxu0 0.0
    %3960 = vmatprep.subr.mxu0 0.0
    %3961 = vmatpush1.msra.mxu0 0.0
    %3962 = vmatprep.subr.mxu0 0.0
    %3963 = vmatpush1.msra.mxu0 0.0
    %3964 = vmatprep.subr.mxu0 0.0
    %3965 = vmatpush1.msra.mxu0 0.0
    %3966 = vmatprep.subr.mxu0 0.0
    %3967 = vmatpush1.msra.mxu0 0.0
    %3968 = vmatprep.subr.mxu0 0.0
    %3969 = vmatpush1.msra.mxu0 0.0
    %3970 = vmatprep.subr.mxu0 0.0
    %3971 = vmatpush1.msra.mxu0 0.0
    %3972 = vmatprep.subr.mxu0 0.0
    %3973 = vmatpush1.msra.mxu0 0.0
    %3974 = vmatprep.subr.mxu0 0.0
    %3975 = vmatpush1.msra.mxu0 0.0
    %3976 = vmatprep.subr.mxu0 0.0
    %3977 = vmatpush1.msra.mxu0 0.0
    %3978 = vmatprep.subr.mxu0 0.0
    %3979 = vmatpush1.msra.mxu0 0.0
    %3980 = vmatprep.subr.mxu0 0.0
    %3981 = vmatpush1.msra.mxu0 0.0
    %3982 = vmatprep.subr.mxu0 0.0
    %3983 = vmatpush1.msra.mxu0 0.0
    %3984 = vmatprep.subr.mxu0 0.0
    %3985 = vmatpush1.msra.mxu0 0.0
    %3986 = vmatprep.mubr.f32.mxu0 0.0
    %3987 = vmatmul.mubr.f32.gmra.mrb[0].mxu0 %v3596
    %v3988 = vpop.f32.mrb[0].mxu0
    %v3989 = vadd.f32 %v3915, %v3988
    %v3990 = vpop.f32.mrb[0].mxu0
    %v3991 = vadd.f32 %v3915, %v3990
    %3992 = vmatprep.mubr.f32.mxu0 0.0
    %3993 = vmatmul.mubr.f32.gmra.mrb[0].mxu0 %v3599
    %v3994 = vpop.f32.mrb[0].mxu0
    %v3995 = vadd.f32 %v3920, %v3994
    %v3996 = vpop.f32.mrb[0].mxu0
    %v3997 = vadd.f32 %v3920, %v3996
    %3998 = vdwg.mxu0
    %3999 = vmatprep.subr.mxu0 %v3579
    %4000 = vmatpush1.msra.mxu0 %v3578
    %4001 = vmatprep.subr.mxu0 %v3587
    %4002 = vmatpush1.msra.mxu0 %v3586
    %4003 = vmatprep.subr.mxu0 0.0
    %4004 = vmatpush1.msra.mxu0 0.0
    %4005 = vmatprep.subr.mxu0 0.0
    %4006 = vmatpush1.msra.mxu0 0.0
    %4007 = vmatprep.subr.mxu0 0.0
    %4008 = vmatpush1.msra.mxu0 0.0
    %4009 = vmatprep.subr.mxu0 0.0
    %4010 = vmatpush1.msra.mxu0 0.0
    %4011 = vmatprep.subr.mxu0 0.0
    %4012 = vmatpush1.msra.mxu0 0.0
    %4013 = vmatprep.subr.mxu0 0.0
    %4014 = vmatpush1.msra.mxu0 0.0
    %4015 = vmatprep.subr.mxu0 0.0
    %4016 = vmatpush1.msra.mxu0 0.0
    %4017 = vmatprep.subr.mxu0 0.0
    %4018 = vmatpush1.msra.mxu0 0.0
    %4019 = vmatprep.subr.mxu0 0.0
    %4020 = vmatpush1.msra.mxu0 0.0
    %4021 = vmatprep.subr.mxu0 0.0
    %4022 = vmatpush1.msra.mxu0 0.0
    %4023 = vmatprep.subr.mxu0 0.0
    %4024 = vmatpush1.msra.mxu0 0.0
    %4025 = vmatprep.subr.mxu0 0.0
    %4026 = vmatpush1.msra.mxu0 0.0
    %4027 = vmatprep.subr.mxu0 0.0
    %4028 = vmatpush1.msra.mxu0 0.0
    %4029 = vmatprep.subr.mxu0 0.0
    %4030 = vmatpush1.msra.mxu0 0.0
    %4031 = vmatprep.subr.mxu0 0.0
    %4032 = vmatpush1.msra.mxu0 0.0
    %4033 = vmatprep.subr.mxu0 0.0
    %4034 = vmatpush1.msra.mxu0 0.0
    %4035 = vmatprep.subr.mxu0 0.0
    %4036 = vmatpush1.msra.mxu0 0.0
    %4037 = vmatprep.subr.mxu0 0.0
    %4038 = vmatpush1.msra.mxu0 0.0
    %4039 = vmatprep.subr.mxu0 0.0
    %4040 = vmatpush1.msra.mxu0 0.0
    %4041 = vmatprep.subr.mxu0 0.0
    %4042 = vmatpush1.msra.mxu0 0.0
    %4043 = vmatprep.subr.mxu0 0.0
    %4044 = vmatpush1.msra.mxu0 0.0
    %4045 = vmatprep.subr.mxu0 0.0
    %4046 = vmatpush1.msra.mxu0 0.0
    %4047 = vmatprep.subr.mxu0 0.0
    %4048 = vmatpush1.msra.mxu0 0.0
    %4049 = vmatprep.subr.mxu0 0.0
    %4050 = vmatpush1.msra.mxu0 0.0
    %4051 = vmatprep.subr.mxu0 0.0
    %4052 = vmatpush1.msra.mxu0 0.0
    %4053 = vmatprep.subr.mxu0 0.0
    %4054 = vmatpush1.msra.mxu0 0.0
    %4055 = vmatprep.subr.mxu0 0.0
    %4056 = vmatpush1.msra.mxu0 0.0
    %4057 = vmatprep.subr.mxu0 0.0
    %4058 = vmatpush1.msra.mxu0 0.0
    %4059 = vmatprep.subr.mxu0 0.0
    %4060 = vmatpush1.msra.mxu0 0.0
    %4061 = vmatprep.subr.mxu0 0.0
    %4062 = vmatpush1.msra.mxu0 0.0
    %4063 = vmatprep.mubr.f32.mxu0 0.0
    %4064 = vmatmul.mubr.f32.gmra.mrb[0].mxu0 %v3596
    %v4065 = vpop.f32.mrb[0].mxu0
    %v4066 = vadd.f32 %v3915, %v4065
    %v4067 = vpop.f32.mrb[0].mxu0
    %v4068 = vadd.f32 %v3915, %v4067
    %4069 = vmatprep.mubr.f32.mxu0 0.0
    %4070 = vmatmul.mubr.f32.gmra.mrb[0].mxu0 %v3599
    %v4071 = vpop.f32.mrb[0].mxu0
    %v4072 = vadd.f32 %v3920, %v4071
    %v4073 = vpop.f32.mrb[0].mxu0
    %v4074 = vadd.f32 %v3920, %v4073
    %4075 = vdwg.mxu0
    %4076 = vmatprep.subr.mxu0 %v3581
    %4077 = vmatpush1.msra.mxu0 %v3580
    %4078 = vmatprep.subr.mxu0 %v3589
    %4079 = vmatpush1.msra.mxu0 %v3588
    %4080 = vmatprep.subr.mxu0 0.0
    %4081 = vmatpush1.msra.mxu0 0.0
    %4082 = vmatprep.subr.mxu0 0.0
    %4083 = vmatpush1.msra.mxu0 0.0
    %4084 = vmatprep.subr.mxu0 0.0
    %4085 = vmatpush1.msra.mxu0 0.0
    %4086 = vmatprep.subr.mxu0 0.0
    %4087 = vmatpush1.msra.mxu0 0.0
    %4088 = vmatprep.subr.mxu0 0.0
    %4089 = vmatpush1.msra.mxu0 0.0
    %4090 = vmatprep.subr.mxu0 0.0
    %4091 = vmatpush1.msra.mxu0 0.0
    %4092 = vmatprep.subr.mxu0 0.0
    %4093 = vmatpush1.msra.mxu0 0.0
    %4094 = vmatprep.subr.mxu0 0.0
    %4095 = vmatpush1.msra.mxu0 0.0
    %4096 = vmatprep.subr.mxu0 0.0
    %4097 = vmatpush1.msra.mxu0 0.0
    %4098 = vmatprep.subr.mxu0 0.0
    %4099 = vmatpush1.msra.mxu0 0.0
    %4100 = vmatprep.subr.mxu0 0.0
    %4101 = vmatpush1.msra.mxu0 0.0
    %4102 = vmatprep.subr.mxu0 0.0
    %4103 = vmatpush1.msra.mxu0 0.0
    %4104 = vmatprep.subr.mxu0 0.0
    %4105 = vmatpush1.msra.mxu0 0.0
    %4106 = vmatprep.subr.mxu0 0.0
    %4107 = vmatpush1.msra.mxu0 0.0
    %4108 = vmatprep.subr.mxu0 0.0
    %4109 = vmatpush1.msra.mxu0 0.0
    %4110 = vmatprep.subr.mxu0 0.0
    %4111 = vmatpush1.msra.mxu0 0.0
    %4112 = vmatprep.subr.mxu0 0.0
    %4113 = vmatpush1.msra.mxu0 0.0
    %4114 = vmatprep.subr.mxu0 0.0
    %4115 = vmatpush1.msra.mxu0 0.0
    %4116 = vmatprep.subr.mxu0 0.0
    %4117 = vmatpush1.msra.mxu0 0.0
    %4118 = vmatprep.subr.mxu0 0.0
    %4119 = vmatpush1.msra.mxu0 0.0
    %4120 = vmatprep.subr.mxu0 0.0
    %4121 = vmatpush1.msra.mxu0 0.0
    %4122 = vmatprep.subr.mxu0 0.0
    %4123 = vmatpush1.msra.mxu0 0.0
    %4124 = vmatprep.subr.mxu0 0.0
    %4125 = vmatpush1.msra.mxu0 0.0
    %4126 = vmatprep.subr.mxu0 0.0
    %4127 = vmatpush1.msra.mxu0 0.0
    %4128 = vmatprep.subr.mxu0 0.0
    %4129 = vmatpush1.msra.mxu0 0.0
    %4130 = vmatprep.subr.mxu0 0.0
    %4131 = vmatpush1.msra.mxu0 0.0
    %4132 = vmatprep.subr.mxu0 0.0
    %4133 = vmatpush1.msra.mxu0 0.0
    %4134 = vmatprep.subr.mxu0 0.0
    %4135 = vmatpush1.msra.mxu0 0.0
    %4136 = vmatprep.subr.mxu0 0.0
    %4137 = vmatpush1.msra.mxu0 0.0
    %4138 = vmatprep.subr.mxu0 0.0
    %4139 = vmatpush1.msra.mxu0 0.0
    %4140 = vmatprep.mubr.f32.mxu0 0.0
    %4141 = vmatmul.mubr.f32.gmra.mrb[0].mxu0 %v3596
    %v4142 = vpop.f32.mrb[0].mxu0
    %v4143 = vadd.f32 %v3915, %v4142
    %v4144 = vpop.f32.mrb[0].mxu0
    %v4145 = vadd.f32 %v3915, %v4144
    %4146 = vmatprep.mubr.f32.mxu0 0.0
    %4147 = vmatmul.mubr.f32.gmra.mrb[0].mxu0 %v3599
    %v4148 = vpop.f32.mrb[0].mxu0
    %v4149 = vadd.f32 %v3920, %v4148
    %v4150 = vpop.f32.mrb[0].mxu0
    %v4151 = vadd.f32 %v3920, %v4150
    %4152 = vdwg.mxu0
    %4153 = vmatprep.subr.mxu0 %v3583
    %4154 = vmatpush1.msra.mxu0 %v3582
    %4155 = vmatprep.subr.mxu0 %v3591
    %4156 = vmatpush1.msra.mxu0 %v3590
    %4157 = vmatprep.subr.mxu0 0.0
    %4158 = vmatpush1.msra.mxu0 0.0
    %4159 = vmatprep.subr.mxu0 0.0
    %4160 = vmatpush1.msra.mxu0 0.0
    %4161 = vmatprep.subr.mxu0 0.0
    %4162 = vmatpush1.msra.mxu0 0.0
    %4163 = vmatprep.subr.mxu0 0.0
    %4164 = vmatpush1.msra.mxu0 0.0
    %4165 = vmatprep.subr.mxu0 0.0
    %4166 = vmatpush1.msra.mxu0 0.0
    %4167 = vmatprep.subr.mxu0 0.0
    %4168 = vmatpush1.msra.mxu0 0.0
    %4169 = vmatprep.subr.mxu0 0.0
    %4170 = vmatpush1.msra.mxu0 0.0
    %4171 = vmatprep.subr.mxu0 0.0
    %4172 = vmatpush1.msra.mxu0 0.0
    %4173 = vmatprep.subr.mxu0 0.0
    %4174 = vmatpush1.msra.mxu0 0.0
    %4175 = vmatprep.subr.mxu0 0.0
    %4176 = vmatpush1.msra.mxu0 0.0
    %4177 = vmatprep.subr.mxu0 0.0
    %4178 = vmatpush1.msra.mxu0 0.0
    %4179 = vmatprep.subr.mxu0 0.0
    %4180 = vmatpush1.msra.mxu0 0.0
    %4181 = vmatprep.subr.mxu0 0.0
    %4182 = vmatpush1.msra.mxu0 0.0
    %4183 = vmatprep.subr.mxu0 0.0
    %4184 = vmatpush1.msra.mxu0 0.0
    %4185 = vmatprep.subr.mxu0 0.0
    %4186 = vmatpush1.msra.mxu0 0.0
    %4187 = vmatprep.subr.mxu0 0.0
    %4188 = vmatpush1.msra.mxu0 0.0
    %4189 = vmatprep.subr.mxu0 0.0
    %4190 = vmatpush1.msra.mxu0 0.0
    %4191 = vmatprep.subr.mxu0 0.0
    %4192 = vmatpush1.msra.mxu0 0.0
    %4193 = vmatprep.subr.mxu0 0.0
    %4194 = vmatpush1.msra.mxu0 0.0
    %4195 = vmatprep.subr.mxu0 0.0
    %4196 = vmatpush1.msra.mxu0 0.0
    %4197 = vmatprep.subr.mxu0 0.0
    %4198 = vmatpush1.msra.mxu0 0.0
    %4199 = vmatprep.subr.mxu0 0.0
    %4200 = vmatpush1.msra.mxu0 0.0
    %4201 = vmatprep.subr.mxu0 0.0
    %4202 = vmatpush1.msra.mxu0 0.0
    %4203 = vmatprep.subr.mxu0 0.0
    %4204 = vmatpush1.msra.mxu0 0.0
    %4205 = vmatprep.subr.mxu0 0.0
    %4206 = vmatpush1.msra.mxu0 0.0
    %4207 = vmatprep.subr.mxu0 0.0
    %4208 = vmatpush1.msra.mxu0 0.0
    %4209 = vmatprep.subr.mxu0 0.0
    %4210 = vmatpush1.msra.mxu0 0.0
    %4211 = vmatprep.subr.mxu0 0.0
    %4212 = vmatpush1.msra.mxu0 0.0
    %4213 = vmatprep.subr.mxu0 0.0
    %4214 = vmatpush1.msra.mxu0 0.0
    %4215 = vmatprep.subr.mxu0 0.0
    %4216 = vmatpush1.msra.mxu0 0.0
    %4217 = vmatprep.mubr.f32.mxu0 0.0
    %4218 = vmatmul.mubr.f32.gmra.mrb[0].mxu0 %v3596
    %v4219 = vpop.f32.mrb[0].mxu0
    %v4220 = vadd.f32 %v3915, %v4219
    %v4221 = vpop.f32.mrb[0].mxu0
    %v4222 = vadd.f32 %v3915, %v4221
    %4223 = vmatprep.mubr.f32.mxu0 0.0
    %4224 = vmatmul.mubr.f32.gmra.mrb[0].mxu0 %v3599
    %v4225 = vpop.f32.mrb[0].mxu0
    %v4226 = vadd.f32 %v3920, %v4225
    %v4227 = vpop.f32.mrb[0].mxu0
    %v4228 = vadd.f32 %v3920, %v4227
    %4229 = vdwg.mxu0
    %v4230 = vmul.f32 %v3576, %v3668
    %v4231 = vmul.f32 %v3577, %v3670
    %v4232 = vmul.f32 %v3578, %v3745
    %v4233 = vmul.f32 %v3579, %v3747
    %v4234 = vmul.f32 %v3580, %v3822
    %v4235 = vmul.f32 %v3581, %v3824
    %v4236 = vmul.f32 %v3582, %v3899
    %v4237 = vmul.f32 %v3583, %v3901
    %v4238 = vmul.f32 %v3584, %v3674
    %v4239 = vmul.f32 %v3585, %v3676
    %v4240 = vmul.f32 %v3586, %v3751
    %v4241 = vmul.f32 %v3587, %v3753
    %v4242 = vmul.f32 %v3588, %v3828
    %v4243 = vmul.f32 %v3589, %v3830
    %v4244 = vmul.f32 %v3590, %v3905
    %v4245 = vmul.f32 %v3591, %v3907
    %v4246 = vadd.f32 %v4230, %v3560
    %v4247 = vadd.f32 %v4231, %v3561
    %v4248 = vadd.f32 %v4232, %v3562
    %v4249 = vadd.f32 %v4233, %v3563
    %v4250 = vadd.f32 %v4234, %v3564
    %v4251 = vadd.f32 %v4235, %v3565
    %v4252 = vadd.f32 %v4236, %v3566
    %v4253 = vadd.f32 %v4237, %v3567
    %v4254 = vadd.f32 %v4238, %v3568
    %v4255 = vadd.f32 %v4239, %v3569
    %v4256 = vadd.f32 %v4240, %v3570
    %v4257 = vadd.f32 %v4241, %v3571
    %v4258 = vadd.f32 %v4242, %v3572
    %v4259 = vadd.f32 %v4243, %v3573
    %v4260 = vadd.f32 %v4244, %v3574
    %v4261 = vadd.f32 %v4245, %v3575
    %v4262 = vmul.f32 %v3576, %v3989
    %v4263 = vmul.f32 %v3577, %v3991
    %v4264 = vmul.f32 %v3578, %v4066
    %v4265 = vmul.f32 %v3579, %v4068
    %v4266 = vmul.f32 %v3580, %v4143
    %v4267 = vmul.f32 %v3581, %v4145
    %v4268 = vmul.f32 %v3582, %v4220
    %v4269 = vmul.f32 %v3583, %v4222
    %v4270 = vmul.f32 %v3584, %v3995
    %v4271 = vmul.f32 %v3585, %v3997
    %v4272 = vmul.f32 %v3586, %v4072
    %v4273 = vmul.f32 %v3587, %v4074
    %v4274 = vmul.f32 %v3588, %v4149
    %v4275 = vmul.f32 %v3589, %v4151
    %v4276 = vmul.f32 %v3590, %v4226
    %v4277 = vmul.f32 %v3591, %v4228
    %s4278 = scalar_lea.vmem [#allocation19], 32
    %v4279 = vld [vmem:[%s4278] sm:$0xff]
    %v4280 = vld [vmem:[%s4278 + $0x8] sm:$0xff]
    %v4282 = vsel %vm391, %v4279, 0
    %v4285 = vsel %vm391, %v4280, 0
    %4287 = vmatprep.subr.mxu0 %v4247
    %4288 = vmatpush1.msra.mxu0 %v4246
    %4289 = vmatprep.subr.mxu0 %v4255
    %4290 = vmatpush1.msra.mxu0 %v4254
    %4291 = vmatprep.subr.mxu0 0.0
    %4292 = vmatpush1.msra.mxu0 0.0
    %4293 = vmatprep.subr.mxu0 0.0
    %4294 = vmatpush1.msra.mxu0 0.0
    %4295 = vmatprep.subr.mxu0 0.0
    %4296 = vmatpush1.msra.mxu0 0.0
    %4297 = vmatprep.subr.mxu0 0.0
    %4298 = vmatpush1.msra.mxu0 0.0
    %4299 = vmatprep.subr.mxu0 0.0
    %4300 = vmatpush1.msra.mxu0 0.0
    %4301 = vmatprep.subr.mxu0 0.0
    %4302 = vmatpush1.msra.mxu0 0.0
    %4303 = vmatprep.subr.mxu0 0.0
    %4304 = vmatpush1.msra.mxu0 0.0
    %4305 = vmatprep.subr.mxu0 0.0
    %4306 = vmatpush1.msra.mxu0 0.0
    %4307 = vmatprep.subr.mxu0 0.0
    %4308 = vmatpush1.msra.mxu0 0.0
    %4309 = vmatprep.subr.mxu0 0.0
    %4310 = vmatpush1.msra.mxu0 0.0
    %4311 = vmatprep.subr.mxu0 0.0
    %4312 = vmatpush1.msra.mxu0 0.0
    %4313 = vmatprep.subr.mxu0 0.0
    %4314 = vmatpush1.msra.mxu0 0.0
    %4315 = vmatprep.subr.mxu0 0.0
    %4316 = vmatpush1.msra.mxu0 0.0
    %4317 = vmatprep.subr.mxu0 0.0
    %4318 = vmatpush1.msra.mxu0 0.0
    %4319 = vmatprep.subr.mxu0 0.0
    %4320 = vmatpush1.msra.mxu0 0.0
    %4321 = vmatprep.subr.mxu0 0.0
    %4322 = vmatpush1.msra.mxu0 0.0
    %4323 = vmatprep.subr.mxu0 0.0
    %4324 = vmatpush1.msra.mxu0 0.0
    %4325 = vmatprep.subr.mxu0 0.0
    %4326 = vmatpush1.msra.mxu0 0.0
    %4327 = vmatprep.subr.mxu0 0.0
    %4328 = vmatpush1.msra.mxu0 0.0
    %4329 = vmatprep.subr.mxu0 0.0
    %4330 = vmatpush1.msra.mxu0 0.0
    %4331 = vmatprep.subr.mxu0 0.0
    %4332 = vmatpush1.msra.mxu0 0.0
    %4333 = vmatprep.subr.mxu0 0.0
    %4334 = vmatpush1.msra.mxu0 0.0
    %4335 = vmatprep.subr.mxu0 0.0
    %4336 = vmatpush1.msra.mxu0 0.0
    %4337 = vmatprep.subr.mxu0 0.0
    %4338 = vmatpush1.msra.mxu0 0.0
    %4339 = vmatprep.subr.mxu0 0.0
    %4340 = vmatpush1.msra.mxu0 0.0
    %4341 = vmatprep.subr.mxu0 0.0
    %4342 = vmatpush1.msra.mxu0 0.0
    %4343 = vmatprep.subr.mxu0 0.0
    %4344 = vmatpush1.msra.mxu0 0.0
    %4345 = vmatprep.subr.mxu0 0.0
    %4346 = vmatpush1.msra.mxu0 0.0
    %4347 = vmatprep.subr.mxu0 0.0
    %4348 = vmatpush1.msra.mxu0 0.0
    %4349 = vmatprep.subr.mxu0 0.0
    %4350 = vmatpush1.msra.mxu0 0.0
    %4351 = vmatprep.mubr.f32.mxu0 0.0
    %4352 = vmatmul.mubr.f32.gmra.mrb[0].mxu0 %v4282
    %v4353 = vpop.f32.mrb[0].mxu0
    %v4354 = vadd.f32 0.0, %v4353
    %v4355 = vpop.f32.mrb[0].mxu0
    %v4356 = vadd.f32 0.0, %v4355
    %4357 = vmatprep.mubr.f32.mxu0 0.0
    %4358 = vmatmul.mubr.f32.gmra.mrb[0].mxu0 %v4285
    %v4359 = vpop.f32.mrb[0].mxu0
    %v4360 = vadd.f32 0.0, %v4359
    %v4361 = vpop.f32.mrb[0].mxu0
    %v4362 = vadd.f32 0.0, %v4361
    %4363 = vdwg.mxu0
    %4364 = vmatprep.subr.mxu0 %v4249
    %4365 = vmatpush1.msra.mxu0 %v4248
    %4366 = vmatprep.subr.mxu0 %v4257
    %4367 = vmatpush1.msra.mxu0 %v4256
    %4368 = vmatprep.subr.mxu0 0.0
    %4369 = vmatpush1.msra.mxu0 0.0
    %4370 = vmatprep.subr.mxu0 0.0
    %4371 = vmatpush1.msra.mxu0 0.0
    %4372 = vmatprep.subr.mxu0 0.0
    %4373 = vmatpush1.msra.mxu0 0.0
    %4374 = vmatprep.subr.mxu0 0.0
    %4375 = vmatpush1.msra.mxu0 0.0
    %4376 = vmatprep.subr.mxu0 0.0
    %4377 = vmatpush1.msra.mxu0 0.0
    %4378 = vmatprep.subr.mxu0 0.0
    %4379 = vmatpush1.msra.mxu0 0.0
    %4380 = vmatprep.subr.mxu0 0.0
    %4381 = vmatpush1.msra.mxu0 0.0
    %4382 = vmatprep.subr.mxu0 0.0
    %4383 = vmatpush1.msra.mxu0 0.0
    %4384 = vmatprep.subr.mxu0 0.0
    %4385 = vmatpush1.msra.mxu0 0.0
    %4386 = vmatprep.subr.mxu0 0.0
    %4387 = vmatpush1.msra.mxu0 0.0
    %4388 = vmatprep.subr.mxu0 0.0
    %4389 = vmatpush1.msra.mxu0 0.0
    %4390 = vmatprep.subr.mxu0 0.0
    %4391 = vmatpush1.msra.mxu0 0.0
    %4392 = vmatprep.subr.mxu0 0.0
    %4393 = vmatpush1.msra.mxu0 0.0
    %4394 = vmatprep.subr.mxu0 0.0
    %4395 = vmatpush1.msra.mxu0 0.0
    %4396 = vmatprep.subr.mxu0 0.0
    %4397 = vmatpush1.msra.mxu0 0.0
    %4398 = vmatprep.subr.mxu0 0.0
    %4399 = vmatpush1.msra.mxu0 0.0
    %4400 = vmatprep.subr.mxu0 0.0
    %4401 = vmatpush1.msra.mxu0 0.0
    %4402 = vmatprep.subr.mxu0 0.0
    %4403 = vmatpush1.msra.mxu0 0.0
    %4404 = vmatprep.subr.mxu0 0.0
    %4405 = vmatpush1.msra.mxu0 0.0
    %4406 = vmatprep.subr.mxu0 0.0
    %4407 = vmatpush1.msra.mxu0 0.0
    %4408 = vmatprep.subr.mxu0 0.0
    %4409 = vmatpush1.msra.mxu0 0.0
    %4410 = vmatprep.subr.mxu0 0.0
    %4411 = vmatpush1.msra.mxu0 0.0
    %4412 = vmatprep.subr.mxu0 0.0
    %4413 = vmatpush1.msra.mxu0 0.0
    %4414 = vmatprep.subr.mxu0 0.0
    %4415 = vmatpush1.msra.mxu0 0.0
    %4416 = vmatprep.subr.mxu0 0.0
    %4417 = vmatpush1.msra.mxu0 0.0
    %4418 = vmatprep.subr.mxu0 0.0
    %4419 = vmatpush1.msra.mxu0 0.0
    %4420 = vmatprep.subr.mxu0 0.0
    %4421 = vmatpush1.msra.mxu0 0.0
    %4422 = vmatprep.subr.mxu0 0.0
    %4423 = vmatpush1.msra.mxu0 0.0
    %4424 = vmatprep.subr.mxu0 0.0
    %4425 = vmatpush1.msra.mxu0 0.0
    %4426 = vmatprep.subr.mxu0 0.0
    %4427 = vmatpush1.msra.mxu0 0.0
    %4428 = vmatprep.mubr.f32.mxu0 0.0
    %4429 = vmatmul.mubr.f32.gmra.mrb[0].mxu0 %v4282
    %v4430 = vpop.f32.mrb[0].mxu0
    %v4431 = vadd.f32 0.0, %v4430
    %v4432 = vpop.f32.mrb[0].mxu0
    %v4433 = vadd.f32 0.0, %v4432
    %4434 = vmatprep.mubr.f32.mxu0 0.0
    %4435 = vmatmul.mubr.f32.gmra.mrb[0].mxu0 %v4285
    %v4436 = vpop.f32.mrb[0].mxu0
    %v4437 = vadd.f32 0.0, %v4436
    %v4438 = vpop.f32.mrb[0].mxu0
    %v4439 = vadd.f32 0.0, %v4438
    %4440 = vdwg.mxu0
    %4441 = vmatprep.subr.mxu0 %v4251
    %4442 = vmatpush1.msra.mxu0 %v4250
    %4443 = vmatprep.subr.mxu0 %v4259
    %4444 = vmatpush1.msra.mxu0 %v4258
    %4445 = vmatprep.subr.mxu0 0.0
    %4446 = vmatpush1.msra.mxu0 0.0
    %4447 = vmatprep.subr.mxu0 0.0
    %4448 = vmatpush1.msra.mxu0 0.0
    %4449 = vmatprep.subr.mxu0 0.0
    %4450 = vmatpush1.msra.mxu0 0.0
    %4451 = vmatprep.subr.mxu0 0.0
    %4452 = vmatpush1.msra.mxu0 0.0
    %4453 = vmatprep.subr.mxu0 0.0
    %4454 = vmatpush1.msra.mxu0 0.0
    %4455 = vmatprep.subr.mxu0 0.0
    %4456 = vmatpush1.msra.mxu0 0.0
    %4457 = vmatprep.subr.mxu0 0.0
    %4458 = vmatpush1.msra.mxu0 0.0
    %4459 = vmatprep.subr.mxu0 0.0
    %4460 = vmatpush1.msra.mxu0 0.0
    %4461 = vmatprep.subr.mxu0 0.0
    %4462 = vmatpush1.msra.mxu0 0.0
    %4463 = vmatprep.subr.mxu0 0.0
    %4464 = vmatpush1.msra.mxu0 0.0
    %4465 = vmatprep.subr.mxu0 0.0
    %4466 = vmatpush1.msra.mxu0 0.0
    %4467 = vmatprep.subr.mxu0 0.0
    %4468 = vmatpush1.msra.mxu0 0.0
    %4469 = vmatprep.subr.mxu0 0.0
    %4470 = vmatpush1.msra.mxu0 0.0
    %4471 = vmatprep.subr.mxu0 0.0
    %4472 = vmatpush1.msra.mxu0 0.0
    %4473 = vmatprep.subr.mxu0 0.0
    %4474 = vmatpush1.msra.mxu0 0.0
    %4475 = vmatprep.subr.mxu0 0.0
    %4476 = vmatpush1.msra.mxu0 0.0
    %4477 = vmatprep.subr.mxu0 0.0
    %4478 = vmatpush1.msra.mxu0 0.0
    %4479 = vmatprep.subr.mxu0 0.0
    %4480 = vmatpush1.msra.mxu0 0.0
    %4481 = vmatprep.subr.mxu0 0.0
    %4482 = vmatpush1.msra.mxu0 0.0
    %4483 = vmatprep.subr.mxu0 0.0
    %4484 = vmatpush1.msra.mxu0 0.0
    %4485 = vmatprep.subr.mxu0 0.0
    %4486 = vmatpush1.msra.mxu0 0.0
    %4487 = vmatprep.subr.mxu0 0.0
    %4488 = vmatpush1.msra.mxu0 0.0
    %4489 = vmatprep.subr.mxu0 0.0
    %4490 = vmatpush1.msra.mxu0 0.0
    %4491 = vmatprep.subr.mxu0 0.0
    %4492 = vmatpush1.msra.mxu0 0.0
    %4493 = vmatprep.subr.mxu0 0.0
    %4494 = vmatpush1.msra.mxu0 0.0
    %4495 = vmatprep.subr.mxu0 0.0
    %4496 = vmatpush1.msra.mxu0 0.0
    %4497 = vmatprep.subr.mxu0 0.0
    %4498 = vmatpush1.msra.mxu0 0.0
    %4499 = vmatprep.subr.mxu0 0.0
    %4500 = vmatpush1.msra.mxu0 0.0
    %4501 = vmatprep.subr.mxu0 0.0
    %4502 = vmatpush1.msra.mxu0 0.0
    %4503 = vmatprep.subr.mxu0 0.0
    %4504 = vmatpush1.msra.mxu0 0.0
    %4505 = vmatprep.mubr.f32.mxu0 0.0
    %4506 = vmatmul.mubr.f32.gmra.mrb[0].mxu0 %v4282
    %v4507 = vpop.f32.mrb[0].mxu0
    %v4508 = vadd.f32 0.0, %v4507
    %v4509 = vpop.f32.mrb[0].mxu0
    %v4510 = vadd.f32 0.0, %v4509
    %4511 = vmatprep.mubr.f32.mxu0 0.0
    %4512 = vmatmul.mubr.f32.gmra.mrb[0].mxu0 %v4285
    %v4513 = vpop.f32.mrb[0].mxu0
    %v4514 = vadd.f32 0.0, %v4513
    %v4515 = vpop.f32.mrb[0].mxu0
    %v4516 = vadd.f32 0.0, %v4515
    %4517 = vdwg.mxu0
    %4518 = vmatprep.subr.mxu0 %v4253
    %4519 = vmatpush1.msra.mxu0 %v4252
    %4520 = vmatprep.subr.mxu0 %v4261
    %4521 = vmatpush1.msra.mxu0 %v4260
    %4522 = vmatprep.subr.mxu0 0.0
    %4523 = vmatpush1.msra.mxu0 0.0
    %4524 = vmatprep.subr.mxu0 0.0
    %4525 = vmatpush1.msra.mxu0 0.0
    %4526 = vmatprep.subr.mxu0 0.0
    %4527 = vmatpush1.msra.mxu0 0.0
    %4528 = vmatprep.subr.mxu0 0.0
    %4529 = vmatpush1.msra.mxu0 0.0
    %4530 = vmatprep.subr.mxu0 0.0
    %4531 = vmatpush1.msra.mxu0 0.0
    %4532 = vmatprep.subr.mxu0 0.0
    %4533 = vmatpush1.msra.mxu0 0.0
    %4534 = vmatprep.subr.mxu0 0.0
    %4535 = vmatpush1.msra.mxu0 0.0
    %4536 = vmatprep.subr.mxu0 0.0
    %4537 = vmatpush1.msra.mxu0 0.0
    %4538 = vmatprep.subr.mxu0 0.0
    %4539 = vmatpush1.msra.mxu0 0.0
    %4540 = vmatprep.subr.mxu0 0.0
    %4541 = vmatpush1.msra.mxu0 0.0
    %4542 = vmatprep.subr.mxu0 0.0
    %4543 = vmatpush1.msra.mxu0 0.0
    %4544 = vmatprep.subr.mxu0 0.0
    %4545 = vmatpush1.msra.mxu0 0.0
    %4546 = vmatprep.subr.mxu0 0.0
    %4547 = vmatpush1.msra.mxu0 0.0
    %4548 = vmatprep.subr.mxu0 0.0
    %4549 = vmatpush1.msra.mxu0 0.0
    %4550 = vmatprep.subr.mxu0 0.0
    %4551 = vmatpush1.msra.mxu0 0.0
    %4552 = vmatprep.subr.mxu0 0.0
    %4553 = vmatpush1.msra.mxu0 0.0
    %4554 = vmatprep.subr.mxu0 0.0
    %4555 = vmatpush1.msra.mxu0 0.0
    %4556 = vmatprep.subr.mxu0 0.0
    %4557 = vmatpush1.msra.mxu0 0.0
    %4558 = vmatprep.subr.mxu0 0.0
    %4559 = vmatpush1.msra.mxu0 0.0
    %4560 = vmatprep.subr.mxu0 0.0
    %4561 = vmatpush1.msra.mxu0 0.0
    %4562 = vmatprep.subr.mxu0 0.0
    %4563 = vmatpush1.msra.mxu0 0.0
    %4564 = vmatprep.subr.mxu0 0.0
    %4565 = vmatpush1.msra.mxu0 0.0
    %4566 = vmatprep.subr.mxu0 0.0
    %4567 = vmatpush1.msra.mxu0 0.0
    %4568 = vmatprep.subr.mxu0 0.0
    %4569 = vmatpush1.msra.mxu0 0.0
    %4570 = vmatprep.subr.mxu0 0.0
    %4571 = vmatpush1.msra.mxu0 0.0
    %4572 = vmatprep.subr.mxu0 0.0
    %4573 = vmatpush1.msra.mxu0 0.0
    %4574 = vmatprep.subr.mxu0 0.0
    %4575 = vmatpush1.msra.mxu0 0.0
    %4576 = vmatprep.subr.mxu0 0.0
    %4577 = vmatpush1.msra.mxu0 0.0
    %4578 = vmatprep.subr.mxu0 0.0
    %4579 = vmatpush1.msra.mxu0 0.0
    %4580 = vmatprep.subr.mxu0 0.0
    %4581 = vmatpush1.msra.mxu0 0.0
    %4582 = vmatprep.mubr.f32.mxu0 0.0
    %4583 = vmatmul.mubr.f32.gmra.mrb[0].mxu0 %v4282
    %v4584 = vpop.f32.mrb[0].mxu0
    %v4585 = vadd.f32 0.0, %v4584
    %v4586 = vpop.f32.mrb[0].mxu0
    %v4587 = vadd.f32 0.0, %v4586
    %4588 = vmatprep.mubr.f32.mxu0 0.0
    %4589 = vmatmul.mubr.f32.gmra.mrb[0].mxu0 %v4285
    %v4590 = vpop.f32.mrb[0].mxu0
    %v4591 = vadd.f32 0.0, %v4590
    %v4592 = vpop.f32.mrb[0].mxu0
    %v4593 = vadd.f32 0.0, %v4592
    %4594 = vdwg.mxu0
    %v4595 = vmul.f32 %v4262, %v4354
    %v4596 = vmul.f32 %v4263, %v4356
    %v4597 = vmul.f32 %v4264, %v4431
    %v4598 = vmul.f32 %v4265, %v4433
    %v4599 = vmul.f32 %v4266, %v4508
    %v4600 = vmul.f32 %v4267, %v4510
    %v4601 = vmul.f32 %v4268, %v4585
    %v4602 = vmul.f32 %v4269, %v4587
    %v4603 = vmul.f32 %v4270, %v4360
    %v4604 = vmul.f32 %v4271, %v4362
    %v4605 = vmul.f32 %v4272, %v4437
    %v4606 = vmul.f32 %v4273, %v4439
    %v4607 = vmul.f32 %v4274, %v4514
    %v4608 = vmul.f32 %v4275, %v4516
    %v4609 = vmul.f32 %v4276, %v4591
    %v4610 = vmul.f32 %v4277, %v4593
    %v4611 = vadd.f32 %v4595, %v4246
    %v4612 = vadd.f32 %v4596, %v4247
    %v4613 = vadd.f32 %v4597, %v4248
    %v4614 = vadd.f32 %v4598, %v4249
    %v4615 = vadd.f32 %v4599, %v4250
    %v4616 = vadd.f32 %v4600, %v4251
    %v4617 = vadd.f32 %v4601, %v4252
    %v4618 = vadd.f32 %v4602, %v4253
    %v4619 = vadd.f32 %v4603, %v4254
    %v4620 = vadd.f32 %v4604, %v4255
    %v4621 = vadd.f32 %v4605, %v4256
    %v4622 = vadd.f32 %v4606, %v4257
    %v4623 = vadd.f32 %v4607, %v4258
    %v4624 = vadd.f32 %v4608, %v4259
    %v4625 = vadd.f32 %v4609, %v4260
    %v4626 = vadd.f32 %v4610, %v4261
    %v4627 = vmul.f32 %v4611, %v2173
    %v4628 = vmul.f32 %v4612, %v2175
    %v4629 = vmul.f32 %v4613, %v2250
    %v4630 = vmul.f32 %v4614, %v2252
    %v4631 = vmul.f32 %v4615, %v2327
    %v4632 = vmul.f32 %v4616, %v2329
    %v4633 = vmul.f32 %v4617, %v2404
    %v4634 = vmul.f32 %v4618, %v2406
    %v4635 = vmul.f32 %v4619, %v2179
    %v4636 = vmul.f32 %v4620, %v2181
    %v4637 = vmul.f32 %v4621, %v2256
    %v4638 = vmul.f32 %v4622, %v2258
    %v4639 = vmul.f32 %v4623, %v2333
    %v4640 = vmul.f32 %v4624, %v2335
    %v4641 = vmul.f32 %v4625, %v2410
    %v4642 = vmul.f32 %v4626, %v2412
    %v4643 = vld [vmem:[%s15] sm:$0xff]
    %v4644 = vld [vmem:[%s15 + $0x8] sm:$0xff]
    %v4645 = vld [vmem:[%s15 + $0x10] sm:$0xff]
    %v4646 = vld [vmem:[%s15 + $0x18] sm:$0xff]
    %v4647 = vld [vmem:[%s15 + $0x20] sm:$0xff]
    %v4648 = vld [vmem:[%s15 + $0x28] sm:$0xff]
    %v4649 = vld [vmem:[%s15 + $0x30] sm:$0xff]
    %v4650 = vld [vmem:[%s15 + $0x38] sm:$0xff]
    %v4651 = vld [vmem:[%s15 + $0x40] sm:$0xff]
    %v4652 = vld [vmem:[%s15 + $0x48] sm:$0xff]
    %v4653 = vld [vmem:[%s15 + $0x50] sm:$0xff]
    %v4654 = vld [vmem:[%s15 + $0x58] sm:$0xff]
    %v4655 = vld [vmem:[%s15 + $0x60] sm:$0xff]
    %v4656 = vld [vmem:[%s15 + $0x68] sm:$0xff]
    %v4657 = vld [vmem:[%s15 + $0x70] sm:$0xff]
    %v4658 = vld [vmem:[%s15 + $0x78] sm:$0xff]
    %v4659 = vld [vmem:[%s15 + $0x80] sm:$0xff]
    %v4660 = vld [vmem:[%s15 + $0x88] sm:$0xff]
    %v4661 = vld [vmem:[%s15 + $0x90] sm:$0xff]
    %v4662 = vld [vmem:[%s15 + $0x98] sm:$0xff]
    %v4663 = vld [vmem:[%s15 + $0xa0] sm:$0xff]
    %v4664 = vld [vmem:[%s15 + $0xa8] sm:$0xff]
    %v4665 = vld [vmem:[%s15 + $0xb0] sm:$0xff]
    %v4666 = vld [vmem:[%s15 + $0xb8] sm:$0xff]
    %v4667 = vld [vmem:[%s15 + $0xc0] sm:$0xff]
    %v4668 = vld [vmem:[%s15 + $0xc8] sm:$0xff]
    %v4669 = vld [vmem:[%s15 + $0xd0] sm:$0xff]
    %v4670 = vld [vmem:[%s15 + $0xd8] sm:$0xff]
    %v4671 = vld [vmem:[%s15 + $0xe0] sm:$0xff]
    %v4672 = vld [vmem:[%s15 + $0xe8] sm:$0xff]
    %v4673 = vld [vmem:[%s15 + $0xf0] sm:$0xff]
    %v4674 = vld [vmem:[%s15 + $0xf8] sm:$0xff]
    %v4675 = vld [vmem:[%s15 + $0x100] sm:$0xff]
    %v4676 = vld [vmem:[%s15 + $0x108] sm:$0xff]
    %v4677 = vld [vmem:[%s15 + $0x110] sm:$0xff]
    %v4678 = vld [vmem:[%s15 + $0x118] sm:$0xff]
    %v4679 = vld [vmem:[%s15 + $0x120] sm:$0xff]
    %v4680 = vld [vmem:[%s15 + $0x128] sm:$0xff]
    %v4681 = vld [vmem:[%s15 + $0x130] sm:$0xff]
    %v4682 = vld [vmem:[%s15 + $0x138] sm:$0xff]
    %v4683 = vld [vmem:[%s15 + $0x140] sm:$0xff]
    %v4684 = vld [vmem:[%s15 + $0x148] sm:$0xff]
    %v4685 = vld [vmem:[%s15 + $0x150] sm:$0xff]
    %v4686 = vld [vmem:[%s15 + $0x158] sm:$0xff]
    %v4687 = vld [vmem:[%s15 + $0x160] sm:$0xff]
    %v4688 = vld [vmem:[%s15 + $0x168] sm:$0xff]
    %v4689 = vld [vmem:[%s15 + $0x170] sm:$0xff]
    %v4690 = vld [vmem:[%s15 + $0x178] sm:$0xff]
    %v4691 = vld [vmem:[%s15 + $0x180] sm:$0xff]
    %v4692 = vld [vmem:[%s15 + $0x188] sm:$0xff]
    %v4693 = vld [vmem:[%s15 + $0x190] sm:$0xff]
    %v4694 = vld [vmem:[%s15 + $0x198] sm:$0xff]
    %v4695 = vld [vmem:[%s15 + $0x1a0] sm:$0xff]
    %v4696 = vld [vmem:[%s15 + $0x1a8] sm:$0xff]
    %v4697 = vld [vmem:[%s15 + $0x1b0] sm:$0xff]
    %v4698 = vld [vmem:[%s15 + $0x1b8] sm:$0xff]
    %v4699 = vld [vmem:[%s15 + $0x1c0] sm:$0xff]
    %v4700 = vld [vmem:[%s15 + $0x1c8] sm:$0xff]
    %v4701 = vld [vmem:[%s15 + $0x1d0] sm:$0xff]
    %v4702 = vld [vmem:[%s15 + $0x1d8] sm:$0xff]
    %v4703 = vld [vmem:[%s15 + $0x1e0] sm:$0xff]
    %v4704 = vld [vmem:[%s15 + $0x1e8] sm:$0xff]
    %v4705 = vld [vmem:[%s15 + $0x1f0] sm:$0xff]
    %v4706 = vld [vmem:[%s15 + $0x1f8] sm:$0xff]
    %v4707 = vld [vmem:[%s15 + $0x200] sm:$0xff]
    %v4708 = vld [vmem:[%s15 + $0x208] sm:$0xff]
    %v4709 = vld [vmem:[%s15 + $0x210] sm:$0xff]
    %v4710 = vld [vmem:[%s15 + $0x218] sm:$0xff]
    %v4711 = vld [vmem:[%s15 + $0x220] sm:$0xff]
    %v4712 = vld [vmem:[%s15 + $0x228] sm:$0xff]
    %v4713 = vld [vmem:[%s15 + $0x230] sm:$0xff]
    %v4714 = vld [vmem:[%s15 + $0x238] sm:$0xff]
    %v4715 = vld [vmem:[%s15 + $0x240] sm:$0xff]
    %v4716 = vld [vmem:[%s15 + $0x248] sm:$0xff]
    %v4717 = vld [vmem:[%s15 + $0x250] sm:$0xff]
    %v4718 = vld [vmem:[%s15 + $0x258] sm:$0xff]
    %v4719 = vld [vmem:[%s15 + $0x260] sm:$0xff]
    %v4720 = vld [vmem:[%s15 + $0x268] sm:$0xff]
    %v4721 = vld [vmem:[%s15 + $0x270] sm:$0xff]
    %v4722 = vld [vmem:[%s15 + $0x278] sm:$0xff]
    %v4723 = vld [vmem:[%s15 + $0x280] sm:$0xff]
    %v4724 = vld [vmem:[%s15 + $0x288] sm:$0xff]
    %v4725 = vld [vmem:[%s15 + $0x290] sm:$0xff]
    %v4726 = vld [vmem:[%s15 + $0x298] sm:$0xff]
    %v4727 = vld [vmem:[%s15 + $0x2a0] sm:$0xff]
    %v4728 = vld [vmem:[%s15 + $0x2a8] sm:$0xff]
    %v4729 = vld [vmem:[%s15 + $0x2b0] sm:$0xff]
    %v4730 = vld [vmem:[%s15 + $0x2b8] sm:$0xff]
    %v4731 = vld [vmem:[%s15 + $0x2c0] sm:$0xff]
    %v4732 = vld [vmem:[%s15 + $0x2c8] sm:$0xff]
    %v4733 = vld [vmem:[%s15 + $0x2d0] sm:$0xff]
    %v4734 = vld [vmem:[%s15 + $0x2d8] sm:$0xff]
    %v4735 = vld [vmem:[%s15 + $0x2e0] sm:$0xff]
    %v4736 = vld [vmem:[%s15 + $0x2e8] sm:$0xff]
    %v4737 = vld [vmem:[%s15 + $0x2f0] sm:$0xff]
    %v4738 = vld [vmem:[%s15 + $0x2f8] sm:$0xff]
    %v4739 = vld [vmem:[%s15 + $0x300] sm:$0xff]
    %v4740 = vld [vmem:[%s15 + $0x308] sm:$0xff]
    %v4741 = vld [vmem:[%s15 + $0x310] sm:$0xff]
    %v4742 = vld [vmem:[%s15 + $0x318] sm:$0xff]
    %v4743 = vld [vmem:[%s15 + $0x320] sm:$0xff]
    %v4744 = vld [vmem:[%s15 + $0x328] sm:$0xff]
    %v4745 = vld [vmem:[%s15 + $0x330] sm:$0xff]
    %v4746 = vld [vmem:[%s15 + $0x338] sm:$0xff]
    %v4747 = vld [vmem:[%s15 + $0x340] sm:$0xff]
    %v4748 = vld [vmem:[%s15 + $0x348] sm:$0xff]
    %v4749 = vld [vmem:[%s15 + $0x350] sm:$0xff]
    %v4750 = vld [vmem:[%s15 + $0x358] sm:$0xff]
    %v4751 = vld [vmem:[%s15 + $0x360] sm:$0xff]
    %v4752 = vld [vmem:[%s15 + $0x368] sm:$0xff]
    %v4753 = vld [vmem:[%s15 + $0x370] sm:$0xff]
    %v4754 = vld [vmem:[%s15 + $0x378] sm:$0xff]
    %v4755 = vld [vmem:[%s15 + $0x380] sm:$0xff]
    %v4756 = vld [vmem:[%s15 + $0x388] sm:$0xff]
    %v4757 = vld [vmem:[%s15 + $0x390] sm:$0xff]
    %v4758 = vld [vmem:[%s15 + $0x398] sm:$0xff]
    %v4759 = vld [vmem:[%s15 + $0x3a0] sm:$0xff]
    %v4760 = vld [vmem:[%s15 + $0x3a8] sm:$0xff]
    %v4761 = vld [vmem:[%s15 + $0x3b0] sm:$0xff]
    %v4762 = vld [vmem:[%s15 + $0x3b8] sm:$0xff]
    %v4763 = vld [vmem:[%s15 + $0x3c0] sm:$0xff]
    %v4764 = vld [vmem:[%s15 + $0x3c8] sm:$0xff]
    %v4765 = vld [vmem:[%s15 + $0x3d0] sm:$0xff]
    %v4766 = vld [vmem:[%s15 + $0x3d8] sm:$0xff]
    %v4767 = vld [vmem:[%s15 + $0x3e0] sm:$0xff]
    %v4768 = vld [vmem:[%s15 + $0x3e8] sm:$0xff]
    %v4769 = vld [vmem:[%s15 + $0x3f0] sm:$0xff]
    %v4770 = vld [vmem:[%s15 + $0x3f8] sm:$0xff]
    %4771 = vmatprep.subr.mxu0 0.0
    %4772 = vmatpush1.msra.mxu0 %v4643
    %4773 = vmatprep.subr.mxu0 0.0
    %4774 = vmatpush1.msra.mxu0 %v4644
    %4775 = vmatprep.subr.mxu0 0.0
    %4776 = vmatpush1.msra.mxu0 %v4645
    %4777 = vmatprep.subr.mxu0 0.0
    %4778 = vmatpush1.msra.mxu0 %v4646
    %4779 = vmatprep.subr.mxu0 0.0
    %4780 = vmatpush1.msra.mxu0 %v4647
    %4781 = vmatprep.subr.mxu0 0.0
    %4782 = vmatpush1.msra.mxu0 %v4648
    %4783 = vmatprep.subr.mxu0 0.0
    %4784 = vmatpush1.msra.mxu0 %v4649
    %4785 = vmatprep.subr.mxu0 0.0
    %4786 = vmatpush1.msra.mxu0 %v4650
    %4787 = vmatprep.subr.mxu0 0.0
    %4788 = vmatpush1.msra.mxu0 %v4651
    %4789 = vmatprep.subr.mxu0 0.0
    %4790 = vmatpush1.msra.mxu0 %v4652
    %4791 = vmatprep.subr.mxu0 0.0
    %4792 = vmatpush1.msra.mxu0 %v4653
    %4793 = vmatprep.subr.mxu0 0.0
    %4794 = vmatpush1.msra.mxu0 %v4654
    %4795 = vmatprep.subr.mxu0 0.0
    %4796 = vmatpush1.msra.mxu0 %v4655
    %4797 = vmatprep.subr.mxu0 0.0
    %4798 = vmatpush1.msra.mxu0 %v4656
    %4799 = vmatprep.subr.mxu0 0.0
    %4800 = vmatpush1.msra.mxu0 %v4657
    %4801 = vmatprep.subr.mxu0 0.0
    %4802 = vmatpush1.msra.mxu0 %v4658
    %4803 = vmatprep.subr.mxu0 0.0
    %4804 = vmatpush1.msra.mxu0 %v4659
    %4805 = vmatprep.subr.mxu0 0.0
    %4806 = vmatpush1.msra.mxu0 %v4660
    %4807 = vmatprep.subr.mxu0 0.0
    %4808 = vmatpush1.msra.mxu0 %v4661
    %4809 = vmatprep.subr.mxu0 0.0
    %4810 = vmatpush1.msra.mxu0 %v4662
    %4811 = vmatprep.subr.mxu0 0.0
    %4812 = vmatpush1.msra.mxu0 %v4663
    %4813 = vmatprep.subr.mxu0 0.0
    %4814 = vmatpush1.msra.mxu0 %v4664
    %4815 = vmatprep.subr.mxu0 0.0
    %4816 = vmatpush1.msra.mxu0 %v4665
    %4817 = vmatprep.subr.mxu0 0.0
    %4818 = vmatpush1.msra.mxu0 %v4666
    %4819 = vmatprep.subr.mxu0 0.0
    %4820 = vmatpush1.msra.mxu0 %v4667
    %4821 = vmatprep.subr.mxu0 0.0
    %4822 = vmatpush1.msra.mxu0 %v4668
    %4823 = vmatprep.subr.mxu0 0.0
    %4824 = vmatpush1.msra.mxu0 %v4669
    %4825 = vmatprep.subr.mxu0 0.0
    %4826 = vmatpush1.msra.mxu0 %v4670
    %4827 = vmatprep.subr.mxu0 0.0
    %4828 = vmatpush1.msra.mxu0 %v4671
    %4829 = vmatprep.subr.mxu0 0.0
    %4830 = vmatpush1.msra.mxu0 %v4672
    %4831 = vmatprep.subr.mxu0 0.0
    %4832 = vmatpush1.msra.mxu0 %v4673
    %4833 = vmatprep.subr.mxu0 0.0
    %4834 = vmatpush1.msra.mxu0 %v4674
    %4835 = vmatprep.mubr.f32.mxu0 %v4628
    %4836 = vmatmul.mubr.f32.gmra.mrb[0].mxu0 %v4627
    %v4837 = vpop.f32.mrb[0].mxu0
    %v4838 = vadd.f32 0.0, %v4837
    %v4839 = vpop.f32.mrb[0].mxu0
    %4840 = vmatprep.mubr.f32.mxu0 %v4636
    %4841 = vmatmul.mubr.f32.gmra.mrb[0].mxu0 %v4635
    %v4842 = vpop.f32.mrb[0].mxu0
    %v4843 = vadd.f32 0.0, %v4842
    %v4844 = vpop.f32.mrb[0].mxu0
    %4845 = vdwg.mxu0
    %4846 = vmatprep.subr.mxu0 0.0
    %4847 = vmatpush1.msra.mxu0 %v4675
    %4848 = vmatprep.subr.mxu0 0.0
    %4849 = vmatpush1.msra.mxu0 %v4676
    %4850 = vmatprep.subr.mxu0 0.0
    %4851 = vmatpush1.msra.mxu0 %v4677
    %4852 = vmatprep.subr.mxu0 0.0
    %4853 = vmatpush1.msra.mxu0 %v4678
    %4854 = vmatprep.subr.mxu0 0.0
    %4855 = vmatpush1.msra.mxu0 %v4679
    %4856 = vmatprep.subr.mxu0 0.0
    %4857 = vmatpush1.msra.mxu0 %v4680
    %4858 = vmatprep.subr.mxu0 0.0
    %4859 = vmatpush1.msra.mxu0 %v4681
    %4860 = vmatprep.subr.mxu0 0.0
    %4861 = vmatpush1.msra.mxu0 %v4682
    %4862 = vmatprep.subr.mxu0 0.0
    %4863 = vmatpush1.msra.mxu0 %v4683
    %4864 = vmatprep.subr.mxu0 0.0
    %4865 = vmatpush1.msra.mxu0 %v4684
    %4866 = vmatprep.subr.mxu0 0.0
    %4867 = vmatpush1.msra.mxu0 %v4685
    %4868 = vmatprep.subr.mxu0 0.0
    %4869 = vmatpush1.msra.mxu0 %v4686
    %4870 = vmatprep.subr.mxu0 0.0
    %4871 = vmatpush1.msra.mxu0 %v4687
    %4872 = vmatprep.subr.mxu0 0.0
    %4873 = vmatpush1.msra.mxu0 %v4688
    %4874 = vmatprep.subr.mxu0 0.0
    %4875 = vmatpush1.msra.mxu0 %v4689
    %4876 = vmatprep.subr.mxu0 0.0
    %4877 = vmatpush1.msra.mxu0 %v4690
    %4878 = vmatprep.subr.mxu0 0.0
    %4879 = vmatpush1.msra.mxu0 %v4691
    %4880 = vmatprep.subr.mxu0 0.0
    %4881 = vmatpush1.msra.mxu0 %v4692
    %4882 = vmatprep.subr.mxu0 0.0
    %4883 = vmatpush1.msra.mxu0 %v4693
    %4884 = vmatprep.subr.mxu0 0.0
    %4885 = vmatpush1.msra.mxu0 %v4694
    %4886 = vmatprep.subr.mxu0 0.0
    %4887 = vmatpush1.msra.mxu0 %v4695
    %4888 = vmatprep.subr.mxu0 0.0
    %4889 = vmatpush1.msra.mxu0 %v4696
    %4890 = vmatprep.subr.mxu0 0.0
    %4891 = vmatpush1.msra.mxu0 %v4697
    %4892 = vmatprep.subr.mxu0 0.0
    %4893 = vmatpush1.msra.mxu0 %v4698
    %4894 = vmatprep.subr.mxu0 0.0
    %4895 = vmatpush1.msra.mxu0 %v4699
    %4896 = vmatprep.subr.mxu0 0.0
    %4897 = vmatpush1.msra.mxu0 %v4700
    %4898 = vmatprep.subr.mxu0 0.0
    %4899 = vmatpush1.msra.mxu0 %v4701
    %4900 = vmatprep.subr.mxu0 0.0
    %4901 = vmatpush1.msra.mxu0 %v4702
    %4902 = vmatprep.subr.mxu0 0.0
    %4903 = vmatpush1.msra.mxu0 %v4703
    %4904 = vmatprep.subr.mxu0 0.0
    %4905 = vmatpush1.msra.mxu0 %v4704
    %4906 = vmatprep.subr.mxu0 0.0
    %4907 = vmatpush1.msra.mxu0 %v4705
    %4908 = vmatprep.subr.mxu0 0.0
    %4909 = vmatpush1.msra.mxu0 %v4706
    %4910 = vmatprep.mubr.f32.mxu0 %v4630
    %4911 = vmatmul.mubr.f32.gmra.mrb[0].mxu0 %v4629
    %v4912 = vpop.f32.mrb[0].mxu0
    %v4913 = vadd.f32 %v4838, %v4912
    %v4914 = vpop.f32.mrb[0].mxu0
    %4915 = vmatprep.mubr.f32.mxu0 %v4638
    %4916 = vmatmul.mubr.f32.gmra.mrb[0].mxu0 %v4637
    %v4917 = vpop.f32.mrb[0].mxu0
    %v4918 = vadd.f32 %v4843, %v4917
    %v4919 = vpop.f32.mrb[0].mxu0
    %4920 = vdwg.mxu0
    %4921 = vmatprep.subr.mxu0 0.0
    %4922 = vmatpush1.msra.mxu0 %v4707
    %4923 = vmatprep.subr.mxu0 0.0
    %4924 = vmatpush1.msra.mxu0 %v4708
    %4925 = vmatprep.subr.mxu0 0.0
    %4926 = vmatpush1.msra.mxu0 %v4709
    %4927 = vmatprep.subr.mxu0 0.0
    %4928 = vmatpush1.msra.mxu0 %v4710
    %4929 = vmatprep.subr.mxu0 0.0
    %4930 = vmatpush1.msra.mxu0 %v4711
    %4931 = vmatprep.subr.mxu0 0.0
    %4932 = vmatpush1.msra.mxu0 %v4712
    %4933 = vmatprep.subr.mxu0 0.0
    %4934 = vmatpush1.msra.mxu0 %v4713
    %4935 = vmatprep.subr.mxu0 0.0
    %4936 = vmatpush1.msra.mxu0 %v4714
    %4937 = vmatprep.subr.mxu0 0.0
    %4938 = vmatpush1.msra.mxu0 %v4715
    %4939 = vmatprep.subr.mxu0 0.0
    %4940 = vmatpush1.msra.mxu0 %v4716
    %4941 = vmatprep.subr.mxu0 0.0
    %4942 = vmatpush1.msra.mxu0 %v4717
    %4943 = vmatprep.subr.mxu0 0.0
    %4944 = vmatpush1.msra.mxu0 %v4718
    %4945 = vmatprep.subr.mxu0 0.0
    %4946 = vmatpush1.msra.mxu0 %v4719
    %4947 = vmatprep.subr.mxu0 0.0
    %4948 = vmatpush1.msra.mxu0 %v4720
    %4949 = vmatprep.subr.mxu0 0.0
    %4950 = vmatpush1.msra.mxu0 %v4721
    %4951 = vmatprep.subr.mxu0 0.0
    %4952 = vmatpush1.msra.mxu0 %v4722
    %4953 = vmatprep.subr.mxu0 0.0
    %4954 = vmatpush1.msra.mxu0 %v4723
    %4955 = vmatprep.subr.mxu0 0.0
    %4956 = vmatpush1.msra.mxu0 %v4724
    %4957 = vmatprep.subr.mxu0 0.0
    %4958 = vmatpush1.msra.mxu0 %v4725
    %4959 = vmatprep.subr.mxu0 0.0
    %4960 = vmatpush1.msra.mxu0 %v4726
    %4961 = vmatprep.subr.mxu0 0.0
    %4962 = vmatpush1.msra.mxu0 %v4727
    %4963 = vmatprep.subr.mxu0 0.0
    %4964 = vmatpush1.msra.mxu0 %v4728
    %4965 = vmatprep.subr.mxu0 0.0
    %4966 = vmatpush1.msra.mxu0 %v4729
    %4967 = vmatprep.subr.mxu0 0.0
    %4968 = vmatpush1.msra.mxu0 %v4730
    %4969 = vmatprep.subr.mxu0 0.0
    %4970 = vmatpush1.msra.mxu0 %v4731
    %4971 = vmatprep.subr.mxu0 0.0
    %4972 = vmatpush1.msra.mxu0 %v4732
    %4973 = vmatprep.subr.mxu0 0.0
    %4974 = vmatpush1.msra.mxu0 %v4733
    %4975 = vmatprep.subr.mxu0 0.0
    %4976 = vmatpush1.msra.mxu0 %v4734
    %4977 = vmatprep.subr.mxu0 0.0
    %4978 = vmatpush1.msra.mxu0 %v4735
    %4979 = vmatprep.subr.mxu0 0.0
    %4980 = vmatpush1.msra.mxu0 %v4736
    %4981 = vmatprep.subr.mxu0 0.0
    %4982 = vmatpush1.msra.mxu0 %v4737
    %4983 = vmatprep.subr.mxu0 0.0
    %4984 = vmatpush1.msra.mxu0 %v4738
    %4985 = vmatprep.mubr.f32.mxu0 %v4632
    %4986 = vmatmul.mubr.f32.gmra.mrb[0].mxu0 %v4631
    %v4987 = vpop.f32.mrb[0].mxu0
    %v4988 = vadd.f32 %v4913, %v4987
    %v4989 = vpop.f32.mrb[0].mxu0
    %4990 = vmatprep.mubr.f32.mxu0 %v4640
    %4991 = vmatmul.mubr.f32.gmra.mrb[0].mxu0 %v4639
    %v4992 = vpop.f32.mrb[0].mxu0
    %v4993 = vadd.f32 %v4918, %v4992
    %v4994 = vpop.f32.mrb[0].mxu0
    %4995 = vdwg.mxu0
    %4996 = vmatprep.subr.mxu0 0.0
    %4997 = vmatpush1.msra.mxu0 %v4739
    %4998 = vmatprep.subr.mxu0 0.0
    %4999 = vmatpush1.msra.mxu0 %v4740
    %5000 = vmatprep.subr.mxu0 0.0
    %5001 = vmatpush1.msra.mxu0 %v4741
    %5002 = vmatprep.subr.mxu0 0.0
    %5003 = vmatpush1.msra.mxu0 %v4742
    %5004 = vmatprep.subr.mxu0 0.0
    %5005 = vmatpush1.msra.mxu0 %v4743
    %5006 = vmatprep.subr.mxu0 0.0
    %5007 = vmatpush1.msra.mxu0 %v4744
    %5008 = vmatprep.subr.mxu0 0.0
    %5009 = vmatpush1.msra.mxu0 %v4745
    %5010 = vmatprep.subr.mxu0 0.0
    %5011 = vmatpush1.msra.mxu0 %v4746
    %5012 = vmatprep.subr.mxu0 0.0
    %5013 = vmatpush1.msra.mxu0 %v4747
    %5014 = vmatprep.subr.mxu0 0.0
    %5015 = vmatpush1.msra.mxu0 %v4748
    %5016 = vmatprep.subr.mxu0 0.0
    %5017 = vmatpush1.msra.mxu0 %v4749
    %5018 = vmatprep.subr.mxu0 0.0
    %5019 = vmatpush1.msra.mxu0 %v4750
    %5020 = vmatprep.subr.mxu0 0.0
    %5021 = vmatpush1.msra.mxu0 %v4751
    %5022 = vmatprep.subr.mxu0 0.0
    %5023 = vmatpush1.msra.mxu0 %v4752
    %5024 = vmatprep.subr.mxu0 0.0
    %5025 = vmatpush1.msra.mxu0 %v4753
    %5026 = vmatprep.subr.mxu0 0.0
    %5027 = vmatpush1.msra.mxu0 %v4754
    %5028 = vmatprep.subr.mxu0 0.0
    %5029 = vmatpush1.msra.mxu0 %v4755
    %5030 = vmatprep.subr.mxu0 0.0
    %5031 = vmatpush1.msra.mxu0 %v4756
    %5032 = vmatprep.subr.mxu0 0.0
    %5033 = vmatpush1.msra.mxu0 %v4757
    %5034 = vmatprep.subr.mxu0 0.0
    %5035 = vmatpush1.msra.mxu0 %v4758
    %5036 = vmatprep.subr.mxu0 0.0
    %5037 = vmatpush1.msra.mxu0 %v4759
    %5038 = vmatprep.subr.mxu0 0.0
    %5039 = vmatpush1.msra.mxu0 %v4760
    %5040 = vmatprep.subr.mxu0 0.0
    %5041 = vmatpush1.msra.mxu0 %v4761
    %5042 = vmatprep.subr.mxu0 0.0
    %5043 = vmatpush1.msra.mxu0 %v4762
    %5044 = vmatprep.subr.mxu0 0.0
    %5045 = vmatpush1.msra.mxu0 %v4763
    %5046 = vmatprep.subr.mxu0 0.0
    %5047 = vmatpush1.msra.mxu0 %v4764
    %5048 = vmatprep.subr.mxu0 0.0
    %5049 = vmatpush1.msra.mxu0 %v4765
    %5050 = vmatprep.subr.mxu0 0.0
    %5051 = vmatpush1.msra.mxu0 %v4766
    %5052 = vmatprep.subr.mxu0 0.0
    %5053 = vmatpush1.msra.mxu0 %v4767
    %5054 = vmatprep.subr.mxu0 0.0
    %5055 = vmatpush1.msra.mxu0 %v4768
    %5056 = vmatprep.subr.mxu0 0.0
    %5057 = vmatpush1.msra.mxu0 %v4769
    %5058 = vmatprep.subr.mxu0 0.0
    %5059 = vmatpush1.msra.mxu0 %v4770
    %5060 = vmatprep.mubr.f32.mxu0 %v4634
    %5061 = vmatmul.mubr.f32.gmra.mrb[0].mxu0 %v4633
    %v5062 = vpop.f32.mrb[0].mxu0
    %v5063 = vadd.f32 %v4988, %v5062
    %v5064 = vpop.f32.mrb[0].mxu0
    %5065 = vmatprep.mubr.f32.mxu0 %v4642
    %5066 = vmatmul.mubr.f32.gmra.mrb[0].mxu0 %v4641
    %v5067 = vpop.f32.mrb[0].mxu0
    %v5068 = vadd.f32 %v4993, %v5067
    %v5069 = vpop.f32.mrb[0].mxu0
    %5070 = vdwg.mxu0
    %v5071 = vxor.u32 %v381, 2147483648
    %v5072 = vxor.u32 %v386, 2147483648
    %v5073 = vmul.f32 %v5071, 1.442695
    %v5074 = vpow.pop %v5073
    %v5075 = vmul.f32 %v5072, 1.442695
    %v5076 = vpow.pop %v5075
    %v5077 = vadd.f32 %v5074, 1.0
    %v5078 = vadd.f32 %v5076, 1.0
    %v5079 = vrcp.pop %v5077
    %v5080 = vmul.f32 1.0, %v5079
    %v5081 = vrcp.pop %v5078
    %v5082 = vmul.f32 1.0, %v5081
    %v5083 = vmul.f32 %v381, %v5080
    %v5084 = vmul.f32 %v386, %v5082
    %v5085 = vmul.f32 %v5063, %v5083
    %v5086 = vmul.f32 %v5068, %v5084
    %v5087 = vld [vmem:[%s19] sm:$0xff]
    %v5088 = vld [vmem:[%s19 + $0x8] sm:$0xff]
    %v5089 = vld [vmem:[%s19 + $0x10] sm:$0xff]
    %v5090 = vld [vmem:[%s19 + $0x18] sm:$0xff]
    %v5091 = vld [vmem:[%s19 + $0x20] sm:$0xff]
    %v5092 = vld [vmem:[%s19 + $0x28] sm:$0xff]
    %v5093 = vld [vmem:[%s19 + $0x30] sm:$0xff]
    %v5094 = vld [vmem:[%s19 + $0x38] sm:$0xff]
    %v5095 = vld [vmem:[%s20] sm:$0x1]
    %v5097 = vlaneseq
    %v5098 = vshrl.u32 %v5097, 7
    %v5099 = vsub.s32 0, %v5098
    %v5100 = vrot.slane %v5095, %v5099
    %v5103 = vsel %vm983, %v5085, 0
    %v5106 = vsel %vm983, %v5086, 0
    %5108 = vmatprep.subr.mxu0 0.0
    %5109 = vmatpush1.msra.mxu0 %v5087
    %5110 = vmatprep.subr.mxu0 0.0
    %5111 = vmatpush1.msra.mxu0 %v5088
    %5112 = vmatprep.subr.mxu0 0.0
    %5113 = vmatpush1.msra.mxu0 %v5089
    %5114 = vmatprep.subr.mxu0 0.0
    %5115 = vmatpush1.msra.mxu0 %v5090
    %5116 = vmatprep.subr.mxu0 0.0
    %5117 = vmatpush1.msra.mxu0 %v5091
    %5118 = vmatprep.subr.mxu0 0.0
    %5119 = vmatpush1.msra.mxu0 %v5092
    %5120 = vmatprep.subr.mxu0 0.0
    %5121 = vmatpush1.msra.mxu0 %v5093
    %5122 = vmatprep.subr.mxu0 0.0
    %5123 = vmatpush1.msra.mxu0 %v5094
    %5124 = vmatprep.subr.mxu0 0.0
    %5125 = vmatpush1.msra.mxu0 0.0
    %5126 = vmatprep.subr.mxu0 0.0
    %5127 = vmatpush1.msra.mxu0 0.0
    %5128 = vmatprep.subr.mxu0 0.0
    %5129 = vmatpush1.msra.mxu0 0.0
    %5130 = vmatprep.subr.mxu0 0.0
    %5131 = vmatpush1.msra.mxu0 0.0
    %5132 = vmatprep.subr.mxu0 0.0
    %5133 = vmatpush1.msra.mxu0 0.0
    %5134 = vmatprep.subr.mxu0 0.0
    %5135 = vmatpush1.msra.mxu0 0.0
    %5136 = vmatprep.subr.mxu0 0.0
    %5137 = vmatpush1.msra.mxu0 0.0
    %5138 = vmatprep.subr.mxu0 0.0
    %5139 = vmatpush1.msra.mxu0 0.0
    %5140 = vmatprep.subr.mxu0 0.0
    %5141 = vmatpush1.msra.mxu0 0.0
    %5142 = vmatprep.subr.mxu0 0.0
    %5143 = vmatpush1.msra.mxu0 0.0
    %5144 = vmatprep.subr.mxu0 0.0
    %5145 = vmatpush1.msra.mxu0 0.0
    %5146 = vmatprep.subr.mxu0 0.0
    %5147 = vmatpush1.msra.mxu0 0.0
    %5148 = vmatprep.subr.mxu0 0.0
    %5149 = vmatpush1.msra.mxu0 0.0
    %5150 = vmatprep.subr.mxu0 0.0
    %5151 = vmatpush1.msra.mxu0 0.0
    %5152 = vmatprep.subr.mxu0 0.0
    %5153 = vmatpush1.msra.mxu0 0.0
    %5154 = vmatprep.subr.mxu0 0.0
    %5155 = vmatpush1.msra.mxu0 0.0
    %5156 = vmatprep.subr.mxu0 0.0
    %5157 = vmatpush1.msra.mxu0 0.0
    %5158 = vmatprep.subr.mxu0 0.0
    %5159 = vmatpush1.msra.mxu0 0.0
    %5160 = vmatprep.subr.mxu0 0.0
    %5161 = vmatpush1.msra.mxu0 0.0
    %5162 = vmatprep.subr.mxu0 0.0
    %5163 = vmatpush1.msra.mxu0 0.0
    %5164 = vmatprep.subr.mxu0 0.0
    %5165 = vmatpush1.msra.mxu0 0.0
    %5166 = vmatprep.subr.mxu0 0.0
    %5167 = vmatpush1.msra.mxu0 0.0
    %5168 = vmatprep.subr.mxu0 0.0
    %5169 = vmatpush1.msra.mxu0 0.0
    %5170 = vmatprep.subr.mxu0 0.0
    %5171 = vmatpush1.msra.mxu0 0.0
    %5172 = vmatprep.mubr.f32.mxu0 0.0
    %5173 = vmatmul.mubr.f32.gmra.mrb[0].mxu0 %v5103
    %v5174 = vpop.f32.mrb[0].mxu0
    %v5175 = vadd.f32 %v5100, %v5174
    %v5176 = vpop.f32.mrb[0].mxu0
    %5177 = vmatprep.mubr.f32.mxu0 0.0
    %5178 = vmatmul.mubr.f32.gmra.mrb[0].mxu0 %v5106
    %v5179 = vpop.f32.mrb[0].mxu0
    %v5180 = vadd.f32 %v5100, %v5179
    %v5181 = vpop.f32.mrb[0].mxu0
    %5182 = vdwg.mxu0
    %5183 = vst [vmem:[#allocation20] sm:$0xff] %v5175
    %5184 = vst [vmem:[#allocation20 + $0x8] sm:$0xff] %v5180
    // Predicated region
    $region130: #{tpu_custom_call.1} parent=1 // pred_check
      _
    $region131: #{tpu_custom_call.1} parent=1 // pred_check_branch
      %5186 = sbr.rel (0) target = $region133
    $region132: #{tpu_custom_call.1} parent=1 // pred_region
      %s5188 = ssub.s32 256, 256
      %5189 = vsyncadd [#allocation4], %s5188
      %s5190 = sshll.u32 [#allocation20], 4
      %s5191 = int_to_ptr.vmem [resolvable:$true] %s5190
      %5196 = dma.vmem_to_hbm [thread:$0]  %s5191, 256, %s21, [#allocation4], 128, 128, 8
    $region133: #{tpu_custom_call.1} parent=1 // pred_fallthru
      _
    // Predicated region
    $region134: #{tpu_custom_call.1} parent=1 // pred_check
      _
    $region135: #{tpu_custom_call.1} parent=1 // pred_check_branch
      %5198 = sbr.rel (0) target = $region137
    $region136: #{tpu_custom_call.1} parent=1 // pred_region
      %5199 = dma.done [#allocation4], 256
    $region137: #{tpu_custom_call.1} parent=1 // pred_fallthru
      _
    %5200 = vsyncpa [#allocation3], 1
    %5201 = vsyncpa [#allocation6], 1
    %5202 = vsyncpa [#allocation9], 1
    %5203 = vsyncpa [#allocation12], 1
    %5204 = vsyncpa [#allocation15], 1
    %5205 = vsyncpa [#allocation18], 1
    %5206 = vsyncpa [#allocation4], 1

</llo_original>
